<compile_context>
chip_gen: v6e
topology: v6e:2x2x1
jax: 0.10.0
libtpu: 0.0.40
codegen_flags: <defaults>
</compile_context>

<pallas_src>
import math

import jax
import jax.numpy as jnp
import numpy as np
from jax.experimental import pallas as pl
from jax.experimental.pallas import tpu as pltpu


# ----------------------------------------------------------------------------
# Fused kernel: conv + relu + maxpool + residual MLP head, batch-on-lanes.
# ----------------------------------------------------------------------------
def cnn_fused_kernel(xq_ref, wc_ref, bc_ref, w1b_ref, b1_ref, w2_ref, b2_ref,
                     w3_ref, b3_ref, w4_ref, b4_ref, out_ref):
    # xq_ref : (16, 7, 7, BT)  mod-4 deinterleaved padded input planes,
    #          xq[4*c + d, m, n, b] == Ppad[b, 4m + c, 4n + d]  (Ppad = 28x28)
    # wc_ref : (4, 4) conv weights (SMEM scalars), bc_ref: (1, 1) conv bias
    # w1b_ref: (6, 4, 6)  fc1 weights, w1b[h, k, w] = W1[6h + w, k]
    # w2/w3  : (4, 4) transposed fc weights;  w4: (10, 4)
    # b*_ref : column biases (4, 1) / (10, 1)
    # out_ref: (10, BT) logits, batch on lanes (lane-dense store)

    # Read the 16 conv scalars from SMEM once, outside all loops.
    w = [[wc_ref[di, dj] for dj in range(4)] for di in range(4)]

    # pooled[i, j] = relu(b + max_{pi,pj in 0..2} sum_{di,dj in 0..3}
    #                        Ppad[4i + 2pi + di, 4j + 2pj + dj] * w[di, dj])
    # Every Ppad access maps to a contiguous slice of one deinterleaved plane.
    # Only accumulators m and s (2 x ~12 vregs at BT=256) stay live.
    m = None
    for pi in range(3):
        for pj in range(3):
            s = None
            for di in range(4):
                oh = 2 * pi + di
                ah, ch = oh // 4, oh % 4
                for dj in range(4):
                    ow = 2 * pj + dj
                    aw, cw = ow // 4, ow % 4
                    patch = xq_ref[4 * ch + cw, ah:ah + 6, aw:aw + 6, :]  # (6,6,BT)
                    term = patch * w[di][dj]
                    s = term if s is None else s + term
            m = s if m is None else jnp.maximum(m, s)
    pooled = jnp.maximum(m + bc_ref[0, 0], 0.0)                         # (6, 6, BT)

    # fc1 in transposed orientation: H1[k, b] = sum_{h,w} W1[6h+w, k] * pooled[h, w, b]
    # (kept on the MXU; VALU is the binding slot for this kernel).
    acc = None
    for h in range(6):
        t = jnp.dot(w1b_ref[h], pooled[h], preferred_element_type=jnp.float32)
        acc = t if acc is None else acc + t
    h1 = jnp.maximum(acc + b1_ref[...], 0.0)                            # (4, BT)
    h2 = jnp.maximum(jnp.dot(w2_ref[...], h1, preferred_element_type=jnp.float32)
                     + b2_ref[...] + h1, 0.0)                           # (4, BT)
    h3 = jnp.maximum(jnp.dot(w3_ref[...], h2, preferred_element_type=jnp.float32)
                     + b3_ref[...] + h2, 0.0)                           # (4, BT)
    out_ref[...] = (jnp.dot(w4_ref[...], h3, preferred_element_type=jnp.float32)
                    + b4_ref[...])                                      # (10, BT)


# ----------------------------------------------------------------------------
# Wrapper: relayout (batch -> lanes, mod-4 H/W deinterleave) + pallas_call.
# ----------------------------------------------------------------------------
def cnn_forward(x, params, block_b=256):
    wconv, bconv, w1, b1, w2, b2, w3, b3, w4, b4 = params
    B = x.shape[0]

    # Batch tile: multiple of 128 lanes.  Capped at block_b (=256) to bound
    # vreg pressure in the conv/pool accumulation, and chosen so the grid has
    # >= 2 steps once B >= 256 so the "parallel" axis shards across both
    # TensorCores on v7x.
    BT = max(128, min(block_b, 128 * pl.cdiv(B, 256)))
    Bpad = BT * pl.cdiv(B, BT)
    n_tiles = Bpad // BT

    # Only padded rows/cols 0..27 are ever read by the fused conv+pool
    # (original image row/col 27 never is), so pad 1 top/left around the
    # 27x27 crop -> 28x28 plane, pad the batch, and mod-4 deinterleave H/W
    # with batch moved to the minor (lane) axis:
    #   xq[4*c + d, m, n, b] == Ppad[b, 4m + c, 4n + d]
    # NOTE: this relayout is a separate XLA HBM pass; a production pipeline
    # should produce xq in this batch-minor layout upstream (perf review #8).
    xi = x[:, 0, :27, :27]                                              # (B, 27, 27)
    P = jnp.pad(xi, ((0, Bpad - B), (1, 0), (1, 0)))                    # (Bpad, 28, 28)
    xq = (P.reshape(Bpad, 7, 4, 7, 4)
            .transpose(2, 4, 1, 3, 0)                                   # (4, 4, 7, 7, Bpad)
            .reshape(16, 7, 7, Bpad))

    # Parameters in transposed (out-features leading, batch-on-lanes) layout.
    w1b = w1.reshape(6, 6, 4).transpose(0, 2, 1)                        # (6, 4, 6)
    b1t = b1.reshape(4, 1)
    w2t = w2.T                                                          # (4, 4)
    b2t = b2.reshape(4, 1)
    w3t = w3.T                                                          # (4, 4)
    b3t = b3.reshape(4, 1)
    w4t = w4.T                                                          # (10, 4)
    b4t = b4.reshape(10, 1)

    # VMEM use per step (double-buffered input ~2 * 16*7*8*BT*4 B ~ 1.8 MiB at
    # BT=256) is far below the default scoped limit; no vmem_limit_bytes
    # override needed unless block_b is raised to >= 1024.
    out = pl.pallas_call(
        cnn_fused_kernel,
        out_shape=jax.ShapeDtypeStruct((10, Bpad), jnp.float32),
        grid=(n_tiles,),
        in_specs=[
            pl.BlockSpec((16, 7, 7, BT), lambda t: (0, 0, 0, t)),       # input planes
            pl.BlockSpec(memory_space=pltpu.MemorySpace.SMEM),          # conv weights
            pl.BlockSpec(memory_space=pltpu.MemorySpace.SMEM),          # conv bias
            pl.BlockSpec((6, 4, 6), lambda t: (0, 0, 0)),               # fc1 weight blocks
            pl.BlockSpec((4, 1), lambda t: (0, 0)),                     # fc1 bias
            pl.BlockSpec((4, 4), lambda t: (0, 0)),                     # fc2 weight
            pl.BlockSpec((4, 1), lambda t: (0, 0)),                     # fc2 bias
            pl.BlockSpec((4, 4), lambda t: (0, 0)),                     # fc3 weight
            pl.BlockSpec((4, 1), lambda t: (0, 0)),                     # fc3 bias
            pl.BlockSpec((10, 4), lambda t: (0, 0)),                    # fc4 weight
            pl.BlockSpec((10, 1), lambda t: (0, 0)),                    # fc4 bias
        ],
        out_specs=pl.BlockSpec((10, BT), lambda t: (0, t)),
        compiler_params=pltpu.CompilerParams(
            dimension_semantics=("parallel",)),
    )(xq, wconv, bconv, w1b, b1t, w2t, b2t, w3t, b3t, w4t, b4t)

    return out[:, :B].T                                                 # (B, 10)


# ----------------------------------------------------------------------------
# Deterministic parameter init (Xavier uniform weights, zero biases).
# Linear weights are stored as (in, out) == W.T of the PyTorch (out, in) layout.
# ----------------------------------------------------------------------------
def xavier_uniform(key, shape, fan_in, fan_out):
    bound = math.sqrt(6.0 / (fan_in + fan_out))
    return jax.random.uniform(key, shape, jnp.float32, -bound, bound)


def init_params(key):
    k = jax.random.split(key, 5)
    wconv = xavier_uniform(k[0], (4, 4), 16, 16)          # conv1: (out=1, in=1, 4, 4)
    bconv = jnp.zeros((1, 1), jnp.float32)
    w1 = xavier_uniform(k[1], (36, 4), 36, 4)
    b1 = jnp.zeros((1, 4), jnp.float32)
    w2 = xavier_uniform(k[2], (4, 4), 4, 4)
    b2 = jnp.zeros((1, 4), jnp.float32)
    w3 = xavier_uniform(k[3], (4, 4), 4, 4)
    b3 = jnp.zeros((1, 4), jnp.float32)
    w4 = xavier_uniform(k[4], (4, 10), 4, 10)
    b4 = jnp.zeros((1, 10), jnp.float32)
    return (wconv, bconv, w1, b1, w2, b2, w3, b3, w4, b4)


# Pure-JAX reference (same math via XLA convolution / reduce_window).
def cnn_reference(x, params):
    wconv, bconv, w1, b1, w2, b2, w3, b3, w4, b4 = params
    conv = jax.lax.conv_general_dilated(
        x, wconv.reshape(1, 1, 4, 4), window_strides=(2, 2),
        padding=((1, 1), (1, 1)),
        dimension_numbers=("NCHW", "OIHW", "NCHW")) + bconv.reshape(1, 1, 1, 1)
    r = jnp.maximum(conv, 0.0)
    p = jax.lax.reduce_window(r, -jnp.inf, jax.lax.max,
                              (1, 1, 3, 3), (1, 1, 2, 2), "VALID")
    f = p.reshape(x.shape[0], -1)
    h = jnp.maximum(f @ w1 + b1, 0.0)
    h = jnp.maximum(h @ w2 + b2 + h, 0.0)
    h = jnp.maximum(h @ w3 + b3 + h, 0.0)
    return h @ w4 + b4


if __name__ == "__main__":
    key = jax.random.PRNGKey(0)
    kx1, kx2, kp = jax.random.split(key, 3)
    params = init_params(kp)
    fwd = jax.jit(cnn_forward)

    # 1) Small single-tile batch (single grid step).
    B1 = 8
    x1 = jax.random.normal(kx1, (B1, 1, 28, 28), jnp.float32)   # NCHW, MNIST-sized
    out1 = jax.block_until_ready(fwd(x1, params))
    ref1 = jax.block_until_ready(cnn_reference(x1, params))
    assert out1.shape == (B1, 10), out1.shape
    np.testing.assert_allclose(np.asarray(out1), np.asarray(ref1),
                               rtol=1e-4, atol=1e-4)

    # 2) Multi-tile grid: B > BT and not a multiple of 128, exercising the
    #    "parallel" grid axis, batch padding and the slice-off path.
    B2 = 160
    x2 = jax.random.normal(kx2, (B2, 1, 28, 28), jnp.float32)
    out2 = jax.block_until_ready(fwd(x2, params))
    ref2 = jax.block_until_ready(cnn_reference(x2, params))
    assert out2.shape == (B2, 10), out2.shape
    np.testing.assert_allclose(np.asarray(out2), np.asarray(ref2),
                               rtol=1e-4, atol=1e-4)

    print("KERNEL_OK")
</pallas_src>

<mosaic_0001>
module attributes {stable_mosaic.version = 11 : i64} {
  func.func @cnn_fused_kernel(%arg0: i32, %arg1: memref<16x7x7x128xf32, #tpu.memory_space<vmem>>, %arg2: memref<4x4xf32, #tpu.memory_space<smem>>, %arg3: memref<1x1xf32, #tpu.memory_space<smem>>, %arg4: memref<6x4x6xf32, #tpu.memory_space<vmem>>, %arg5: memref<4x1xf32, #tpu.memory_space<vmem>>, %arg6: memref<4x4xf32, #tpu.memory_space<vmem>>, %arg7: memref<4x1xf32, #tpu.memory_space<vmem>>, %arg8: memref<4x4xf32, #tpu.memory_space<vmem>>, %arg9: memref<4x1xf32, #tpu.memory_space<vmem>>, %arg10: memref<10x4xf32, #tpu.memory_space<vmem>>, %arg11: memref<10x1xf32, #tpu.memory_space<vmem>>, %arg12: memref<10x128xf32, #tpu.memory_space<vmem>>) attributes {dimension_semantics = [#tpu.dimension_semantics<parallel>], iteration_bounds = array<i64: 1>, scalar_prefetch = 0 : i64, scratch_operands = 0 : i64, tpu.core_type = #tpu.core_type<tc>, window_params = [{transform_indices = @transform_0, window_bounds = array<i64: 16, 7, 7, 128>}, {transform_indices = @transform_1, window_bounds = array<i64: 4, 4>}, {transform_indices = @transform_2, window_bounds = array<i64: 1, 1>}, {pipeline_mode = #tpu.pipeline_mode<synchronous>, transform_indices = @transform_3, window_bounds = array<i64: 6, 4, 6>}, {pipeline_mode = #tpu.pipeline_mode<synchronous>, transform_indices = @transform_4, window_bounds = array<i64: 4, 1>}, {pipeline_mode = #tpu.pipeline_mode<synchronous>, transform_indices = @transform_5, window_bounds = array<i64: 4, 4>}, {pipeline_mode = #tpu.pipeline_mode<synchronous>, transform_indices = @transform_6, window_bounds = array<i64: 4, 1>}, {pipeline_mode = #tpu.pipeline_mode<synchronous>, transform_indices = @transform_7, window_bounds = array<i64: 4, 4>}, {pipeline_mode = #tpu.pipeline_mode<synchronous>, transform_indices = @transform_8, window_bounds = array<i64: 4, 1>}, {pipeline_mode = #tpu.pipeline_mode<synchronous>, transform_indices = @transform_9, window_bounds = array<i64: 10, 4>}, {pipeline_mode = #tpu.pipeline_mode<synchronous>, transform_indices = @transform_10, window_bounds = array<i64: 10, 1>}, {transform_indices = @transform_11, window_bounds = array<i64: 10, 128>}]} {
    %c0 = arith.constant 0 : index
    %c0_0 = arith.constant 0 : index
    %0 = memref.load %arg2[%c0, %c0_0] : memref<4x4xf32, #tpu.memory_space<smem>>
    %c0_1 = arith.constant 0 : index
    %c1 = arith.constant 1 : index
    %1 = memref.load %arg2[%c0_1, %c1] : memref<4x4xf32, #tpu.memory_space<smem>>
    %c0_2 = arith.constant 0 : index
    %c2 = arith.constant 2 : index
    %2 = memref.load %arg2[%c0_2, %c2] : memref<4x4xf32, #tpu.memory_space<smem>>
    %c0_3 = arith.constant 0 : index
    %c3 = arith.constant 3 : index
    %3 = memref.load %arg2[%c0_3, %c3] : memref<4x4xf32, #tpu.memory_space<smem>>
    %c1_4 = arith.constant 1 : index
    %c0_5 = arith.constant 0 : index
    %4 = memref.load %arg2[%c1_4, %c0_5] : memref<4x4xf32, #tpu.memory_space<smem>>
    %c1_6 = arith.constant 1 : index
    %c1_7 = arith.constant 1 : index
    %5 = memref.load %arg2[%c1_6, %c1_7] : memref<4x4xf32, #tpu.memory_space<smem>>
    %c1_8 = arith.constant 1 : index
    %c2_9 = arith.constant 2 : index
    %6 = memref.load %arg2[%c1_8, %c2_9] : memref<4x4xf32, #tpu.memory_space<smem>>
    %c1_10 = arith.constant 1 : index
    %c3_11 = arith.constant 3 : index
    %7 = memref.load %arg2[%c1_10, %c3_11] : memref<4x4xf32, #tpu.memory_space<smem>>
    %c2_12 = arith.constant 2 : index
    %c0_13 = arith.constant 0 : index
    %8 = memref.load %arg2[%c2_12, %c0_13] : memref<4x4xf32, #tpu.memory_space<smem>>
    %c2_14 = arith.constant 2 : index
    %c1_15 = arith.constant 1 : index
    %9 = memref.load %arg2[%c2_14, %c1_15] : memref<4x4xf32, #tpu.memory_space<smem>>
    %c2_16 = arith.constant 2 : index
    %c2_17 = arith.constant 2 : index
    %10 = memref.load %arg2[%c2_16, %c2_17] : memref<4x4xf32, #tpu.memory_space<smem>>
    %c2_18 = arith.constant 2 : index
    %c3_19 = arith.constant 3 : index
    %11 = memref.load %arg2[%c2_18, %c3_19] : memref<4x4xf32, #tpu.memory_space<smem>>
    %c3_20 = arith.constant 3 : index
    %c0_21 = arith.constant 0 : index
    %12 = memref.load %arg2[%c3_20, %c0_21] : memref<4x4xf32, #tpu.memory_space<smem>>
    %c3_22 = arith.constant 3 : index
    %c1_23 = arith.constant 1 : index
    %13 = memref.load %arg2[%c3_22, %c1_23] : memref<4x4xf32, #tpu.memory_space<smem>>
    %c3_24 = arith.constant 3 : index
    %c2_25 = arith.constant 2 : index
    %14 = memref.load %arg2[%c3_24, %c2_25] : memref<4x4xf32, #tpu.memory_space<smem>>
    %c3_26 = arith.constant 3 : index
    %c3_27 = arith.constant 3 : index
    %15 = memref.load %arg2[%c3_26, %c3_27] : memref<4x4xf32, #tpu.memory_space<smem>>
    %c0_28 = arith.constant 0 : index
    %c0_29 = arith.constant 0 : index
    %c0_30 = arith.constant 0 : index
    %c0_31 = arith.constant 0 : index
    %16 = vector.load %arg1[%c0_28, %c0_29, %c0_30, %c0_31] : memref<16x7x7x128xf32, #tpu.memory_space<vmem>>, vector<1x6x6x128xf32>
    %17 = vector.shape_cast %16 : vector<1x6x6x128xf32> to vector<6x6x128xf32>
    %18 = vector.broadcast %0 : f32 to vector<6x6x128xf32>
    %19 = arith.mulf %17, %18 : vector<6x6x128xf32>
    %c1_32 = arith.constant 1 : index
    %c0_33 = arith.constant 0 : index
    %c0_34 = arith.constant 0 : index
    %c0_35 = arith.constant 0 : index
    %20 = vector.load %arg1[%c1_32, %c0_33, %c0_34, %c0_35] : memref<16x7x7x128xf32, #tpu.memory_space<vmem>>, vector<1x6x6x128xf32>
    %21 = vector.shape_cast %20 : vector<1x6x6x128xf32> to vector<6x6x128xf32>
    %22 = vector.broadcast %1 : f32 to vector<6x6x128xf32>
    %23 = arith.mulf %21, %22 : vector<6x6x128xf32>
    %24 = arith.addf %19, %23 : vector<6x6x128xf32>
    %c2_36 = arith.constant 2 : index
    %c0_37 = arith.constant 0 : index
    %c0_38 = arith.constant 0 : index
    %c0_39 = arith.constant 0 : index
    %25 = vector.load %arg1[%c2_36, %c0_37, %c0_38, %c0_39] : memref<16x7x7x128xf32, #tpu.memory_space<vmem>>, vector<1x6x6x128xf32>
    %26 = vector.shape_cast %25 : vector<1x6x6x128xf32> to vector<6x6x128xf32>
    %27 = vector.broadcast %2 : f32 to vector<6x6x128xf32>
    %28 = arith.mulf %26, %27 : vector<6x6x128xf32>
    %29 = arith.addf %24, %28 : vector<6x6x128xf32>
    %c3_40 = arith.constant 3 : index
    %c0_41 = arith.constant 0 : index
    %c0_42 = arith.constant 0 : index
    %c0_43 = arith.constant 0 : index
    %30 = vector.load %arg1[%c3_40, %c0_41, %c0_42, %c0_43] : memref<16x7x7x128xf32, #tpu.memory_space<vmem>>, vector<1x6x6x128xf32>
    %31 = vector.shape_cast %30 : vector<1x6x6x128xf32> to vector<6x6x128xf32>
    %32 = vector.broadcast %3 : f32 to vector<6x6x128xf32>
    %33 = arith.mulf %31, %32 : vector<6x6x128xf32>
    %34 = arith.addf %29, %33 : vector<6x6x128xf32>
    %c4 = arith.constant 4 : index
    %c0_44 = arith.constant 0 : index
    %c0_45 = arith.constant 0 : index
    %c0_46 = arith.constant 0 : index
    %35 = vector.load %arg1[%c4, %c0_44, %c0_45, %c0_46] : memref<16x7x7x128xf32, #tpu.memory_space<vmem>>, vector<1x6x6x128xf32>
    %36 = vector.shape_cast %35 : vector<1x6x6x128xf32> to vector<6x6x128xf32>
    %37 = vector.broadcast %4 : f32 to vector<6x6x128xf32>
    %38 = arith.mulf %36, %37 : vector<6x6x128xf32>
    %39 = arith.addf %34, %38 : vector<6x6x128xf32>
    %c5 = arith.constant 5 : index
    %c0_47 = arith.constant 0 : index
    %c0_48 = arith.constant 0 : index
    %c0_49 = arith.constant 0 : index
    %40 = vector.load %arg1[%c5, %c0_47, %c0_48, %c0_49] : memref<16x7x7x128xf32, #tpu.memory_space<vmem>>, vector<1x6x6x128xf32>
    %41 = vector.shape_cast %40 : vector<1x6x6x128xf32> to vector<6x6x128xf32>
    %42 = vector.broadcast %5 : f32 to vector<6x6x128xf32>
    %43 = arith.mulf %41, %42 : vector<6x6x128xf32>
    %44 = arith.addf %39, %43 : vector<6x6x128xf32>
    %c6 = arith.constant 6 : index
    %c0_50 = arith.constant 0 : index
    %c0_51 = arith.constant 0 : index
    %c0_52 = arith.constant 0 : index
    %45 = vector.load %arg1[%c6, %c0_50, %c0_51, %c0_52] : memref<16x7x7x128xf32, #tpu.memory_space<vmem>>, vector<1x6x6x128xf32>
    %46 = vector.shape_cast %45 : vector<1x6x6x128xf32> to vector<6x6x128xf32>
    %47 = vector.broadcast %6 : f32 to vector<6x6x128xf32>
    %48 = arith.mulf %46, %47 : vector<6x6x128xf32>
    %49 = arith.addf %44, %48 : vector<6x6x128xf32>
    %c7 = arith.constant 7 : index
    %c0_53 = arith.constant 0 : index
    %c0_54 = arith.constant 0 : index
    %c0_55 = arith.constant 0 : index
    %50 = vector.load %arg1[%c7, %c0_53, %c0_54, %c0_55] : memref<16x7x7x128xf32, #tpu.memory_space<vmem>>, vector<1x6x6x128xf32>
    %51 = vector.shape_cast %50 : vector<1x6x6x128xf32> to vector<6x6x128xf32>
    %52 = vector.broadcast %7 : f32 to vector<6x6x128xf32>
    %53 = arith.mulf %51, %52 : vector<6x6x128xf32>
    %54 = arith.addf %49, %53 : vector<6x6x128xf32>
    %c8 = arith.constant 8 : index
    %c0_56 = arith.constant 0 : index
    %c0_57 = arith.constant 0 : index
    %c0_58 = arith.constant 0 : index
    %55 = vector.load %arg1[%c8, %c0_56, %c0_57, %c0_58] : memref<16x7x7x128xf32, #tpu.memory_space<vmem>>, vector<1x6x6x128xf32>
    %56 = vector.shape_cast %55 : vector<1x6x6x128xf32> to vector<6x6x128xf32>
    %57 = vector.broadcast %8 : f32 to vector<6x6x128xf32>
    %58 = arith.mulf %56, %57 : vector<6x6x128xf32>
    %59 = arith.addf %54, %58 : vector<6x6x128xf32>
    %c9 = arith.constant 9 : index
    %c0_59 = arith.constant 0 : index
    %c0_60 = arith.constant 0 : index
    %c0_61 = arith.constant 0 : index
    %60 = vector.load %arg1[%c9, %c0_59, %c0_60, %c0_61] : memref<16x7x7x128xf32, #tpu.memory_space<vmem>>, vector<1x6x6x128xf32>
    %61 = vector.shape_cast %60 : vector<1x6x6x128xf32> to vector<6x6x128xf32>
    %62 = vector.broadcast %9 : f32 to vector<6x6x128xf32>
    %63 = arith.mulf %61, %62 : vector<6x6x128xf32>
    %64 = arith.addf %59, %63 : vector<6x6x128xf32>
    %c10 = arith.constant 10 : index
    %c0_62 = arith.constant 0 : index
    %c0_63 = arith.constant 0 : index
    %c0_64 = arith.constant 0 : index
    %65 = vector.load %arg1[%c10, %c0_62, %c0_63, %c0_64] : memref<16x7x7x128xf32, #tpu.memory_space<vmem>>, vector<1x6x6x128xf32>
    %66 = vector.shape_cast %65 : vector<1x6x6x128xf32> to vector<6x6x128xf32>
    %67 = vector.broadcast %10 : f32 to vector<6x6x128xf32>
    %68 = arith.mulf %66, %67 : vector<6x6x128xf32>
    %69 = arith.addf %64, %68 : vector<6x6x128xf32>
    %c11 = arith.constant 11 : index
    %c0_65 = arith.constant 0 : index
    %c0_66 = arith.constant 0 : index
    %c0_67 = arith.constant 0 : index
    %70 = vector.load %arg1[%c11, %c0_65, %c0_66, %c0_67] : memref<16x7x7x128xf32, #tpu.memory_space<vmem>>, vector<1x6x6x128xf32>
    %71 = vector.shape_cast %70 : vector<1x6x6x128xf32> to vector<6x6x128xf32>
    %72 = vector.broadcast %11 : f32 to vector<6x6x128xf32>
    %73 = arith.mulf %71, %72 : vector<6x6x128xf32>
    %74 = arith.addf %69, %73 : vector<6x6x128xf32>
    %c12 = arith.constant 12 : index
    %c0_68 = arith.constant 0 : index
    %c0_69 = arith.constant 0 : index
    %c0_70 = arith.constant 0 : index
    %75 = vector.load %arg1[%c12, %c0_68, %c0_69, %c0_70] : memref<16x7x7x128xf32, #tpu.memory_space<vmem>>, vector<1x6x6x128xf32>
    %76 = vector.shape_cast %75 : vector<1x6x6x128xf32> to vector<6x6x128xf32>
    %77 = vector.broadcast %12 : f32 to vector<6x6x128xf32>
    %78 = arith.mulf %76, %77 : vector<6x6x128xf32>
    %79 = arith.addf %74, %78 : vector<6x6x128xf32>
    %c13 = arith.constant 13 : index
    %c0_71 = arith.constant 0 : index
    %c0_72 = arith.constant 0 : index
    %c0_73 = arith.constant 0 : index
    %80 = vector.load %arg1[%c13, %c0_71, %c0_72, %c0_73] : memref<16x7x7x128xf32, #tpu.memory_space<vmem>>, vector<1x6x6x128xf32>
    %81 = vector.shape_cast %80 : vector<1x6x6x128xf32> to vector<6x6x128xf32>
    %82 = vector.broadcast %13 : f32 to vector<6x6x128xf32>
    %83 = arith.mulf %81, %82 : vector<6x6x128xf32>
    %84 = arith.addf %79, %83 : vector<6x6x128xf32>
    %c14 = arith.constant 14 : index
    %c0_74 = arith.constant 0 : index
    %c0_75 = arith.constant 0 : index
    %c0_76 = arith.constant 0 : index
    %85 = vector.load %arg1[%c14, %c0_74, %c0_75, %c0_76] : memref<16x7x7x128xf32, #tpu.memory_space<vmem>>, vector<1x6x6x128xf32>
    %86 = vector.shape_cast %85 : vector<1x6x6x128xf32> to vector<6x6x128xf32>
    %87 = vector.broadcast %14 : f32 to vector<6x6x128xf32>
    %88 = arith.mulf %86, %87 : vector<6x6x128xf32>
    %89 = arith.addf %84, %88 : vector<6x6x128xf32>
    %c15 = arith.constant 15 : index
    %c0_77 = arith.constant 0 : index
    %c0_78 = arith.constant 0 : index
    %c0_79 = arith.constant 0 : index
    %90 = vector.load %arg1[%c15, %c0_77, %c0_78, %c0_79] : memref<16x7x7x128xf32, #tpu.memory_space<vmem>>, vector<1x6x6x128xf32>
    %91 = vector.shape_cast %90 : vector<1x6x6x128xf32> to vector<6x6x128xf32>
    %92 = vector.broadcast %15 : f32 to vector<6x6x128xf32>
    %93 = arith.mulf %91, %92 : vector<6x6x128xf32>
    %94 = arith.addf %89, %93 : vector<6x6x128xf32>
    %c2_80 = arith.constant 2 : index
    %c0_81 = arith.constant 0 : index
    %c0_82 = arith.constant 0 : index
    %c0_83 = arith.constant 0 : index
    %95 = vector.load %arg1[%c2_80, %c0_81, %c0_82, %c0_83] : memref<16x7x7x128xf32, #tpu.memory_space<vmem>>, vector<1x6x6x128xf32>
    %96 = vector.shape_cast %95 : vector<1x6x6x128xf32> to vector<6x6x128xf32>
    %97 = vector.broadcast %0 : f32 to vector<6x6x128xf32>
    %98 = arith.mulf %96, %97 : vector<6x6x128xf32>
    %c3_84 = arith.constant 3 : index
    %c0_85 = arith.constant 0 : index
    %c0_86 = arith.constant 0 : index
    %c0_87 = arith.constant 0 : index
    %99 = vector.load %arg1[%c3_84, %c0_85, %c0_86, %c0_87] : memref<16x7x7x128xf32, #tpu.memory_space<vmem>>, vector<1x6x6x128xf32>
    %100 = vector.shape_cast %99 : vector<1x6x6x128xf32> to vector<6x6x128xf32>
    %101 = vector.broadcast %1 : f32 to vector<6x6x128xf32>
    %102 = arith.mulf %100, %101 : vector<6x6x128xf32>
    %103 = arith.addf %98, %102 : vector<6x6x128xf32>
    %c0_88 = arith.constant 0 : index
    %c0_89 = arith.constant 0 : index
    %c1_90 = arith.constant 1 : index
    %c0_91 = arith.constant 0 : index
    %104 = vector.load %arg1[%c0_88, %c0_89, %c1_90, %c0_91] : memref<16x7x7x128xf32, #tpu.memory_space<vmem>>, vector<1x6x6x128xf32>
    %105 = vector.shape_cast %104 : vector<1x6x6x128xf32> to vector<6x6x128xf32>
    %106 = vector.broadcast %2 : f32 to vector<6x6x128xf32>
    %107 = arith.mulf %105, %106 : vector<6x6x128xf32>
    %108 = arith.addf %103, %107 : vector<6x6x128xf32>
    %c1_92 = arith.constant 1 : index
    %c0_93 = arith.constant 0 : index
    %c1_94 = arith.constant 1 : index
    %c0_95 = arith.constant 0 : index
    %109 = vector.load %arg1[%c1_92, %c0_93, %c1_94, %c0_95] : memref<16x7x7x128xf32, #tpu.memory_space<vmem>>, vector<1x6x6x128xf32>
    %110 = vector.shape_cast %109 : vector<1x6x6x128xf32> to vector<6x6x128xf32>
    %111 = vector.broadcast %3 : f32 to vector<6x6x128xf32>
    %112 = arith.mulf %110, %111 : vector<6x6x128xf32>
    %113 = arith.addf %108, %112 : vector<6x6x128xf32>
    %c6_96 = arith.constant 6 : index
    %c0_97 = arith.constant 0 : index
    %c0_98 = arith.constant 0 : index
    %c0_99 = arith.constant 0 : index
    %114 = vector.load %arg1[%c6_96, %c0_97, %c0_98, %c0_99] : memref<16x7x7x128xf32, #tpu.memory_space<vmem>>, vector<1x6x6x128xf32>
    %115 = vector.shape_cast %114 : vector<1x6x6x128xf32> to vector<6x6x128xf32>
    %116 = vector.broadcast %4 : f32 to vector<6x6x128xf32>
    %117 = arith.mulf %115, %116 : vector<6x6x128xf32>
    %118 = arith.addf %113, %117 : vector<6x6x128xf32>
    %c7_100 = arith.constant 7 : index
    %c0_101 = arith.constant 0 : index
    %c0_102 = arith.constant 0 : index
    %c0_103 = arith.constant 0 : index
    %119 = vector.load %arg1[%c7_100, %c0_101, %c0_102, %c0_103] : memref<16x7x7x128xf32, #tpu.memory_space<vmem>>, vector<1x6x6x128xf32>
    %120 = vector.shape_cast %119 : vector<1x6x6x128xf32> to vector<6x6x128xf32>
    %121 = vector.broadcast %5 : f32 to vector<6x6x128xf32>
    %122 = arith.mulf %120, %121 : vector<6x6x128xf32>
    %123 = arith.addf %118, %122 : vector<6x6x128xf32>
    %c4_104 = arith.constant 4 : index
    %c0_105 = arith.constant 0 : index
    %c1_106 = arith.constant 1 : index
    %c0_107 = arith.constant 0 : index
    %124 = vector.load %arg1[%c4_104, %c0_105, %c1_106, %c0_107] : memref<16x7x7x128xf32, #tpu.memory_space<vmem>>, vector<1x6x6x128xf32>
    %125 = vector.shape_cast %124 : vector<1x6x6x128xf32> to vector<6x6x128xf32>
    %126 = vector.broadcast %6 : f32 to vector<6x6x128xf32>
    %127 = arith.mulf %125, %126 : vector<6x6x128xf32>
    %128 = arith.addf %123, %127 : vector<6x6x128xf32>
    %c5_108 = arith.constant 5 : index
    %c0_109 = arith.constant 0 : index
    %c1_110 = arith.constant 1 : index
    %c0_111 = arith.constant 0 : index
    %129 = vector.load %arg1[%c5_108, %c0_109, %c1_110, %c0_111] : memref<16x7x7x128xf32, #tpu.memory_space<vmem>>, vector<1x6x6x128xf32>
    %130 = vector.shape_cast %129 : vector<1x6x6x128xf32> to vector<6x6x128xf32>
    %131 = vector.broadcast %7 : f32 to vector<6x6x128xf32>
    %132 = arith.mulf %130, %131 : vector<6x6x128xf32>
    %133 = arith.addf %128, %132 : vector<6x6x128xf32>
    %c10_112 = arith.constant 10 : index
    %c0_113 = arith.constant 0 : index
    %c0_114 = arith.constant 0 : index
    %c0_115 = arith.constant 0 : index
    %134 = vector.load %arg1[%c10_112, %c0_113, %c0_114, %c0_115] : memref<16x7x7x128xf32, #tpu.memory_space<vmem>>, vector<1x6x6x128xf32>
    %135 = vector.shape_cast %134 : vector<1x6x6x128xf32> to vector<6x6x128xf32>
    %136 = vector.broadcast %8 : f32 to vector<6x6x128xf32>
    %137 = arith.mulf %135, %136 : vector<6x6x128xf32>
    %138 = arith.addf %133, %137 : vector<6x6x128xf32>
    %c11_116 = arith.constant 11 : index
    %c0_117 = arith.constant 0 : index
    %c0_118 = arith.constant 0 : index
    %c0_119 = arith.constant 0 : index
    %139 = vector.load %arg1[%c11_116, %c0_117, %c0_118, %c0_119] : memref<16x7x7x128xf32, #tpu.memory_space<vmem>>, vector<1x6x6x128xf32>
    %140 = vector.shape_cast %139 : vector<1x6x6x128xf32> to vector<6x6x128xf32>
    %141 = vector.broadcast %9 : f32 to vector<6x6x128xf32>
    %142 = arith.mulf %140, %141 : vector<6x6x128xf32>
    %143 = arith.addf %138, %142 : vector<6x6x128xf32>
    %c8_120 = arith.constant 8 : index
    %c0_121 = arith.constant 0 : index
    %c1_122 = arith.constant 1 : index
    %c0_123 = arith.constant 0 : index
    %144 = vector.load %arg1[%c8_120, %c0_121, %c1_122, %c0_123] : memref<16x7x7x128xf32, #tpu.memory_space<vmem>>, vector<1x6x6x128xf32>
    %145 = vector.shape_cast %144 : vector<1x6x6x128xf32> to vector<6x6x128xf32>
    %146 = vector.broadcast %10 : f32 to vector<6x6x128xf32>
    %147 = arith.mulf %145, %146 : vector<6x6x128xf32>
    %148 = arith.addf %143, %147 : vector<6x6x128xf32>
    %c9_124 = arith.constant 9 : index
    %c0_125 = arith.constant 0 : index
    %c1_126 = arith.constant 1 : index
    %c0_127 = arith.constant 0 : index
    %149 = vector.load %arg1[%c9_124, %c0_125, %c1_126, %c0_127] : memref<16x7x7x128xf32, #tpu.memory_space<vmem>>, vector<1x6x6x128xf32>
    %150 = vector.shape_cast %149 : vector<1x6x6x128xf32> to vector<6x6x128xf32>
    %151 = vector.broadcast %11 : f32 to vector<6x6x128xf32>
    %152 = arith.mulf %150, %151 : vector<6x6x128xf32>
    %153 = arith.addf %148, %152 : vector<6x6x128xf32>
    %c14_128 = arith.constant 14 : index
    %c0_129 = arith.constant 0 : index
    %c0_130 = arith.constant 0 : index
    %c0_131 = arith.constant 0 : index
    %154 = vector.load %arg1[%c14_128, %c0_129, %c0_130, %c0_131] : memref<16x7x7x128xf32, #tpu.memory_space<vmem>>, vector<1x6x6x128xf32>
    %155 = vector.shape_cast %154 : vector<1x6x6x128xf32> to vector<6x6x128xf32>
    %156 = vector.broadcast %12 : f32 to vector<6x6x128xf32>
    %157 = arith.mulf %155, %156 : vector<6x6x128xf32>
    %158 = arith.addf %153, %157 : vector<6x6x128xf32>
    %c15_132 = arith.constant 15 : index
    %c0_133 = arith.constant 0 : index
    %c0_134 = arith.constant 0 : index
    %c0_135 = arith.constant 0 : index
    %159 = vector.load %arg1[%c15_132, %c0_133, %c0_134, %c0_135] : memref<16x7x7x128xf32, #tpu.memory_space<vmem>>, vector<1x6x6x128xf32>
    %160 = vector.shape_cast %159 : vector<1x6x6x128xf32> to vector<6x6x128xf32>
    %161 = vector.broadcast %13 : f32 to vector<6x6x128xf32>
    %162 = arith.mulf %160, %161 : vector<6x6x128xf32>
    %163 = arith.addf %158, %162 : vector<6x6x128xf32>
    %c12_136 = arith.constant 12 : index
    %c0_137 = arith.constant 0 : index
    %c1_138 = arith.constant 1 : index
    %c0_139 = arith.constant 0 : index
    %164 = vector.load %arg1[%c12_136, %c0_137, %c1_138, %c0_139] : memref<16x7x7x128xf32, #tpu.memory_space<vmem>>, vector<1x6x6x128xf32>
    %165 = vector.shape_cast %164 : vector<1x6x6x128xf32> to vector<6x6x128xf32>
    %166 = vector.broadcast %14 : f32 to vector<6x6x128xf32>
    %167 = arith.mulf %165, %166 : vector<6x6x128xf32>
    %168 = arith.addf %163, %167 : vector<6x6x128xf32>
    %c13_140 = arith.constant 13 : index
    %c0_141 = arith.constant 0 : index
    %c1_142 = arith.constant 1 : index
    %c0_143 = arith.constant 0 : index
    %169 = vector.load %arg1[%c13_140, %c0_141, %c1_142, %c0_143] : memref<16x7x7x128xf32, #tpu.memory_space<vmem>>, vector<1x6x6x128xf32>
    %170 = vector.shape_cast %169 : vector<1x6x6x128xf32> to vector<6x6x128xf32>
    %171 = vector.broadcast %15 : f32 to vector<6x6x128xf32>
    %172 = arith.mulf %170, %171 : vector<6x6x128xf32>
    %173 = arith.addf %168, %172 : vector<6x6x128xf32>
    %174 = arith.maximumf %94, %173 : vector<6x6x128xf32>
    %c0_144 = arith.constant 0 : index
    %c0_145 = arith.constant 0 : index
    %c1_146 = arith.constant 1 : index
    %c0_147 = arith.constant 0 : index
    %175 = vector.load %arg1[%c0_144, %c0_145, %c1_146, %c0_147] : memref<16x7x7x128xf32, #tpu.memory_space<vmem>>, vector<1x6x6x128xf32>
    %176 = vector.shape_cast %175 : vector<1x6x6x128xf32> to vector<6x6x128xf32>
    %177 = vector.broadcast %0 : f32 to vector<6x6x128xf32>
    %178 = arith.mulf %176, %177 : vector<6x6x128xf32>
    %c1_148 = arith.constant 1 : index
    %c0_149 = arith.constant 0 : index
    %c1_150 = arith.constant 1 : index
    %c0_151 = arith.constant 0 : index
    %179 = vector.load %arg1[%c1_148, %c0_149, %c1_150, %c0_151] : memref<16x7x7x128xf32, #tpu.memory_space<vmem>>, vector<1x6x6x128xf32>
    %180 = vector.shape_cast %179 : vector<1x6x6x128xf32> to vector<6x6x128xf32>
    %181 = vector.broadcast %1 : f32 to vector<6x6x128xf32>
    %182 = arith.mulf %180, %181 : vector<6x6x128xf32>
    %183 = arith.addf %178, %182 : vector<6x6x128xf32>
    %c2_152 = arith.constant 2 : index
    %c0_153 = arith.constant 0 : index
    %c1_154 = arith.constant 1 : index
    %c0_155 = arith.constant 0 : index
    %184 = vector.load %arg1[%c2_152, %c0_153, %c1_154, %c0_155] : memref<16x7x7x128xf32, #tpu.memory_space<vmem>>, vector<1x6x6x128xf32>
    %185 = vector.shape_cast %184 : vector<1x6x6x128xf32> to vector<6x6x128xf32>
    %186 = vector.broadcast %2 : f32 to vector<6x6x128xf32>
    %187 = arith.mulf %185, %186 : vector<6x6x128xf32>
    %188 = arith.addf %183, %187 : vector<6x6x128xf32>
    %c3_156 = arith.constant 3 : index
    %c0_157 = arith.constant 0 : index
    %c1_158 = arith.constant 1 : index
    %c0_159 = arith.constant 0 : index
    %189 = vector.load %arg1[%c3_156, %c0_157, %c1_158, %c0_159] : memref<16x7x7x128xf32, #tpu.memory_space<vmem>>, vector<1x6x6x128xf32>
    %190 = vector.shape_cast %189 : vector<1x6x6x128xf32> to vector<6x6x128xf32>
    %191 = vector.broadcast %3 : f32 to vector<6x6x128xf32>
    %192 = arith.mulf %190, %191 : vector<6x6x128xf32>
    %193 = arith.addf %188, %192 : vector<6x6x128xf32>
    %c4_160 = arith.constant 4 : index
    %c0_161 = arith.constant 0 : index
    %c1_162 = arith.constant 1 : index
    %c0_163 = arith.constant 0 : index
    %194 = vector.load %arg1[%c4_160, %c0_161, %c1_162, %c0_163] : memref<16x7x7x128xf32, #tpu.memory_space<vmem>>, vector<1x6x6x128xf32>
    %195 = vector.shape_cast %194 : vector<1x6x6x128xf32> to vector<6x6x128xf32>
    %196 = vector.broadcast %4 : f32 to vector<6x6x128xf32>
    %197 = arith.mulf %195, %196 : vector<6x6x128xf32>
    %198 = arith.addf %193, %197 : vector<6x6x128xf32>
    %c5_164 = arith.constant 5 : index
    %c0_165 = arith.constant 0 : index
    %c1_166 = arith.constant 1 : index
    %c0_167 = arith.constant 0 : index
    %199 = vector.load %arg1[%c5_164, %c0_165, %c1_166, %c0_167] : memref<16x7x7x128xf32, #tpu.memory_space<vmem>>, vector<1x6x6x128xf32>
    %200 = vector.shape_cast %199 : vector<1x6x6x128xf32> to vector<6x6x128xf32>
    %201 = vector.broadcast %5 : f32 to vector<6x6x128xf32>
    %202 = arith.mulf %200, %201 : vector<6x6x128xf32>
    %203 = arith.addf %198, %202 : vector<6x6x128xf32>
    %c6_168 = arith.constant 6 : index
    %c0_169 = arith.constant 0 : index
    %c1_170 = arith.constant 1 : index
    %c0_171 = arith.constant 0 : index
    %204 = vector.load %arg1[%c6_168, %c0_169, %c1_170, %c0_171] : memref<16x7x7x128xf32, #tpu.memory_space<vmem>>, vector<1x6x6x128xf32>
    %205 = vector.shape_cast %204 : vector<1x6x6x128xf32> to vector<6x6x128xf32>
    %206 = vector.broadcast %6 : f32 to vector<6x6x128xf32>
    %207 = arith.mulf %205, %206 : vector<6x6x128xf32>
    %208 = arith.addf %203, %207 : vector<6x6x128xf32>
    %c7_172 = arith.constant 7 : index
    %c0_173 = arith.constant 0 : index
    %c1_174 = arith.constant 1 : index
    %c0_175 = arith.constant 0 : index
    %209 = vector.load %arg1[%c7_172, %c0_173, %c1_174, %c0_175] : memref<16x7x7x128xf32, #tpu.memory_space<vmem>>, vector<1x6x6x128xf32>
    %210 = vector.shape_cast %209 : vector<1x6x6x128xf32> to vector<6x6x128xf32>
    %211 = vector.broadcast %7 : f32 to vector<6x6x128xf32>
    %212 = arith.mulf %210, %211 : vector<6x6x128xf32>
    %213 = arith.addf %208, %212 : vector<6x6x128xf32>
    %c8_176 = arith.constant 8 : index
    %c0_177 = arith.constant 0 : index
    %c1_178 = arith.constant 1 : index
    %c0_179 = arith.constant 0 : index
    %214 = vector.load %arg1[%c8_176, %c0_177, %c1_178, %c0_179] : memref<16x7x7x128xf32, #tpu.memory_space<vmem>>, vector<1x6x6x128xf32>
    %215 = vector.shape_cast %214 : vector<1x6x6x128xf32> to vector<6x6x128xf32>
    %216 = vector.broadcast %8 : f32 to vector<6x6x128xf32>
    %217 = arith.mulf %215, %216 : vector<6x6x128xf32>
    %218 = arith.addf %213, %217 : vector<6x6x128xf32>
    %c9_180 = arith.constant 9 : index
    %c0_181 = arith.constant 0 : index
    %c1_182 = arith.constant 1 : index
    %c0_183 = arith.constant 0 : index
    %219 = vector.load %arg1[%c9_180, %c0_181, %c1_182, %c0_183] : memref<16x7x7x128xf32, #tpu.memory_space<vmem>>, vector<1x6x6x128xf32>
    %220 = vector.shape_cast %219 : vector<1x6x6x128xf32> to vector<6x6x128xf32>
    %221 = vector.broadcast %9 : f32 to vector<6x6x128xf32>
    %222 = arith.mulf %220, %221 : vector<6x6x128xf32>
    %223 = arith.addf %218, %222 : vector<6x6x128xf32>
    %c10_184 = arith.constant 10 : index
    %c0_185 = arith.constant 0 : index
    %c1_186 = arith.constant 1 : index
    %c0_187 = arith.constant 0 : index
    %224 = vector.load %arg1[%c10_184, %c0_185, %c1_186, %c0_187] : memref<16x7x7x128xf32, #tpu.memory_space<vmem>>, vector<1x6x6x128xf32>
    %225 = vector.shape_cast %224 : vector<1x6x6x128xf32> to vector<6x6x128xf32>
    %226 = vector.broadcast %10 : f32 to vector<6x6x128xf32>
    %227 = arith.mulf %225, %226 : vector<6x6x128xf32>
    %228 = arith.addf %223, %227 : vector<6x6x128xf32>
    %c11_188 = arith.constant 11 : index
    %c0_189 = arith.constant 0 : index
    %c1_190 = arith.constant 1 : index
    %c0_191 = arith.constant 0 : index
    %229 = vector.load %arg1[%c11_188, %c0_189, %c1_190, %c0_191] : memref<16x7x7x128xf32, #tpu.memory_space<vmem>>, vector<1x6x6x128xf32>
    %230 = vector.shape_cast %229 : vector<1x6x6x128xf32> to vector<6x6x128xf32>
    %231 = vector.broadcast %11 : f32 to vector<6x6x128xf32>
    %232 = arith.mulf %230, %231 : vector<6x6x128xf32>
    %233 = arith.addf %228, %232 : vector<6x6x128xf32>
    %c12_192 = arith.constant 12 : index
    %c0_193 = arith.constant 0 : index
    %c1_194 = arith.constant 1 : index
    %c0_195 = arith.constant 0 : index
    %234 = vector.load %arg1[%c12_192, %c0_193, %c1_194, %c0_195] : memref<16x7x7x128xf32, #tpu.memory_space<vmem>>, vector<1x6x6x128xf32>
    %235 = vector.shape_cast %234 : vector<1x6x6x128xf32> to vector<6x6x128xf32>
    %236 = vector.broadcast %12 : f32 to vector<6x6x128xf32>
    %237 = arith.mulf %235, %236 : vector<6x6x128xf32>
    %238 = arith.addf %233, %237 : vector<6x6x128xf32>
    %c13_196 = arith.constant 13 : index
    %c0_197 = arith.constant 0 : index
    %c1_198 = arith.constant 1 : index
    %c0_199 = arith.constant 0 : index
    %239 = vector.load %arg1[%c13_196, %c0_197, %c1_198, %c0_199] : memref<16x7x7x128xf32, #tpu.memory_space<vmem>>, vector<1x6x6x128xf32>
    %240 = vector.shape_cast %239 : vector<1x6x6x128xf32> to vector<6x6x128xf32>
    %241 = vector.broadcast %13 : f32 to vector<6x6x128xf32>
    %242 = arith.mulf %240, %241 : vector<6x6x128xf32>
    %243 = arith.addf %238, %242 : vector<6x6x128xf32>
    %c14_200 = arith.constant 14 : index
    %c0_201 = arith.constant 0 : index
    %c1_202 = arith.constant 1 : index
    %c0_203 = arith.constant 0 : index
    %244 = vector.load %arg1[%c14_200, %c0_201, %c1_202, %c0_203] : memref<16x7x7x128xf32, #tpu.memory_space<vmem>>, vector<1x6x6x128xf32>
    %245 = vector.shape_cast %244 : vector<1x6x6x128xf32> to vector<6x6x128xf32>
    %246 = vector.broadcast %14 : f32 to vector<6x6x128xf32>
    %247 = arith.mulf %245, %246 : vector<6x6x128xf32>
    %248 = arith.addf %243, %247 : vector<6x6x128xf32>
    %c15_204 = arith.constant 15 : index
    %c0_205 = arith.constant 0 : index
    %c1_206 = arith.constant 1 : index
    %c0_207 = arith.constant 0 : index
    %249 = vector.load %arg1[%c15_204, %c0_205, %c1_206, %c0_207] : memref<16x7x7x128xf32, #tpu.memory_space<vmem>>, vector<1x6x6x128xf32>
    %250 = vector.shape_cast %249 : vector<1x6x6x128xf32> to vector<6x6x128xf32>
    %251 = vector.broadcast %15 : f32 to vector<6x6x128xf32>
    %252 = arith.mulf %250, %251 : vector<6x6x128xf32>
    %253 = arith.addf %248, %252 : vector<6x6x128xf32>
    %254 = arith.maximumf %174, %253 : vector<6x6x128xf32>
    %c8_208 = arith.constant 8 : index
    %c0_209 = arith.constant 0 : index
    %c0_210 = arith.constant 0 : index
    %c0_211 = arith.constant 0 : index
    %255 = vector.load %arg1[%c8_208, %c0_209, %c0_210, %c0_211] : memref<16x7x7x128xf32, #tpu.memory_space<vmem>>, vector<1x6x6x128xf32>
    %256 = vector.shape_cast %255 : vector<1x6x6x128xf32> to vector<6x6x128xf32>
    %257 = vector.broadcast %0 : f32 to vector<6x6x128xf32>
    %258 = arith.mulf %256, %257 : vector<6x6x128xf32>
    %c9_212 = arith.constant 9 : index
    %c0_213 = arith.constant 0 : index
    %c0_214 = arith.constant 0 : index
    %c0_215 = arith.constant 0 : index
    %259 = vector.load %arg1[%c9_212, %c0_213, %c0_214, %c0_215] : memref<16x7x7x128xf32, #tpu.memory_space<vmem>>, vector<1x6x6x128xf32>
    %260 = vector.shape_cast %259 : vector<1x6x6x128xf32> to vector<6x6x128xf32>
    %261 = vector.broadcast %1 : f32 to vector<6x6x128xf32>
    %262 = arith.mulf %260, %261 : vector<6x6x128xf32>
    %263 = arith.addf %258, %262 : vector<6x6x128xf32>
    %c10_216 = arith.constant 10 : index
    %c0_217 = arith.constant 0 : index
    %c0_218 = arith.constant 0 : index
    %c0_219 = arith.constant 0 : index
    %264 = vector.load %arg1[%c10_216, %c0_217, %c0_218, %c0_219] : memref<16x7x7x128xf32, #tpu.memory_space<vmem>>, vector<1x6x6x128xf32>
    %265 = vector.shape_cast %264 : vector<1x6x6x128xf32> to vector<6x6x128xf32>
    %266 = vector.broadcast %2 : f32 to vector<6x6x128xf32>
    %267 = arith.mulf %265, %266 : vector<6x6x128xf32>
    %268 = arith.addf %263, %267 : vector<6x6x128xf32>
    %c11_220 = arith.constant 11 : index
    %c0_221 = arith.constant 0 : index
    %c0_222 = arith.constant 0 : index
    %c0_223 = arith.constant 0 : index
    %269 = vector.load %arg1[%c11_220, %c0_221, %c0_222, %c0_223] : memref<16x7x7x128xf32, #tpu.memory_space<vmem>>, vector<1x6x6x128xf32>
    %270 = vector.shape_cast %269 : vector<1x6x6x128xf32> to vector<6x6x128xf32>
    %271 = vector.broadcast %3 : f32 to vector<6x6x128xf32>
    %272 = arith.mulf %270, %271 : vector<6x6x128xf32>
    %273 = arith.addf %268, %272 : vector<6x6x128xf32>
    %c12_224 = arith.constant 12 : index
    %c0_225 = arith.constant 0 : index
    %c0_226 = arith.constant 0 : index
    %c0_227 = arith.constant 0 : index
    %274 = vector.load %arg1[%c12_224, %c0_225, %c0_226, %c0_227] : memref<16x7x7x128xf32, #tpu.memory_space<vmem>>, vector<1x6x6x128xf32>
    %275 = vector.shape_cast %274 : vector<1x6x6x128xf32> to vector<6x6x128xf32>
    %276 = vector.broadcast %4 : f32 to vector<6x6x128xf32>
    %277 = arith.mulf %275, %276 : vector<6x6x128xf32>
    %278 = arith.addf %273, %277 : vector<6x6x128xf32>
    %c13_228 = arith.constant 13 : index
    %c0_229 = arith.constant 0 : index
    %c0_230 = arith.constant 0 : index
    %c0_231 = arith.constant 0 : index
    %279 = vector.load %arg1[%c13_228, %c0_229, %c0_230, %c0_231] : memref<16x7x7x128xf32, #tpu.memory_space<vmem>>, vector<1x6x6x128xf32>
    %280 = vector.shape_cast %279 : vector<1x6x6x128xf32> to vector<6x6x128xf32>
    %281 = vector.broadcast %5 : f32 to vector<6x6x128xf32>
    %282 = arith.mulf %280, %281 : vector<6x6x128xf32>
    %283 = arith.addf %278, %282 : vector<6x6x128xf32>
    %c14_232 = arith.constant 14 : index
    %c0_233 = arith.constant 0 : index
    %c0_234 = arith.constant 0 : index
    %c0_235 = arith.constant 0 : index
    %284 = vector.load %arg1[%c14_232, %c0_233, %c0_234, %c0_235] : memref<16x7x7x128xf32, #tpu.memory_space<vmem>>, vector<1x6x6x128xf32>
    %285 = vector.shape_cast %284 : vector<1x6x6x128xf32> to vector<6x6x128xf32>
    %286 = vector.broadcast %6 : f32 to vector<6x6x128xf32>
    %287 = arith.mulf %285, %286 : vector<6x6x128xf32>
    %288 = arith.addf %283, %287 : vector<6x6x128xf32>
    %c15_236 = arith.constant 15 : index
    %c0_237 = arith.constant 0 : index
    %c0_238 = arith.constant 0 : index
    %c0_239 = arith.constant 0 : index
    %289 = vector.load %arg1[%c15_236, %c0_237, %c0_238, %c0_239] : memref<16x7x7x128xf32, #tpu.memory_space<vmem>>, vector<1x6x6x128xf32>
    %290 = vector.shape_cast %289 : vector<1x6x6x128xf32> to vector<6x6x128xf32>
    %291 = vector.broadcast %7 : f32 to vector<6x6x128xf32>
    %292 = arith.mulf %290, %291 : vector<6x6x128xf32>
    %293 = arith.addf %288, %292 : vector<6x6x128xf32>
    %c0_240 = arith.constant 0 : index
    %c1_241 = arith.constant 1 : index
    %c0_242 = arith.constant 0 : index
    %c0_243 = arith.constant 0 : index
    %294 = vector.load %arg1[%c0_240, %c1_241, %c0_242, %c0_243] : memref<16x7x7x128xf32, #tpu.memory_space<vmem>>, vector<1x6x6x128xf32>
    %295 = vector.shape_cast %294 : vector<1x6x6x128xf32> to vector<6x6x128xf32>
    %296 = vector.broadcast %8 : f32 to vector<6x6x128xf32>
    %297 = arith.mulf %295, %296 : vector<6x6x128xf32>
    %298 = arith.addf %293, %297 : vector<6x6x128xf32>
    %c1_244 = arith.constant 1 : index
    %c1_245 = arith.constant 1 : index
    %c0_246 = arith.constant 0 : index
    %c0_247 = arith.constant 0 : index
    %299 = vector.load %arg1[%c1_244, %c1_245, %c0_246, %c0_247] : memref<16x7x7x128xf32, #tpu.memory_space<vmem>>, vector<1x6x6x128xf32>
    %300 = vector.shape_cast %299 : vector<1x6x6x128xf32> to vector<6x6x128xf32>
    %301 = vector.broadcast %9 : f32 to vector<6x6x128xf32>
    %302 = arith.mulf %300, %301 : vector<6x6x128xf32>
    %303 = arith.addf %298, %302 : vector<6x6x128xf32>
    %c2_248 = arith.constant 2 : index
    %c1_249 = arith.constant 1 : index
    %c0_250 = arith.constant 0 : index
    %c0_251 = arith.constant 0 : index
    %304 = vector.load %arg1[%c2_248, %c1_249, %c0_250, %c0_251] : memref<16x7x7x128xf32, #tpu.memory_space<vmem>>, vector<1x6x6x128xf32>
    %305 = vector.shape_cast %304 : vector<1x6x6x128xf32> to vector<6x6x128xf32>
    %306 = vector.broadcast %10 : f32 to vector<6x6x128xf32>
    %307 = arith.mulf %305, %306 : vector<6x6x128xf32>
    %308 = arith.addf %303, %307 : vector<6x6x128xf32>
    %c3_252 = arith.constant 3 : index
    %c1_253 = arith.constant 1 : index
    %c0_254 = arith.constant 0 : index
    %c0_255 = arith.constant 0 : index
    %309 = vector.load %arg1[%c3_252, %c1_253, %c0_254, %c0_255] : memref<16x7x7x128xf32, #tpu.memory_space<vmem>>, vector<1x6x6x128xf32>
    %310 = vector.shape_cast %309 : vector<1x6x6x128xf32> to vector<6x6x128xf32>
    %311 = vector.broadcast %11 : f32 to vector<6x6x128xf32>
    %312 = arith.mulf %310, %311 : vector<6x6x128xf32>
    %313 = arith.addf %308, %312 : vector<6x6x128xf32>
    %c4_256 = arith.constant 4 : index
    %c1_257 = arith.constant 1 : index
    %c0_258 = arith.constant 0 : index
    %c0_259 = arith.constant 0 : index
    %314 = vector.load %arg1[%c4_256, %c1_257, %c0_258, %c0_259] : memref<16x7x7x128xf32, #tpu.memory_space<vmem>>, vector<1x6x6x128xf32>
    %315 = vector.shape_cast %314 : vector<1x6x6x128xf32> to vector<6x6x128xf32>
    %316 = vector.broadcast %12 : f32 to vector<6x6x128xf32>
    %317 = arith.mulf %315, %316 : vector<6x6x128xf32>
    %318 = arith.addf %313, %317 : vector<6x6x128xf32>
    %c5_260 = arith.constant 5 : index
    %c1_261 = arith.constant 1 : index
    %c0_262 = arith.constant 0 : index
    %c0_263 = arith.constant 0 : index
    %319 = vector.load %arg1[%c5_260, %c1_261, %c0_262, %c0_263] : memref<16x7x7x128xf32, #tpu.memory_space<vmem>>, vector<1x6x6x128xf32>
    %320 = vector.shape_cast %319 : vector<1x6x6x128xf32> to vector<6x6x128xf32>
    %321 = vector.broadcast %13 : f32 to vector<6x6x128xf32>
    %322 = arith.mulf %320, %321 : vector<6x6x128xf32>
    %323 = arith.addf %318, %322 : vector<6x6x128xf32>
    %c6_264 = arith.constant 6 : index
    %c1_265 = arith.constant 1 : index
    %c0_266 = arith.constant 0 : index
    %c0_267 = arith.constant 0 : index
    %324 = vector.load %arg1[%c6_264, %c1_265, %c0_266, %c0_267] : memref<16x7x7x128xf32, #tpu.memory_space<vmem>>, vector<1x6x6x128xf32>
    %325 = vector.shape_cast %324 : vector<1x6x6x128xf32> to vector<6x6x128xf32>
    %326 = vector.broadcast %14 : f32 to vector<6x6x128xf32>
    %327 = arith.mulf %325, %326 : vector<6x6x128xf32>
    %328 = arith.addf %323, %327 : vector<6x6x128xf32>
    %c7_268 = arith.constant 7 : index
    %c1_269 = arith.constant 1 : index
    %c0_270 = arith.constant 0 : index
    %c0_271 = arith.constant 0 : index
    %329 = vector.load %arg1[%c7_268, %c1_269, %c0_270, %c0_271] : memref<16x7x7x128xf32, #tpu.memory_space<vmem>>, vector<1x6x6x128xf32>
    %330 = vector.shape_cast %329 : vector<1x6x6x128xf32> to vector<6x6x128xf32>
    %331 = vector.broadcast %15 : f32 to vector<6x6x128xf32>
    %332 = arith.mulf %330, %331 : vector<6x6x128xf32>
    %333 = arith.addf %328, %332 : vector<6x6x128xf32>
    %334 = arith.maximumf %254, %333 : vector<6x6x128xf32>
    %c10_272 = arith.constant 10 : index
    %c0_273 = arith.constant 0 : index
    %c0_274 = arith.constant 0 : index
    %c0_275 = arith.constant 0 : index
    %335 = vector.load %arg1[%c10_272, %c0_273, %c0_274, %c0_275] : memref<16x7x7x128xf32, #tpu.memory_space<vmem>>, vector<1x6x6x128xf32>
    %336 = vector.shape_cast %335 : vector<1x6x6x128xf32> to vector<6x6x128xf32>
    %337 = vector.broadcast %0 : f32 to vector<6x6x128xf32>
    %338 = arith.mulf %336, %337 : vector<6x6x128xf32>
    %c11_276 = arith.constant 11 : index
    %c0_277 = arith.constant 0 : index
    %c0_278 = arith.constant 0 : index
    %c0_279 = arith.constant 0 : index
    %339 = vector.load %arg1[%c11_276, %c0_277, %c0_278, %c0_279] : memref<16x7x7x128xf32, #tpu.memory_space<vmem>>, vector<1x6x6x128xf32>
    %340 = vector.shape_cast %339 : vector<1x6x6x128xf32> to vector<6x6x128xf32>
    %341 = vector.broadcast %1 : f32 to vector<6x6x128xf32>
    %342 = arith.mulf %340, %341 : vector<6x6x128xf32>
    %343 = arith.addf %338, %342 : vector<6x6x128xf32>
    %c8_280 = arith.constant 8 : index
    %c0_281 = arith.constant 0 : index
    %c1_282 = arith.constant 1 : index
    %c0_283 = arith.constant 0 : index
    %344 = vector.load %arg1[%c8_280, %c0_281, %c1_282, %c0_283] : memref<16x7x7x128xf32, #tpu.memory_space<vmem>>, vector<1x6x6x128xf32>
    %345 = vector.shape_cast %344 : vector<1x6x6x128xf32> to vector<6x6x128xf32>
    %346 = vector.broadcast %2 : f32 to vector<6x6x128xf32>
    %347 = arith.mulf %345, %346 : vector<6x6x128xf32>
    %348 = arith.addf %343, %347 : vector<6x6x128xf32>
    %c9_284 = arith.constant 9 : index
    %c0_285 = arith.constant 0 : index
    %c1_286 = arith.constant 1 : index
    %c0_287 = arith.constant 0 : index
    %349 = vector.load %arg1[%c9_284, %c0_285, %c1_286, %c0_287] : memref<16x7x7x128xf32, #tpu.memory_space<vmem>>, vector<1x6x6x128xf32>
    %350 = vector.shape_cast %349 : vector<1x6x6x128xf32> to vector<6x6x128xf32>
    %351 = vector.broadcast %3 : f32 to vector<6x6x128xf32>
    %352 = arith.mulf %350, %351 : vector<6x6x128xf32>
    %353 = arith.addf %348, %352 : vector<6x6x128xf32>
    %c14_288 = arith.constant 14 : index
    %c0_289 = arith.constant 0 : index
    %c0_290 = arith.constant 0 : index
    %c0_291 = arith.constant 0 : index
    %354 = vector.load %arg1[%c14_288, %c0_289, %c0_290, %c0_291] : memref<16x7x7x128xf32, #tpu.memory_space<vmem>>, vector<1x6x6x128xf32>
    %355 = vector.shape_cast %354 : vector<1x6x6x128xf32> to vector<6x6x128xf32>
    %356 = vector.broadcast %4 : f32 to vector<6x6x128xf32>
    %357 = arith.mulf %355, %356 : vector<6x6x128xf32>
    %358 = arith.addf %353, %357 : vector<6x6x128xf32>
    %c15_292 = arith.constant 15 : index
    %c0_293 = arith.constant 0 : index
    %c0_294 = arith.constant 0 : index
    %c0_295 = arith.constant 0 : index
    %359 = vector.load %arg1[%c15_292, %c0_293, %c0_294, %c0_295] : memref<16x7x7x128xf32, #tpu.memory_space<vmem>>, vector<1x6x6x128xf32>
    %360 = vector.shape_cast %359 : vector<1x6x6x128xf32> to vector<6x6x128xf32>
    %361 = vector.broadcast %5 : f32 to vector<6x6x128xf32>
    %362 = arith.mulf %360, %361 : vector<6x6x128xf32>
    %363 = arith.addf %358, %362 : vector<6x6x128xf32>
    %c12_296 = arith.constant 12 : index
    %c0_297 = arith.constant 0 : index
    %c1_298 = arith.constant 1 : index
    %c0_299 = arith.constant 0 : index
    %364 = vector.load %arg1[%c12_296, %c0_297, %c1_298, %c0_299] : memref<16x7x7x128xf32, #tpu.memory_space<vmem>>, vector<1x6x6x128xf32>
    %365 = vector.shape_cast %364 : vector<1x6x6x128xf32> to vector<6x6x128xf32>
    %366 = vector.broadcast %6 : f32 to vector<6x6x128xf32>
    %367 = arith.mulf %365, %366 : vector<6x6x128xf32>
    %368 = arith.addf %363, %367 : vector<6x6x128xf32>
    %c13_300 = arith.constant 13 : index
    %c0_301 = arith.constant 0 : index
    %c1_302 = arith.constant 1 : index
    %c0_303 = arith.constant 0 : index
    %369 = vector.load %arg1[%c13_300, %c0_301, %c1_302, %c0_303] : memref<16x7x7x128xf32, #tpu.memory_space<vmem>>, vector<1x6x6x128xf32>
    %370 = vector.shape_cast %369 : vector<1x6x6x128xf32> to vector<6x6x128xf32>
    %371 = vector.broadcast %7 : f32 to vector<6x6x128xf32>
    %372 = arith.mulf %370, %371 : vector<6x6x128xf32>
    %373 = arith.addf %368, %372 : vector<6x6x128xf32>
    %c2_304 = arith.constant 2 : index
    %c1_305 = arith.constant 1 : index
    %c0_306 = arith.constant 0 : index
    %c0_307 = arith.constant 0 : index
    %374 = vector.load %arg1[%c2_304, %c1_305, %c0_306, %c0_307] : memref<16x7x7x128xf32, #tpu.memory_space<vmem>>, vector<1x6x6x128xf32>
    %375 = vector.shape_cast %374 : vector<1x6x6x128xf32> to vector<6x6x128xf32>
    %376 = vector.broadcast %8 : f32 to vector<6x6x128xf32>
    %377 = arith.mulf %375, %376 : vector<6x6x128xf32>
    %378 = arith.addf %373, %377 : vector<6x6x128xf32>
    %c3_308 = arith.constant 3 : index
    %c1_309 = arith.constant 1 : index
    %c0_310 = arith.constant 0 : index
    %c0_311 = arith.constant 0 : index
    %379 = vector.load %arg1[%c3_308, %c1_309, %c0_310, %c0_311] : memref<16x7x7x128xf32, #tpu.memory_space<vmem>>, vector<1x6x6x128xf32>
    %380 = vector.shape_cast %379 : vector<1x6x6x128xf32> to vector<6x6x128xf32>
    %381 = vector.broadcast %9 : f32 to vector<6x6x128xf32>
    %382 = arith.mulf %380, %381 : vector<6x6x128xf32>
    %383 = arith.addf %378, %382 : vector<6x6x128xf32>
    %c0_312 = arith.constant 0 : index
    %c1_313 = arith.constant 1 : index
    %c1_314 = arith.constant 1 : index
    %c0_315 = arith.constant 0 : index
    %384 = vector.load %arg1[%c0_312, %c1_313, %c1_314, %c0_315] : memref<16x7x7x128xf32, #tpu.memory_space<vmem>>, vector<1x6x6x128xf32>
    %385 = vector.shape_cast %384 : vector<1x6x6x128xf32> to vector<6x6x128xf32>
    %386 = vector.broadcast %10 : f32 to vector<6x6x128xf32>
    %387 = arith.mulf %385, %386 : vector<6x6x128xf32>
    %388 = arith.addf %383, %387 : vector<6x6x128xf32>
    %c1_316 = arith.constant 1 : index
    %c1_317 = arith.constant 1 : index
    %c1_318 = arith.constant 1 : index
    %c0_319 = arith.constant 0 : index
    %389 = vector.load %arg1[%c1_316, %c1_317, %c1_318, %c0_319] : memref<16x7x7x128xf32, #tpu.memory_space<vmem>>, vector<1x6x6x128xf32>
    %390 = vector.shape_cast %389 : vector<1x6x6x128xf32> to vector<6x6x128xf32>
    %391 = vector.broadcast %11 : f32 to vector<6x6x128xf32>
    %392 = arith.mulf %390, %391 : vector<6x6x128xf32>
    %393 = arith.addf %388, %392 : vector<6x6x128xf32>
    %c6_320 = arith.constant 6 : index
    %c1_321 = arith.constant 1 : index
    %c0_322 = arith.constant 0 : index
    %c0_323 = arith.constant 0 : index
    %394 = vector.load %arg1[%c6_320, %c1_321, %c0_322, %c0_323] : memref<16x7x7x128xf32, #tpu.memory_space<vmem>>, vector<1x6x6x128xf32>
    %395 = vector.shape_cast %394 : vector<1x6x6x128xf32> to vector<6x6x128xf32>
    %396 = vector.broadcast %12 : f32 to vector<6x6x128xf32>
    %397 = arith.mulf %395, %396 : vector<6x6x128xf32>
    %398 = arith.addf %393, %397 : vector<6x6x128xf32>
    %c7_324 = arith.constant 7 : index
    %c1_325 = arith.constant 1 : index
    %c0_326 = arith.constant 0 : index
    %c0_327 = arith.constant 0 : index
    %399 = vector.load %arg1[%c7_324, %c1_325, %c0_326, %c0_327] : memref<16x7x7x128xf32, #tpu.memory_space<vmem>>, vector<1x6x6x128xf32>
    %400 = vector.shape_cast %399 : vector<1x6x6x128xf32> to vector<6x6x128xf32>
    %401 = vector.broadcast %13 : f32 to vector<6x6x128xf32>
    %402 = arith.mulf %400, %401 : vector<6x6x128xf32>
    %403 = arith.addf %398, %402 : vector<6x6x128xf32>
    %c4_328 = arith.constant 4 : index
    %c1_329 = arith.constant 1 : index
    %c1_330 = arith.constant 1 : index
    %c0_331 = arith.constant 0 : index
    %404 = vector.load %arg1[%c4_328, %c1_329, %c1_330, %c0_331] : memref<16x7x7x128xf32, #tpu.memory_space<vmem>>, vector<1x6x6x128xf32>
    %405 = vector.shape_cast %404 : vector<1x6x6x128xf32> to vector<6x6x128xf32>
    %406 = vector.broadcast %14 : f32 to vector<6x6x128xf32>
    %407 = arith.mulf %405, %406 : vector<6x6x128xf32>
    %408 = arith.addf %403, %407 : vector<6x6x128xf32>
    %c5_332 = arith.constant 5 : index
    %c1_333 = arith.constant 1 : index
    %c1_334 = arith.constant 1 : index
    %c0_335 = arith.constant 0 : index
    %409 = vector.load %arg1[%c5_332, %c1_333, %c1_334, %c0_335] : memref<16x7x7x128xf32, #tpu.memory_space<vmem>>, vector<1x6x6x128xf32>
    %410 = vector.shape_cast %409 : vector<1x6x6x128xf32> to vector<6x6x128xf32>
    %411 = vector.broadcast %15 : f32 to vector<6x6x128xf32>
    %412 = arith.mulf %410, %411 : vector<6x6x128xf32>
    %413 = arith.addf %408, %412 : vector<6x6x128xf32>
    %414 = arith.maximumf %334, %413 : vector<6x6x128xf32>
    %c8_336 = arith.constant 8 : index
    %c0_337 = arith.constant 0 : index
    %c1_338 = arith.constant 1 : index
    %c0_339 = arith.constant 0 : index
    %415 = vector.load %arg1[%c8_336, %c0_337, %c1_338, %c0_339] : memref<16x7x7x128xf32, #tpu.memory_space<vmem>>, vector<1x6x6x128xf32>
    %416 = vector.shape_cast %415 : vector<1x6x6x128xf32> to vector<6x6x128xf32>
    %417 = vector.broadcast %0 : f32 to vector<6x6x128xf32>
    %418 = arith.mulf %416, %417 : vector<6x6x128xf32>
    %c9_340 = arith.constant 9 : index
    %c0_341 = arith.constant 0 : index
    %c1_342 = arith.constant 1 : index
    %c0_343 = arith.constant 0 : index
    %419 = vector.load %arg1[%c9_340, %c0_341, %c1_342, %c0_343] : memref<16x7x7x128xf32, #tpu.memory_space<vmem>>, vector<1x6x6x128xf32>
    %420 = vector.shape_cast %419 : vector<1x6x6x128xf32> to vector<6x6x128xf32>
    %421 = vector.broadcast %1 : f32 to vector<6x6x128xf32>
    %422 = arith.mulf %420, %421 : vector<6x6x128xf32>
    %423 = arith.addf %418, %422 : vector<6x6x128xf32>
    %c10_344 = arith.constant 10 : index
    %c0_345 = arith.constant 0 : index
    %c1_346 = arith.constant 1 : index
    %c0_347 = arith.constant 0 : index
    %424 = vector.load %arg1[%c10_344, %c0_345, %c1_346, %c0_347] : memref<16x7x7x128xf32, #tpu.memory_space<vmem>>, vector<1x6x6x128xf32>
    %425 = vector.shape_cast %424 : vector<1x6x6x128xf32> to vector<6x6x128xf32>
    %426 = vector.broadcast %2 : f32 to vector<6x6x128xf32>
    %427 = arith.mulf %425, %426 : vector<6x6x128xf32>
    %428 = arith.addf %423, %427 : vector<6x6x128xf32>
    %c11_348 = arith.constant 11 : index
    %c0_349 = arith.constant 0 : index
    %c1_350 = arith.constant 1 : index
    %c0_351 = arith.constant 0 : index
    %429 = vector.load %arg1[%c11_348, %c0_349, %c1_350, %c0_351] : memref<16x7x7x128xf32, #tpu.memory_space<vmem>>, vector<1x6x6x128xf32>
    %430 = vector.shape_cast %429 : vector<1x6x6x128xf32> to vector<6x6x128xf32>
    %431 = vector.broadcast %3 : f32 to vector<6x6x128xf32>
    %432 = arith.mulf %430, %431 : vector<6x6x128xf32>
    %433 = arith.addf %428, %432 : vector<6x6x128xf32>
    %c12_352 = arith.constant 12 : index
    %c0_353 = arith.constant 0 : index
    %c1_354 = arith.constant 1 : index
    %c0_355 = arith.constant 0 : index
    %434 = vector.load %arg1[%c12_352, %c0_353, %c1_354, %c0_355] : memref<16x7x7x128xf32, #tpu.memory_space<vmem>>, vector<1x6x6x128xf32>
    %435 = vector.shape_cast %434 : vector<1x6x6x128xf32> to vector<6x6x128xf32>
    %436 = vector.broadcast %4 : f32 to vector<6x6x128xf32>
    %437 = arith.mulf %435, %436 : vector<6x6x128xf32>
    %438 = arith.addf %433, %437 : vector<6x6x128xf32>
    %c13_356 = arith.constant 13 : index
    %c0_357 = arith.constant 0 : index
    %c1_358 = arith.constant 1 : index
    %c0_359 = arith.constant 0 : index
    %439 = vector.load %arg1[%c13_356, %c0_357, %c1_358, %c0_359] : memref<16x7x7x128xf32, #tpu.memory_space<vmem>>, vector<1x6x6x128xf32>
    %440 = vector.shape_cast %439 : vector<1x6x6x128xf32> to vector<6x6x128xf32>
    %441 = vector.broadcast %5 : f32 to vector<6x6x128xf32>
    %442 = arith.mulf %440, %441 : vector<6x6x128xf32>
    %443 = arith.addf %438, %442 : vector<6x6x128xf32>
    %c14_360 = arith.constant 14 : index
    %c0_361 = arith.constant 0 : index
    %c1_362 = arith.constant 1 : index
    %c0_363 = arith.constant 0 : index
    %444 = vector.load %arg1[%c14_360, %c0_361, %c1_362, %c0_363] : memref<16x7x7x128xf32, #tpu.memory_space<vmem>>, vector<1x6x6x128xf32>
    %445 = vector.shape_cast %444 : vector<1x6x6x128xf32> to vector<6x6x128xf32>
    %446 = vector.broadcast %6 : f32 to vector<6x6x128xf32>
    %447 = arith.mulf %445, %446 : vector<6x6x128xf32>
    %448 = arith.addf %443, %447 : vector<6x6x128xf32>
    %c15_364 = arith.constant 15 : index
    %c0_365 = arith.constant 0 : index
    %c1_366 = arith.constant 1 : index
    %c0_367 = arith.constant 0 : index
    %449 = vector.load %arg1[%c15_364, %c0_365, %c1_366, %c0_367] : memref<16x7x7x128xf32, #tpu.memory_space<vmem>>, vector<1x6x6x128xf32>
    %450 = vector.shape_cast %449 : vector<1x6x6x128xf32> to vector<6x6x128xf32>
    %451 = vector.broadcast %7 : f32 to vector<6x6x128xf32>
    %452 = arith.mulf %450, %451 : vector<6x6x128xf32>
    %453 = arith.addf %448, %452 : vector<6x6x128xf32>
    %c0_368 = arith.constant 0 : index
    %c1_369 = arith.constant 1 : index
    %c1_370 = arith.constant 1 : index
    %c0_371 = arith.constant 0 : index
    %454 = vector.load %arg1[%c0_368, %c1_369, %c1_370, %c0_371] : memref<16x7x7x128xf32, #tpu.memory_space<vmem>>, vector<1x6x6x128xf32>
    %455 = vector.shape_cast %454 : vector<1x6x6x128xf32> to vector<6x6x128xf32>
    %456 = vector.broadcast %8 : f32 to vector<6x6x128xf32>
    %457 = arith.mulf %455, %456 : vector<6x6x128xf32>
    %458 = arith.addf %453, %457 : vector<6x6x128xf32>
    %c1_372 = arith.constant 1 : index
    %c1_373 = arith.constant 1 : index
    %c1_374 = arith.constant 1 : index
    %c0_375 = arith.constant 0 : index
    %459 = vector.load %arg1[%c1_372, %c1_373, %c1_374, %c0_375] : memref<16x7x7x128xf32, #tpu.memory_space<vmem>>, vector<1x6x6x128xf32>
    %460 = vector.shape_cast %459 : vector<1x6x6x128xf32> to vector<6x6x128xf32>
    %461 = vector.broadcast %9 : f32 to vector<6x6x128xf32>
    %462 = arith.mulf %460, %461 : vector<6x6x128xf32>
    %463 = arith.addf %458, %462 : vector<6x6x128xf32>
    %c2_376 = arith.constant 2 : index
    %c1_377 = arith.constant 1 : index
    %c1_378 = arith.constant 1 : index
    %c0_379 = arith.constant 0 : index
    %464 = vector.load %arg1[%c2_376, %c1_377, %c1_378, %c0_379] : memref<16x7x7x128xf32, #tpu.memory_space<vmem>>, vector<1x6x6x128xf32>
    %465 = vector.shape_cast %464 : vector<1x6x6x128xf32> to vector<6x6x128xf32>
    %466 = vector.broadcast %10 : f32 to vector<6x6x128xf32>
    %467 = arith.mulf %465, %466 : vector<6x6x128xf32>
    %468 = arith.addf %463, %467 : vector<6x6x128xf32>
    %c3_380 = arith.constant 3 : index
    %c1_381 = arith.constant 1 : index
    %c1_382 = arith.constant 1 : index
    %c0_383 = arith.constant 0 : index
    %469 = vector.load %arg1[%c3_380, %c1_381, %c1_382, %c0_383] : memref<16x7x7x128xf32, #tpu.memory_space<vmem>>, vector<1x6x6x128xf32>
    %470 = vector.shape_cast %469 : vector<1x6x6x128xf32> to vector<6x6x128xf32>
    %471 = vector.broadcast %11 : f32 to vector<6x6x128xf32>
    %472 = arith.mulf %470, %471 : vector<6x6x128xf32>
    %473 = arith.addf %468, %472 : vector<6x6x128xf32>
    %c4_384 = arith.constant 4 : index
    %c1_385 = arith.constant 1 : index
    %c1_386 = arith.constant 1 : index
    %c0_387 = arith.constant 0 : index
    %474 = vector.load %arg1[%c4_384, %c1_385, %c1_386, %c0_387] : memref<16x7x7x128xf32, #tpu.memory_space<vmem>>, vector<1x6x6x128xf32>
    %475 = vector.shape_cast %474 : vector<1x6x6x128xf32> to vector<6x6x128xf32>
    %476 = vector.broadcast %12 : f32 to vector<6x6x128xf32>
    %477 = arith.mulf %475, %476 : vector<6x6x128xf32>
    %478 = arith.addf %473, %477 : vector<6x6x128xf32>
    %c5_388 = arith.constant 5 : index
    %c1_389 = arith.constant 1 : index
    %c1_390 = arith.constant 1 : index
    %c0_391 = arith.constant 0 : index
    %479 = vector.load %arg1[%c5_388, %c1_389, %c1_390, %c0_391] : memref<16x7x7x128xf32, #tpu.memory_space<vmem>>, vector<1x6x6x128xf32>
    %480 = vector.shape_cast %479 : vector<1x6x6x128xf32> to vector<6x6x128xf32>
    %481 = vector.broadcast %13 : f32 to vector<6x6x128xf32>
    %482 = arith.mulf %480, %481 : vector<6x6x128xf32>
    %483 = arith.addf %478, %482 : vector<6x6x128xf32>
    %c6_392 = arith.constant 6 : index
    %c1_393 = arith.constant 1 : index
    %c1_394 = arith.constant 1 : index
    %c0_395 = arith.constant 0 : index
    %484 = vector.load %arg1[%c6_392, %c1_393, %c1_394, %c0_395] : memref<16x7x7x128xf32, #tpu.memory_space<vmem>>, vector<1x6x6x128xf32>
    %485 = vector.shape_cast %484 : vector<1x6x6x128xf32> to vector<6x6x128xf32>
    %486 = vector.broadcast %14 : f32 to vector<6x6x128xf32>
    %487 = arith.mulf %485, %486 : vector<6x6x128xf32>
    %488 = arith.addf %483, %487 : vector<6x6x128xf32>
    %c7_396 = arith.constant 7 : index
    %c1_397 = arith.constant 1 : index
    %c1_398 = arith.constant 1 : index
    %c0_399 = arith.constant 0 : index
    %489 = vector.load %arg1[%c7_396, %c1_397, %c1_398, %c0_399] : memref<16x7x7x128xf32, #tpu.memory_space<vmem>>, vector<1x6x6x128xf32>
    %490 = vector.shape_cast %489 : vector<1x6x6x128xf32> to vector<6x6x128xf32>
    %491 = vector.broadcast %15 : f32 to vector<6x6x128xf32>
    %492 = arith.mulf %490, %491 : vector<6x6x128xf32>
    %493 = arith.addf %488, %492 : vector<6x6x128xf32>
    %494 = arith.maximumf %414, %493 : vector<6x6x128xf32>
    %c0_400 = arith.constant 0 : index
    %c1_401 = arith.constant 1 : index
    %c0_402 = arith.constant 0 : index
    %c0_403 = arith.constant 0 : index
    %495 = vector.load %arg1[%c0_400, %c1_401, %c0_402, %c0_403] : memref<16x7x7x128xf32, #tpu.memory_space<vmem>>, vector<1x6x6x128xf32>
    %496 = vector.shape_cast %495 : vector<1x6x6x128xf32> to vector<6x6x128xf32>
    %497 = vector.broadcast %0 : f32 to vector<6x6x128xf32>
    %498 = arith.mulf %496, %497 : vector<6x6x128xf32>
    %c1_404 = arith.constant 1 : index
    %c1_405 = arith.constant 1 : index
    %c0_406 = arith.constant 0 : index
    %c0_407 = arith.constant 0 : index
    %499 = vector.load %arg1[%c1_404, %c1_405, %c0_406, %c0_407] : memref<16x7x7x128xf32, #tpu.memory_space<vmem>>, vector<1x6x6x128xf32>
    %500 = vector.shape_cast %499 : vector<1x6x6x128xf32> to vector<6x6x128xf32>
    %501 = vector.broadcast %1 : f32 to vector<6x6x128xf32>
    %502 = arith.mulf %500, %501 : vector<6x6x128xf32>
    %503 = arith.addf %498, %502 : vector<6x6x128xf32>
    %c2_408 = arith.constant 2 : index
    %c1_409 = arith.constant 1 : index
    %c0_410 = arith.constant 0 : index
    %c0_411 = arith.constant 0 : index
    %504 = vector.load %arg1[%c2_408, %c1_409, %c0_410, %c0_411] : memref<16x7x7x128xf32, #tpu.memory_space<vmem>>, vector<1x6x6x128xf32>
    %505 = vector.shape_cast %504 : vector<1x6x6x128xf32> to vector<6x6x128xf32>
    %506 = vector.broadcast %2 : f32 to vector<6x6x128xf32>
    %507 = arith.mulf %505, %506 : vector<6x6x128xf32>
    %508 = arith.addf %503, %507 : vector<6x6x128xf32>
    %c3_412 = arith.constant 3 : index
    %c1_413 = arith.constant 1 : index
    %c0_414 = arith.constant 0 : index
    %c0_415 = arith.constant 0 : index
    %509 = vector.load %arg1[%c3_412, %c1_413, %c0_414, %c0_415] : memref<16x7x7x128xf32, #tpu.memory_space<vmem>>, vector<1x6x6x128xf32>
    %510 = vector.shape_cast %509 : vector<1x6x6x128xf32> to vector<6x6x128xf32>
    %511 = vector.broadcast %3 : f32 to vector<6x6x128xf32>
    %512 = arith.mulf %510, %511 : vector<6x6x128xf32>
    %513 = arith.addf %508, %512 : vector<6x6x128xf32>
    %c4_416 = arith.constant 4 : index
    %c1_417 = arith.constant 1 : index
    %c0_418 = arith.constant 0 : index
    %c0_419 = arith.constant 0 : index
    %514 = vector.load %arg1[%c4_416, %c1_417, %c0_418, %c0_419] : memref<16x7x7x128xf32, #tpu.memory_space<vmem>>, vector<1x6x6x128xf32>
    %515 = vector.shape_cast %514 : vector<1x6x6x128xf32> to vector<6x6x128xf32>
    %516 = vector.broadcast %4 : f32 to vector<6x6x128xf32>
    %517 = arith.mulf %515, %516 : vector<6x6x128xf32>
    %518 = arith.addf %513, %517 : vector<6x6x128xf32>
    %c5_420 = arith.constant 5 : index
    %c1_421 = arith.constant 1 : index
    %c0_422 = arith.constant 0 : index
    %c0_423 = arith.constant 0 : index
    %519 = vector.load %arg1[%c5_420, %c1_421, %c0_422, %c0_423] : memref<16x7x7x128xf32, #tpu.memory_space<vmem>>, vector<1x6x6x128xf32>
    %520 = vector.shape_cast %519 : vector<1x6x6x128xf32> to vector<6x6x128xf32>
    %521 = vector.broadcast %5 : f32 to vector<6x6x128xf32>
    %522 = arith.mulf %520, %521 : vector<6x6x128xf32>
    %523 = arith.addf %518, %522 : vector<6x6x128xf32>
    %c6_424 = arith.constant 6 : index
    %c1_425 = arith.constant 1 : index
    %c0_426 = arith.constant 0 : index
    %c0_427 = arith.constant 0 : index
    %524 = vector.load %arg1[%c6_424, %c1_425, %c0_426, %c0_427] : memref<16x7x7x128xf32, #tpu.memory_space<vmem>>, vector<1x6x6x128xf32>
    %525 = vector.shape_cast %524 : vector<1x6x6x128xf32> to vector<6x6x128xf32>
    %526 = vector.broadcast %6 : f32 to vector<6x6x128xf32>
    %527 = arith.mulf %525, %526 : vector<6x6x128xf32>
    %528 = arith.addf %523, %527 : vector<6x6x128xf32>
    %c7_428 = arith.constant 7 : index
    %c1_429 = arith.constant 1 : index
    %c0_430 = arith.constant 0 : index
    %c0_431 = arith.constant 0 : index
    %529 = vector.load %arg1[%c7_428, %c1_429, %c0_430, %c0_431] : memref<16x7x7x128xf32, #tpu.memory_space<vmem>>, vector<1x6x6x128xf32>
    %530 = vector.shape_cast %529 : vector<1x6x6x128xf32> to vector<6x6x128xf32>
    %531 = vector.broadcast %7 : f32 to vector<6x6x128xf32>
    %532 = arith.mulf %530, %531 : vector<6x6x128xf32>
    %533 = arith.addf %528, %532 : vector<6x6x128xf32>
    %c8_432 = arith.constant 8 : index
    %c1_433 = arith.constant 1 : index
    %c0_434 = arith.constant 0 : index
    %c0_435 = arith.constant 0 : index
    %534 = vector.load %arg1[%c8_432, %c1_433, %c0_434, %c0_435] : memref<16x7x7x128xf32, #tpu.memory_space<vmem>>, vector<1x6x6x128xf32>
    %535 = vector.shape_cast %534 : vector<1x6x6x128xf32> to vector<6x6x128xf32>
    %536 = vector.broadcast %8 : f32 to vector<6x6x128xf32>
    %537 = arith.mulf %535, %536 : vector<6x6x128xf32>
    %538 = arith.addf %533, %537 : vector<6x6x128xf32>
    %c9_436 = arith.constant 9 : index
    %c1_437 = arith.constant 1 : index
    %c0_438 = arith.constant 0 : index
    %c0_439 = arith.constant 0 : index
    %539 = vector.load %arg1[%c9_436, %c1_437, %c0_438, %c0_439] : memref<16x7x7x128xf32, #tpu.memory_space<vmem>>, vector<1x6x6x128xf32>
    %540 = vector.shape_cast %539 : vector<1x6x6x128xf32> to vector<6x6x128xf32>
    %541 = vector.broadcast %9 : f32 to vector<6x6x128xf32>
    %542 = arith.mulf %540, %541 : vector<6x6x128xf32>
    %543 = arith.addf %538, %542 : vector<6x6x128xf32>
    %c10_440 = arith.constant 10 : index
    %c1_441 = arith.constant 1 : index
    %c0_442 = arith.constant 0 : index
    %c0_443 = arith.constant 0 : index
    %544 = vector.load %arg1[%c10_440, %c1_441, %c0_442, %c0_443] : memref<16x7x7x128xf32, #tpu.memory_space<vmem>>, vector<1x6x6x128xf32>
    %545 = vector.shape_cast %544 : vector<1x6x6x128xf32> to vector<6x6x128xf32>
    %546 = vector.broadcast %10 : f32 to vector<6x6x128xf32>
    %547 = arith.mulf %545, %546 : vector<6x6x128xf32>
    %548 = arith.addf %543, %547 : vector<6x6x128xf32>
    %c11_444 = arith.constant 11 : index
    %c1_445 = arith.constant 1 : index
    %c0_446 = arith.constant 0 : index
    %c0_447 = arith.constant 0 : index
    %549 = vector.load %arg1[%c11_444, %c1_445, %c0_446, %c0_447] : memref<16x7x7x128xf32, #tpu.memory_space<vmem>>, vector<1x6x6x128xf32>
    %550 = vector.shape_cast %549 : vector<1x6x6x128xf32> to vector<6x6x128xf32>
    %551 = vector.broadcast %11 : f32 to vector<6x6x128xf32>
    %552 = arith.mulf %550, %551 : vector<6x6x128xf32>
    %553 = arith.addf %548, %552 : vector<6x6x128xf32>
    %c12_448 = arith.constant 12 : index
    %c1_449 = arith.constant 1 : index
    %c0_450 = arith.constant 0 : index
    %c0_451 = arith.constant 0 : index
    %554 = vector.load %arg1[%c12_448, %c1_449, %c0_450, %c0_451] : memref<16x7x7x128xf32, #tpu.memory_space<vmem>>, vector<1x6x6x128xf32>
    %555 = vector.shape_cast %554 : vector<1x6x6x128xf32> to vector<6x6x128xf32>
    %556 = vector.broadcast %12 : f32 to vector<6x6x128xf32>
    %557 = arith.mulf %555, %556 : vector<6x6x128xf32>
    %558 = arith.addf %553, %557 : vector<6x6x128xf32>
    %c13_452 = arith.constant 13 : index
    %c1_453 = arith.constant 1 : index
    %c0_454 = arith.constant 0 : index
    %c0_455 = arith.constant 0 : index
    %559 = vector.load %arg1[%c13_452, %c1_453, %c0_454, %c0_455] : memref<16x7x7x128xf32, #tpu.memory_space<vmem>>, vector<1x6x6x128xf32>
    %560 = vector.shape_cast %559 : vector<1x6x6x128xf32> to vector<6x6x128xf32>
    %561 = vector.broadcast %13 : f32 to vector<6x6x128xf32>
    %562 = arith.mulf %560, %561 : vector<6x6x128xf32>
    %563 = arith.addf %558, %562 : vector<6x6x128xf32>
    %c14_456 = arith.constant 14 : index
    %c1_457 = arith.constant 1 : index
    %c0_458 = arith.constant 0 : index
    %c0_459 = arith.constant 0 : index
    %564 = vector.load %arg1[%c14_456, %c1_457, %c0_458, %c0_459] : memref<16x7x7x128xf32, #tpu.memory_space<vmem>>, vector<1x6x6x128xf32>
    %565 = vector.shape_cast %564 : vector<1x6x6x128xf32> to vector<6x6x128xf32>
    %566 = vector.broadcast %14 : f32 to vector<6x6x128xf32>
    %567 = arith.mulf %565, %566 : vector<6x6x128xf32>
    %568 = arith.addf %563, %567 : vector<6x6x128xf32>
    %c15_460 = arith.constant 15 : index
    %c1_461 = arith.constant 1 : index
    %c0_462 = arith.constant 0 : index
    %c0_463 = arith.constant 0 : index
    %569 = vector.load %arg1[%c15_460, %c1_461, %c0_462, %c0_463] : memref<16x7x7x128xf32, #tpu.memory_space<vmem>>, vector<1x6x6x128xf32>
    %570 = vector.shape_cast %569 : vector<1x6x6x128xf32> to vector<6x6x128xf32>
    %571 = vector.broadcast %15 : f32 to vector<6x6x128xf32>
    %572 = arith.mulf %570, %571 : vector<6x6x128xf32>
    %573 = arith.addf %568, %572 : vector<6x6x128xf32>
    %574 = arith.maximumf %494, %573 : vector<6x6x128xf32>
    %c2_464 = arith.constant 2 : index
    %c1_465 = arith.constant 1 : index
    %c0_466 = arith.constant 0 : index
    %c0_467 = arith.constant 0 : index
    %575 = vector.load %arg1[%c2_464, %c1_465, %c0_466, %c0_467] : memref<16x7x7x128xf32, #tpu.memory_space<vmem>>, vector<1x6x6x128xf32>
    %576 = vector.shape_cast %575 : vector<1x6x6x128xf32> to vector<6x6x128xf32>
    %577 = vector.broadcast %0 : f32 to vector<6x6x128xf32>
    %578 = arith.mulf %576, %577 : vector<6x6x128xf32>
    %c3_468 = arith.constant 3 : index
    %c1_469 = arith.constant 1 : index
    %c0_470 = arith.constant 0 : index
    %c0_471 = arith.constant 0 : index
    %579 = vector.load %arg1[%c3_468, %c1_469, %c0_470, %c0_471] : memref<16x7x7x128xf32, #tpu.memory_space<vmem>>, vector<1x6x6x128xf32>
    %580 = vector.shape_cast %579 : vector<1x6x6x128xf32> to vector<6x6x128xf32>
    %581 = vector.broadcast %1 : f32 to vector<6x6x128xf32>
    %582 = arith.mulf %580, %581 : vector<6x6x128xf32>
    %583 = arith.addf %578, %582 : vector<6x6x128xf32>
    %c0_472 = arith.constant 0 : index
    %c1_473 = arith.constant 1 : index
    %c1_474 = arith.constant 1 : index
    %c0_475 = arith.constant 0 : index
    %584 = vector.load %arg1[%c0_472, %c1_473, %c1_474, %c0_475] : memref<16x7x7x128xf32, #tpu.memory_space<vmem>>, vector<1x6x6x128xf32>
    %585 = vector.shape_cast %584 : vector<1x6x6x128xf32> to vector<6x6x128xf32>
    %586 = vector.broadcast %2 : f32 to vector<6x6x128xf32>
    %587 = arith.mulf %585, %586 : vector<6x6x128xf32>
    %588 = arith.addf %583, %587 : vector<6x6x128xf32>
    %c1_476 = arith.constant 1 : index
    %c1_477 = arith.constant 1 : index
    %c1_478 = arith.constant 1 : index
    %c0_479 = arith.constant 0 : index
    %589 = vector.load %arg1[%c1_476, %c1_477, %c1_478, %c0_479] : memref<16x7x7x128xf32, #tpu.memory_space<vmem>>, vector<1x6x6x128xf32>
    %590 = vector.shape_cast %589 : vector<1x6x6x128xf32> to vector<6x6x128xf32>
    %591 = vector.broadcast %3 : f32 to vector<6x6x128xf32>
    %592 = arith.mulf %590, %591 : vector<6x6x128xf32>
    %593 = arith.addf %588, %592 : vector<6x6x128xf32>
    %c6_480 = arith.constant 6 : index
    %c1_481 = arith.constant 1 : index
    %c0_482 = arith.constant 0 : index
    %c0_483 = arith.constant 0 : index
    %594 = vector.load %arg1[%c6_480, %c1_481, %c0_482, %c0_483] : memref<16x7x7x128xf32, #tpu.memory_space<vmem>>, vector<1x6x6x128xf32>
    %595 = vector.shape_cast %594 : vector<1x6x6x128xf32> to vector<6x6x128xf32>
    %596 = vector.broadcast %4 : f32 to vector<6x6x128xf32>
    %597 = arith.mulf %595, %596 : vector<6x6x128xf32>
    %598 = arith.addf %593, %597 : vector<6x6x128xf32>
    %c7_484 = arith.constant 7 : index
    %c1_485 = arith.constant 1 : index
    %c0_486 = arith.constant 0 : index
    %c0_487 = arith.constant 0 : index
    %599 = vector.load %arg1[%c7_484, %c1_485, %c0_486, %c0_487] : memref<16x7x7x128xf32, #tpu.memory_space<vmem>>, vector<1x6x6x128xf32>
    %600 = vector.shape_cast %599 : vector<1x6x6x128xf32> to vector<6x6x128xf32>
    %601 = vector.broadcast %5 : f32 to vector<6x6x128xf32>
    %602 = arith.mulf %600, %601 : vector<6x6x128xf32>
    %603 = arith.addf %598, %602 : vector<6x6x128xf32>
    %c4_488 = arith.constant 4 : index
    %c1_489 = arith.constant 1 : index
    %c1_490 = arith.constant 1 : index
    %c0_491 = arith.constant 0 : index
    %604 = vector.load %arg1[%c4_488, %c1_489, %c1_490, %c0_491] : memref<16x7x7x128xf32, #tpu.memory_space<vmem>>, vector<1x6x6x128xf32>
    %605 = vector.shape_cast %604 : vector<1x6x6x128xf32> to vector<6x6x128xf32>
    %606 = vector.broadcast %6 : f32 to vector<6x6x128xf32>
    %607 = arith.mulf %605, %606 : vector<6x6x128xf32>
    %608 = arith.addf %603, %607 : vector<6x6x128xf32>
    %c5_492 = arith.constant 5 : index
    %c1_493 = arith.constant 1 : index
    %c1_494 = arith.constant 1 : index
    %c0_495 = arith.constant 0 : index
    %609 = vector.load %arg1[%c5_492, %c1_493, %c1_494, %c0_495] : memref<16x7x7x128xf32, #tpu.memory_space<vmem>>, vector<1x6x6x128xf32>
    %610 = vector.shape_cast %609 : vector<1x6x6x128xf32> to vector<6x6x128xf32>
    %611 = vector.broadcast %7 : f32 to vector<6x6x128xf32>
    %612 = arith.mulf %610, %611 : vector<6x6x128xf32>
    %613 = arith.addf %608, %612 : vector<6x6x128xf32>
    %c10_496 = arith.constant 10 : index
    %c1_497 = arith.constant 1 : index
    %c0_498 = arith.constant 0 : index
    %c0_499 = arith.constant 0 : index
    %614 = vector.load %arg1[%c10_496, %c1_497, %c0_498, %c0_499] : memref<16x7x7x128xf32, #tpu.memory_space<vmem>>, vector<1x6x6x128xf32>
    %615 = vector.shape_cast %614 : vector<1x6x6x128xf32> to vector<6x6x128xf32>
    %616 = vector.broadcast %8 : f32 to vector<6x6x128xf32>
    %617 = arith.mulf %615, %616 : vector<6x6x128xf32>
    %618 = arith.addf %613, %617 : vector<6x6x128xf32>
    %c11_500 = arith.constant 11 : index
    %c1_501 = arith.constant 1 : index
    %c0_502 = arith.constant 0 : index
    %c0_503 = arith.constant 0 : index
    %619 = vector.load %arg1[%c11_500, %c1_501, %c0_502, %c0_503] : memref<16x7x7x128xf32, #tpu.memory_space<vmem>>, vector<1x6x6x128xf32>
    %620 = vector.shape_cast %619 : vector<1x6x6x128xf32> to vector<6x6x128xf32>
    %621 = vector.broadcast %9 : f32 to vector<6x6x128xf32>
    %622 = arith.mulf %620, %621 : vector<6x6x128xf32>
    %623 = arith.addf %618, %622 : vector<6x6x128xf32>
    %c8_504 = arith.constant 8 : index
    %c1_505 = arith.constant 1 : index
    %c1_506 = arith.constant 1 : index
    %c0_507 = arith.constant 0 : index
    %624 = vector.load %arg1[%c8_504, %c1_505, %c1_506, %c0_507] : memref<16x7x7x128xf32, #tpu.memory_space<vmem>>, vector<1x6x6x128xf32>
    %625 = vector.shape_cast %624 : vector<1x6x6x128xf32> to vector<6x6x128xf32>
    %626 = vector.broadcast %10 : f32 to vector<6x6x128xf32>
    %627 = arith.mulf %625, %626 : vector<6x6x128xf32>
    %628 = arith.addf %623, %627 : vector<6x6x128xf32>
    %c9_508 = arith.constant 9 : index
    %c1_509 = arith.constant 1 : index
    %c1_510 = arith.constant 1 : index
    %c0_511 = arith.constant 0 : index
    %629 = vector.load %arg1[%c9_508, %c1_509, %c1_510, %c0_511] : memref<16x7x7x128xf32, #tpu.memory_space<vmem>>, vector<1x6x6x128xf32>
    %630 = vector.shape_cast %629 : vector<1x6x6x128xf32> to vector<6x6x128xf32>
    %631 = vector.broadcast %11 : f32 to vector<6x6x128xf32>
    %632 = arith.mulf %630, %631 : vector<6x6x128xf32>
    %633 = arith.addf %628, %632 : vector<6x6x128xf32>
    %c14_512 = arith.constant 14 : index
    %c1_513 = arith.constant 1 : index
    %c0_514 = arith.constant 0 : index
    %c0_515 = arith.constant 0 : index
    %634 = vector.load %arg1[%c14_512, %c1_513, %c0_514, %c0_515] : memref<16x7x7x128xf32, #tpu.memory_space<vmem>>, vector<1x6x6x128xf32>
    %635 = vector.shape_cast %634 : vector<1x6x6x128xf32> to vector<6x6x128xf32>
    %636 = vector.broadcast %12 : f32 to vector<6x6x128xf32>
    %637 = arith.mulf %635, %636 : vector<6x6x128xf32>
    %638 = arith.addf %633, %637 : vector<6x6x128xf32>
    %c15_516 = arith.constant 15 : index
    %c1_517 = arith.constant 1 : index
    %c0_518 = arith.constant 0 : index
    %c0_519 = arith.constant 0 : index
    %639 = vector.load %arg1[%c15_516, %c1_517, %c0_518, %c0_519] : memref<16x7x7x128xf32, #tpu.memory_space<vmem>>, vector<1x6x6x128xf32>
    %640 = vector.shape_cast %639 : vector<1x6x6x128xf32> to vector<6x6x128xf32>
    %641 = vector.broadcast %13 : f32 to vector<6x6x128xf32>
    %642 = arith.mulf %640, %641 : vector<6x6x128xf32>
    %643 = arith.addf %638, %642 : vector<6x6x128xf32>
    %c12_520 = arith.constant 12 : index
    %c1_521 = arith.constant 1 : index
    %c1_522 = arith.constant 1 : index
    %c0_523 = arith.constant 0 : index
    %644 = vector.load %arg1[%c12_520, %c1_521, %c1_522, %c0_523] : memref<16x7x7x128xf32, #tpu.memory_space<vmem>>, vector<1x6x6x128xf32>
    %645 = vector.shape_cast %644 : vector<1x6x6x128xf32> to vector<6x6x128xf32>
    %646 = vector.broadcast %14 : f32 to vector<6x6x128xf32>
    %647 = arith.mulf %645, %646 : vector<6x6x128xf32>
    %648 = arith.addf %643, %647 : vector<6x6x128xf32>
    %c13_524 = arith.constant 13 : index
    %c1_525 = arith.constant 1 : index
    %c1_526 = arith.constant 1 : index
    %c0_527 = arith.constant 0 : index
    %649 = vector.load %arg1[%c13_524, %c1_525, %c1_526, %c0_527] : memref<16x7x7x128xf32, #tpu.memory_space<vmem>>, vector<1x6x6x128xf32>
    %650 = vector.shape_cast %649 : vector<1x6x6x128xf32> to vector<6x6x128xf32>
    %651 = vector.broadcast %15 : f32 to vector<6x6x128xf32>
    %652 = arith.mulf %650, %651 : vector<6x6x128xf32>
    %653 = arith.addf %648, %652 : vector<6x6x128xf32>
    %654 = arith.maximumf %574, %653 : vector<6x6x128xf32>
    %c0_528 = arith.constant 0 : index
    %c1_529 = arith.constant 1 : index
    %c1_530 = arith.constant 1 : index
    %c0_531 = arith.constant 0 : index
    %655 = vector.load %arg1[%c0_528, %c1_529, %c1_530, %c0_531] : memref<16x7x7x128xf32, #tpu.memory_space<vmem>>, vector<1x6x6x128xf32>
    %656 = vector.shape_cast %655 : vector<1x6x6x128xf32> to vector<6x6x128xf32>
    %657 = vector.broadcast %0 : f32 to vector<6x6x128xf32>
    %658 = arith.mulf %656, %657 : vector<6x6x128xf32>
    %c1_532 = arith.constant 1 : index
    %c1_533 = arith.constant 1 : index
    %c1_534 = arith.constant 1 : index
    %c0_535 = arith.constant 0 : index
    %659 = vector.load %arg1[%c1_532, %c1_533, %c1_534, %c0_535] : memref<16x7x7x128xf32, #tpu.memory_space<vmem>>, vector<1x6x6x128xf32>
    %660 = vector.shape_cast %659 : vector<1x6x6x128xf32> to vector<6x6x128xf32>
    %661 = vector.broadcast %1 : f32 to vector<6x6x128xf32>
    %662 = arith.mulf %660, %661 : vector<6x6x128xf32>
    %663 = arith.addf %658, %662 : vector<6x6x128xf32>
    %c2_536 = arith.constant 2 : index
    %c1_537 = arith.constant 1 : index
    %c1_538 = arith.constant 1 : index
    %c0_539 = arith.constant 0 : index
    %664 = vector.load %arg1[%c2_536, %c1_537, %c1_538, %c0_539] : memref<16x7x7x128xf32, #tpu.memory_space<vmem>>, vector<1x6x6x128xf32>
    %665 = vector.shape_cast %664 : vector<1x6x6x128xf32> to vector<6x6x128xf32>
    %666 = vector.broadcast %2 : f32 to vector<6x6x128xf32>
    %667 = arith.mulf %665, %666 : vector<6x6x128xf32>
    %668 = arith.addf %663, %667 : vector<6x6x128xf32>
    %c3_540 = arith.constant 3 : index
    %c1_541 = arith.constant 1 : index
    %c1_542 = arith.constant 1 : index
    %c0_543 = arith.constant 0 : index
    %669 = vector.load %arg1[%c3_540, %c1_541, %c1_542, %c0_543] : memref<16x7x7x128xf32, #tpu.memory_space<vmem>>, vector<1x6x6x128xf32>
    %670 = vector.shape_cast %669 : vector<1x6x6x128xf32> to vector<6x6x128xf32>
    %671 = vector.broadcast %3 : f32 to vector<6x6x128xf32>
    %672 = arith.mulf %670, %671 : vector<6x6x128xf32>
    %673 = arith.addf %668, %672 : vector<6x6x128xf32>
    %c4_544 = arith.constant 4 : index
    %c1_545 = arith.constant 1 : index
    %c1_546 = arith.constant 1 : index
    %c0_547 = arith.constant 0 : index
    %674 = vector.load %arg1[%c4_544, %c1_545, %c1_546, %c0_547] : memref<16x7x7x128xf32, #tpu.memory_space<vmem>>, vector<1x6x6x128xf32>
    %675 = vector.shape_cast %674 : vector<1x6x6x128xf32> to vector<6x6x128xf32>
    %676 = vector.broadcast %4 : f32 to vector<6x6x128xf32>
    %677 = arith.mulf %675, %676 : vector<6x6x128xf32>
    %678 = arith.addf %673, %677 : vector<6x6x128xf32>
    %c5_548 = arith.constant 5 : index
    %c1_549 = arith.constant 1 : index
    %c1_550 = arith.constant 1 : index
    %c0_551 = arith.constant 0 : index
    %679 = vector.load %arg1[%c5_548, %c1_549, %c1_550, %c0_551] : memref<16x7x7x128xf32, #tpu.memory_space<vmem>>, vector<1x6x6x128xf32>
    %680 = vector.shape_cast %679 : vector<1x6x6x128xf32> to vector<6x6x128xf32>
    %681 = vector.broadcast %5 : f32 to vector<6x6x128xf32>
    %682 = arith.mulf %680, %681 : vector<6x6x128xf32>
    %683 = arith.addf %678, %682 : vector<6x6x128xf32>
    %c6_552 = arith.constant 6 : index
    %c1_553 = arith.constant 1 : index
    %c1_554 = arith.constant 1 : index
    %c0_555 = arith.constant 0 : index
    %684 = vector.load %arg1[%c6_552, %c1_553, %c1_554, %c0_555] : memref<16x7x7x128xf32, #tpu.memory_space<vmem>>, vector<1x6x6x128xf32>
    %685 = vector.shape_cast %684 : vector<1x6x6x128xf32> to vector<6x6x128xf32>
    %686 = vector.broadcast %6 : f32 to vector<6x6x128xf32>
    %687 = arith.mulf %685, %686 : vector<6x6x128xf32>
    %688 = arith.addf %683, %687 : vector<6x6x128xf32>
    %c7_556 = arith.constant 7 : index
    %c1_557 = arith.constant 1 : index
    %c1_558 = arith.constant 1 : index
    %c0_559 = arith.constant 0 : index
    %689 = vector.load %arg1[%c7_556, %c1_557, %c1_558, %c0_559] : memref<16x7x7x128xf32, #tpu.memory_space<vmem>>, vector<1x6x6x128xf32>
    %690 = vector.shape_cast %689 : vector<1x6x6x128xf32> to vector<6x6x128xf32>
    %691 = vector.broadcast %7 : f32 to vector<6x6x128xf32>
    %692 = arith.mulf %690, %691 : vector<6x6x128xf32>
    %693 = arith.addf %688, %692 : vector<6x6x128xf32>
    %c8_560 = arith.constant 8 : index
    %c1_561 = arith.constant 1 : index
    %c1_562 = arith.constant 1 : index
    %c0_563 = arith.constant 0 : index
    %694 = vector.load %arg1[%c8_560, %c1_561, %c1_562, %c0_563] : memref<16x7x7x128xf32, #tpu.memory_space<vmem>>, vector<1x6x6x128xf32>
    %695 = vector.shape_cast %694 : vector<1x6x6x128xf32> to vector<6x6x128xf32>
    %696 = vector.broadcast %8 : f32 to vector<6x6x128xf32>
    %697 = arith.mulf %695, %696 : vector<6x6x128xf32>
    %698 = arith.addf %693, %697 : vector<6x6x128xf32>
    %c9_564 = arith.constant 9 : index
    %c1_565 = arith.constant 1 : index
    %c1_566 = arith.constant 1 : index
    %c0_567 = arith.constant 0 : index
    %699 = vector.load %arg1[%c9_564, %c1_565, %c1_566, %c0_567] : memref<16x7x7x128xf32, #tpu.memory_space<vmem>>, vector<1x6x6x128xf32>
    %700 = vector.shape_cast %699 : vector<1x6x6x128xf32> to vector<6x6x128xf32>
    %701 = vector.broadcast %9 : f32 to vector<6x6x128xf32>
    %702 = arith.mulf %700, %701 : vector<6x6x128xf32>
    %703 = arith.addf %698, %702 : vector<6x6x128xf32>
    %c10_568 = arith.constant 10 : index
    %c1_569 = arith.constant 1 : index
    %c1_570 = arith.constant 1 : index
    %c0_571 = arith.constant 0 : index
    %704 = vector.load %arg1[%c10_568, %c1_569, %c1_570, %c0_571] : memref<16x7x7x128xf32, #tpu.memory_space<vmem>>, vector<1x6x6x128xf32>
    %705 = vector.shape_cast %704 : vector<1x6x6x128xf32> to vector<6x6x128xf32>
    %706 = vector.broadcast %10 : f32 to vector<6x6x128xf32>
    %707 = arith.mulf %705, %706 : vector<6x6x128xf32>
    %708 = arith.addf %703, %707 : vector<6x6x128xf32>
    %c11_572 = arith.constant 11 : index
    %c1_573 = arith.constant 1 : index
    %c1_574 = arith.constant 1 : index
    %c0_575 = arith.constant 0 : index
    %709 = vector.load %arg1[%c11_572, %c1_573, %c1_574, %c0_575] : memref<16x7x7x128xf32, #tpu.memory_space<vmem>>, vector<1x6x6x128xf32>
    %710 = vector.shape_cast %709 : vector<1x6x6x128xf32> to vector<6x6x128xf32>
    %711 = vector.broadcast %11 : f32 to vector<6x6x128xf32>
    %712 = arith.mulf %710, %711 : vector<6x6x128xf32>
    %713 = arith.addf %708, %712 : vector<6x6x128xf32>
    %c12_576 = arith.constant 12 : index
    %c1_577 = arith.constant 1 : index
    %c1_578 = arith.constant 1 : index
    %c0_579 = arith.constant 0 : index
    %714 = vector.load %arg1[%c12_576, %c1_577, %c1_578, %c0_579] : memref<16x7x7x128xf32, #tpu.memory_space<vmem>>, vector<1x6x6x128xf32>
    %715 = vector.shape_cast %714 : vector<1x6x6x128xf32> to vector<6x6x128xf32>
    %716 = vector.broadcast %12 : f32 to vector<6x6x128xf32>
    %717 = arith.mulf %715, %716 : vector<6x6x128xf32>
    %718 = arith.addf %713, %717 : vector<6x6x128xf32>
    %c13_580 = arith.constant 13 : index
    %c1_581 = arith.constant 1 : index
    %c1_582 = arith.constant 1 : index
    %c0_583 = arith.constant 0 : index
    %719 = vector.load %arg1[%c13_580, %c1_581, %c1_582, %c0_583] : memref<16x7x7x128xf32, #tpu.memory_space<vmem>>, vector<1x6x6x128xf32>
    %720 = vector.shape_cast %719 : vector<1x6x6x128xf32> to vector<6x6x128xf32>
    %721 = vector.broadcast %13 : f32 to vector<6x6x128xf32>
    %722 = arith.mulf %720, %721 : vector<6x6x128xf32>
    %723 = arith.addf %718, %722 : vector<6x6x128xf32>
    %c14_584 = arith.constant 14 : index
    %c1_585 = arith.constant 1 : index
    %c1_586 = arith.constant 1 : index
    %c0_587 = arith.constant 0 : index
    %724 = vector.load %arg1[%c14_584, %c1_585, %c1_586, %c0_587] : memref<16x7x7x128xf32, #tpu.memory_space<vmem>>, vector<1x6x6x128xf32>
    %725 = vector.shape_cast %724 : vector<1x6x6x128xf32> to vector<6x6x128xf32>
    %726 = vector.broadcast %14 : f32 to vector<6x6x128xf32>
    %727 = arith.mulf %725, %726 : vector<6x6x128xf32>
    %728 = arith.addf %723, %727 : vector<6x6x128xf32>
    %c15_588 = arith.constant 15 : index
    %c1_589 = arith.constant 1 : index
    %c1_590 = arith.constant 1 : index
    %c0_591 = arith.constant 0 : index
    %729 = vector.load %arg1[%c15_588, %c1_589, %c1_590, %c0_591] : memref<16x7x7x128xf32, #tpu.memory_space<vmem>>, vector<1x6x6x128xf32>
    %730 = vector.shape_cast %729 : vector<1x6x6x128xf32> to vector<6x6x128xf32>
    %731 = vector.broadcast %15 : f32 to vector<6x6x128xf32>
    %732 = arith.mulf %730, %731 : vector<6x6x128xf32>
    %733 = arith.addf %728, %732 : vector<6x6x128xf32>
    %734 = arith.maximumf %654, %733 : vector<6x6x128xf32>
    %c0_592 = arith.constant 0 : index
    %c0_593 = arith.constant 0 : index
    %735 = memref.load %arg3[%c0_592, %c0_593] : memref<1x1xf32, #tpu.memory_space<smem>>
    %736 = vector.broadcast %735 : f32 to vector<6x6x128xf32>
    %737 = arith.addf %734, %736 : vector<6x6x128xf32>
    %cst = arith.constant 0.000000e+00 : f32
    %738 = vector.broadcast %cst : f32 to vector<6x6x128xf32>
    %739 = arith.maximumf %737, %738 : vector<6x6x128xf32>
    %c0_594 = arith.constant 0 : index
    %c0_595 = arith.constant 0 : index
    %c0_596 = arith.constant 0 : index
    %740 = vector.load %arg4[%c0_594, %c0_595, %c0_596] : memref<6x4x6xf32, #tpu.memory_space<vmem>>, vector<1x4x6xf32>
    %741 = vector.shape_cast %740 : vector<1x4x6xf32> to vector<4x6xf32>
    %742 = vector.extract_strided_slice %739 {offsets = [0, 0, 0], sizes = [1, 6, 128], strides = [1, 1, 1]} : vector<6x6x128xf32> to vector<1x6x128xf32>
    %743 = vector.shape_cast %742 : vector<1x6x128xf32> to vector<6x128xf32>
    %cst_597 = arith.constant dense<0.000000e+00> : vector<4x128xf32>
    %744 = tpu.matmul %741, %743, %cst_597 {dimension_numbers = #tpu.dot_dimension_numbers<[1], [0], [0], [1], [0, 0, 1, 1], [], []>} : vector<4x6xf32>, vector<6x128xf32>, vector<4x128xf32> -> vector<4x128xf32>
    %c1_598 = arith.constant 1 : index
    %c0_599 = arith.constant 0 : index
    %c0_600 = arith.constant 0 : index
    %745 = vector.load %arg4[%c1_598, %c0_599, %c0_600] : memref<6x4x6xf32, #tpu.memory_space<vmem>>, vector<1x4x6xf32>
    %746 = vector.shape_cast %745 : vector<1x4x6xf32> to vector<4x6xf32>
    %747 = vector.extract_strided_slice %739 {offsets = [1, 0, 0], sizes = [1, 6, 128], strides = [1, 1, 1]} : vector<6x6x128xf32> to vector<1x6x128xf32>
    %748 = vector.shape_cast %747 : vector<1x6x128xf32> to vector<6x128xf32>
    %cst_601 = arith.constant dense<0.000000e+00> : vector<4x128xf32>
    %749 = tpu.matmul %746, %748, %cst_601 {dimension_numbers = #tpu.dot_dimension_numbers<[1], [0], [0], [1], [0, 0, 1, 1], [], []>} : vector<4x6xf32>, vector<6x128xf32>, vector<4x128xf32> -> vector<4x128xf32>
    %750 = arith.addf %744, %749 : vector<4x128xf32>
    %c2_602 = arith.constant 2 : index
    %c0_603 = arith.constant 0 : index
    %c0_604 = arith.constant 0 : index
    %751 = vector.load %arg4[%c2_602, %c0_603, %c0_604] : memref<6x4x6xf32, #tpu.memory_space<vmem>>, vector<1x4x6xf32>
    %752 = vector.shape_cast %751 : vector<1x4x6xf32> to vector<4x6xf32>
    %753 = vector.extract_strided_slice %739 {offsets = [2, 0, 0], sizes = [1, 6, 128], strides = [1, 1, 1]} : vector<6x6x128xf32> to vector<1x6x128xf32>
    %754 = vector.shape_cast %753 : vector<1x6x128xf32> to vector<6x128xf32>
    %cst_605 = arith.constant dense<0.000000e+00> : vector<4x128xf32>
    %755 = tpu.matmul %752, %754, %cst_605 {dimension_numbers = #tpu.dot_dimension_numbers<[1], [0], [0], [1], [0, 0, 1, 1], [], []>} : vector<4x6xf32>, vector<6x128xf32>, vector<4x128xf32> -> vector<4x128xf32>
    %756 = arith.addf %750, %755 : vector<4x128xf32>
    %c3_606 = arith.constant 3 : index
    %c0_607 = arith.constant 0 : index
    %c0_608 = arith.constant 0 : index
    %757 = vector.load %arg4[%c3_606, %c0_607, %c0_608] : memref<6x4x6xf32, #tpu.memory_space<vmem>>, vector<1x4x6xf32>
    %758 = vector.shape_cast %757 : vector<1x4x6xf32> to vector<4x6xf32>
    %759 = vector.extract_strided_slice %739 {offsets = [3, 0, 0], sizes = [1, 6, 128], strides = [1, 1, 1]} : vector<6x6x128xf32> to vector<1x6x128xf32>
    %760 = vector.shape_cast %759 : vector<1x6x128xf32> to vector<6x128xf32>
    %cst_609 = arith.constant dense<0.000000e+00> : vector<4x128xf32>
    %761 = tpu.matmul %758, %760, %cst_609 {dimension_numbers = #tpu.dot_dimension_numbers<[1], [0], [0], [1], [0, 0, 1, 1], [], []>} : vector<4x6xf32>, vector<6x128xf32>, vector<4x128xf32> -> vector<4x128xf32>
    %762 = arith.addf %756, %761 : vector<4x128xf32>
    %c4_610 = arith.constant 4 : index
    %c0_611 = arith.constant 0 : index
    %c0_612 = arith.constant 0 : index
    %763 = vector.load %arg4[%c4_610, %c0_611, %c0_612] : memref<6x4x6xf32, #tpu.memory_space<vmem>>, vector<1x4x6xf32>
    %764 = vector.shape_cast %763 : vector<1x4x6xf32> to vector<4x6xf32>
    %765 = vector.extract_strided_slice %739 {offsets = [4, 0, 0], sizes = [1, 6, 128], strides = [1, 1, 1]} : vector<6x6x128xf32> to vector<1x6x128xf32>
    %766 = vector.shape_cast %765 : vector<1x6x128xf32> to vector<6x128xf32>
    %cst_613 = arith.constant dense<0.000000e+00> : vector<4x128xf32>
    %767 = tpu.matmul %764, %766, %cst_613 {dimension_numbers = #tpu.dot_dimension_numbers<[1], [0], [0], [1], [0, 0, 1, 1], [], []>} : vector<4x6xf32>, vector<6x128xf32>, vector<4x128xf32> -> vector<4x128xf32>
    %768 = arith.addf %762, %767 : vector<4x128xf32>
    %c5_614 = arith.constant 5 : index
    %c0_615 = arith.constant 0 : index
    %c0_616 = arith.constant 0 : index
    %769 = vector.load %arg4[%c5_614, %c0_615, %c0_616] : memref<6x4x6xf32, #tpu.memory_space<vmem>>, vector<1x4x6xf32>
    %770 = vector.shape_cast %769 : vector<1x4x6xf32> to vector<4x6xf32>
    %771 = vector.extract_strided_slice %739 {offsets = [5, 0, 0], sizes = [1, 6, 128], strides = [1, 1, 1]} : vector<6x6x128xf32> to vector<1x6x128xf32>
    %772 = vector.shape_cast %771 : vector<1x6x128xf32> to vector<6x128xf32>
    %cst_617 = arith.constant dense<0.000000e+00> : vector<4x128xf32>
    %773 = tpu.matmul %770, %772, %cst_617 {dimension_numbers = #tpu.dot_dimension_numbers<[1], [0], [0], [1], [0, 0, 1, 1], [], []>} : vector<4x6xf32>, vector<6x128xf32>, vector<4x128xf32> -> vector<4x128xf32>
    %774 = arith.addf %768, %773 : vector<4x128xf32>
    %c0_618 = arith.constant 0 : index
    %c0_619 = arith.constant 0 : index
    %775 = vector.load %arg5[%c0_618, %c0_619] : memref<4x1xf32, #tpu.memory_space<vmem>>, vector<4x1xf32>
    %776 = vector.broadcast %775 : vector<4x1xf32> to vector<4x128xf32>
    %777 = arith.addf %774, %776 : vector<4x128xf32>
    %cst_620 = arith.constant 0.000000e+00 : f32
    %778 = vector.broadcast %cst_620 : f32 to vector<4x128xf32>
    %779 = arith.maximumf %777, %778 : vector<4x128xf32>
    %c0_621 = arith.constant 0 : index
    %c0_622 = arith.constant 0 : index
    %780 = vector.load %arg6[%c0_621, %c0_622] : memref<4x4xf32, #tpu.memory_space<vmem>>, vector<4x4xf32>
    %cst_623 = arith.constant dense<0.000000e+00> : vector<4x128xf32>
    %781 = tpu.matmul %780, %779, %cst_623 {dimension_numbers = #tpu.dot_dimension_numbers<[1], [0], [0], [1], [0, 0, 1, 1], [], []>} : vector<4x4xf32>, vector<4x128xf32>, vector<4x128xf32> -> vector<4x128xf32>
    %c0_624 = arith.constant 0 : index
    %c0_625 = arith.constant 0 : index
    %782 = vector.load %arg7[%c0_624, %c0_625] : memref<4x1xf32, #tpu.memory_space<vmem>>, vector<4x1xf32>
    %783 = vector.broadcast %782 : vector<4x1xf32> to vector<4x128xf32>
    %784 = arith.addf %781, %783 : vector<4x128xf32>
    %785 = arith.addf %784, %779 : vector<4x128xf32>
    %cst_626 = arith.constant 0.000000e+00 : f32
    %786 = vector.broadcast %cst_626 : f32 to vector<4x128xf32>
    %787 = arith.maximumf %785, %786 : vector<4x128xf32>
    %c0_627 = arith.constant 0 : index
    %c0_628 = arith.constant 0 : index
    %788 = vector.load %arg8[%c0_627, %c0_628] : memref<4x4xf32, #tpu.memory_space<vmem>>, vector<4x4xf32>
    %cst_629 = arith.constant dense<0.000000e+00> : vector<4x128xf32>
    %789 = tpu.matmul %788, %787, %cst_629 {dimension_numbers = #tpu.dot_dimension_numbers<[1], [0], [0], [1], [0, 0, 1, 1], [], []>} : vector<4x4xf32>, vector<4x128xf32>, vector<4x128xf32> -> vector<4x128xf32>
    %c0_630 = arith.constant 0 : index
    %c0_631 = arith.constant 0 : index
    %790 = vector.load %arg9[%c0_630, %c0_631] : memref<4x1xf32, #tpu.memory_space<vmem>>, vector<4x1xf32>
    %791 = vector.broadcast %790 : vector<4x1xf32> to vector<4x128xf32>
    %792 = arith.addf %789, %791 : vector<4x128xf32>
    %793 = arith.addf %792, %787 : vector<4x128xf32>
    %cst_632 = arith.constant 0.000000e+00 : f32
    %794 = vector.broadcast %cst_632 : f32 to vector<4x128xf32>
    %795 = arith.maximumf %793, %794 : vector<4x128xf32>
    %c0_633 = arith.constant 0 : index
    %c0_634 = arith.constant 0 : index
    %796 = vector.load %arg10[%c0_633, %c0_634] : memref<10x4xf32, #tpu.memory_space<vmem>>, vector<10x4xf32>
    %cst_635 = arith.constant dense<0.000000e+00> : vector<10x128xf32>
    %797 = tpu.matmul %796, %795, %cst_635 {dimension_numbers = #tpu.dot_dimension_numbers<[1], [0], [0], [1], [0, 0, 1, 1], [], []>} : vector<10x4xf32>, vector<4x128xf32>, vector<10x128xf32> -> vector<10x128xf32>
    %c0_636 = arith.constant 0 : index
    %c0_637 = arith.constant 0 : index
    %798 = vector.load %arg11[%c0_636, %c0_637] : memref<10x1xf32, #tpu.memory_space<vmem>>, vector<10x1xf32>
    %799 = vector.broadcast %798 : vector<10x1xf32> to vector<10x128xf32>
    %800 = arith.addf %797, %799 : vector<10x128xf32>
    %c0_638 = arith.constant 0 : index
    %c0_639 = arith.constant 0 : index
    %801 = vector.load %arg12[%c0_638, %c0_639] : memref<10x128xf32, #tpu.memory_space<vmem>>, vector<10x128xf32>
    tpu.vector_store %arg12[%c0_638, %c0_639], %800 {strides = array<i32>} : memref<10x128xf32, #tpu.memory_space<vmem>>, vector<10x128xf32>,
    return
  }
  func.func @transform_0(%arg0: i32) -> (i32, i32, i32, i32) {
    %c0_i32 = arith.constant 0 : i32
    %c0_i32_0 = arith.constant 0 : i32
    %c0_i32_1 = arith.constant 0 : i32
    %c0_i32_2 = arith.constant 0 : i32
    return %c0_i32, %c0_i32_0, %c0_i32_1, %arg0 : i32, i32, i32, i32
  }
  func.func @transform_1(%arg0: i32) -> (i32, i32) {
    %c0_i32 = arith.constant 0 : i32
    %c0_i32_0 = arith.constant 0 : i32
    %c0_i32_1 = arith.constant 0 : i32
    return %c0_i32, %c0_i32_0 : i32, i32
  }
  func.func @transform_2(%arg0: i32) -> (i32, i32) {
    %c0_i32 = arith.constant 0 : i32
    %c0_i32_0 = arith.constant 0 : i32
    %c0_i32_1 = arith.constant 0 : i32
    return %c0_i32, %c0_i32_0 : i32, i32
  }
  func.func @transform_3(%arg0: i32) -> (i32, i32, i32) {
    %c0_i32 = arith.constant 0 : i32
    %c0_i32_0 = arith.constant 0 : i32
    %c0_i32_1 = arith.constant 0 : i32
    %c0_i32_2 = arith.constant 0 : i32
    return %c0_i32, %c0_i32_0, %c0_i32_1 : i32, i32, i32
  }
  func.func @transform_4(%arg0: i32) -> (i32, i32) {
    %c0_i32 = arith.constant 0 : i32
    %c0_i32_0 = arith.constant 0 : i32
    %c0_i32_1 = arith.constant 0 : i32
    return %c0_i32, %c0_i32_0 : i32, i32
  }
  func.func @transform_5(%arg0: i32) -> (i32, i32) {
    %c0_i32 = arith.constant 0 : i32
    %c0_i32_0 = arith.constant 0 : i32
    %c0_i32_1 = arith.constant 0 : i32
    return %c0_i32, %c0_i32_0 : i32, i32
  }
  func.func @transform_6(%arg0: i32) -> (i32, i32) {
    %c0_i32 = arith.constant 0 : i32
    %c0_i32_0 = arith.constant 0 : i32
    %c0_i32_1 = arith.constant 0 : i32
    return %c0_i32, %c0_i32_0 : i32, i32
  }
  func.func @transform_7(%arg0: i32) -> (i32, i32) {
    %c0_i32 = arith.constant 0 : i32
    %c0_i32_0 = arith.constant 0 : i32
    %c0_i32_1 = arith.constant 0 : i32
    return %c0_i32, %c0_i32_0 : i32, i32
  }
  func.func @transform_8(%arg0: i32) -> (i32, i32) {
    %c0_i32 = arith.constant 0 : i32
    %c0_i32_0 = arith.constant 0 : i32
    %c0_i32_1 = arith.constant 0 : i32
    return %c0_i32, %c0_i32_0 : i32, i32
  }
  func.func @transform_9(%arg0: i32) -> (i32, i32) {
    %c0_i32 = arith.constant 0 : i32
    %c0_i32_0 = arith.constant 0 : i32
    %c0_i32_1 = arith.constant 0 : i32
    return %c0_i32, %c0_i32_0 : i32, i32
  }
  func.func @transform_10(%arg0: i32) -> (i32, i32) {
    %c0_i32 = arith.constant 0 : i32
    %c0_i32_0 = arith.constant 0 : i32
    %c0_i32_1 = arith.constant 0 : i32
    return %c0_i32, %c0_i32_0 : i32, i32
  }
  func.func @transform_11(%arg0: i32) -> (i32, i32) {
    %c0_i32 = arith.constant 0 : i32
    %c0_i32_0 = arith.constant 0 : i32
    return %c0_i32, %arg0 : i32, i32
  }
}

</mosaic_0001>

<llo_original>
// kernel: cnn_forward.1
$region0: #{cnn_forward.1}
  #allocation0 [shape = 'u32[]', space=smem, size = 0x4, offset = 0x4, fixed_abs, tag = 'smem constant byte address 0x4 - core index']
  #allocation1 [shape = 'u32[144,128]{1,0:T(1,128)}', space=vmem, size = 0x12000, scoped, tag = 'internal scratch']
  #allocation2 [shape = 'f32[1,1]{1,0:T(1,128)S(6)}', space=smem, size = 0x200, scoped, tag = 'scoped memory for cnn_forward.1']
  %s0 = inlined_call_operand.vmem [shape: f32[16,7,7,128], index: 0, kind: input, shape index: {}]
  %s1 = inlined_call_operand.vmem [shape: f32[4,4], index: 1, kind: input, shape index: {}]
  %s2 = inlined_call_operand.<no memory space> [shape: f32[1,1], index: 2, kind: input, shape index: {}]
  %s3 = inlined_call_operand.vmem [shape: f32[6,4,6], index: 3, kind: input, shape index: {}]
  %s4 = inlined_call_operand.vmem [shape: f32[4,1], index: 4, kind: input, shape index: {}]
  %s5 = inlined_call_operand.vmem [shape: f32[4,4], index: 5, kind: input, shape index: {}]
  %s6 = inlined_call_operand.vmem [shape: f32[4,1], index: 6, kind: input, shape index: {}]
  %s7 = inlined_call_operand.vmem [shape: f32[4,4], index: 7, kind: input, shape index: {}]
  %s8 = inlined_call_operand.vmem [shape: f32[4,1], index: 8, kind: input, shape index: {}]
  %s9 = inlined_call_operand.vmem [shape: f32[10,4], index: 9, kind: input, shape index: {}]
  %s10 = inlined_call_operand.vmem [shape: f32[10,1], index: 10, kind: input, shape index: {}]
  %s11 = inlined_call_operand.vmem [shape: f32[10,128], index: 11, kind: output, shape index: {}]
  %s12 = sld [smem:[#allocation0]]
  $region58: #{cnn_forward.1} parent=0
    _
  %s14 = ssub.s32 1, %s12
  %s15 = scalar_select 0, %s14, %s12
  %16 = sst [smem:[#allocation2]] %s2
  $region1: #{cnn_forward.1} parent=0
    #allocation3 [shape = 'u8[2048]{0}', space=smem, size = 0x800, scoped, tag = 'input window, operand 1, single buffered']
    #allocation4 [shape = 's32[1]{0}', space=sflag, size = 0x4, scoped, tag = 'scoped memory for cnn_forward.1']
    %17 = vsyncpa [#allocation4], 0
    // Predicated region
    $region2: #{cnn_forward.1} parent=1 // pred_check
      _
    $region3: #{cnn_forward.1} parent=1 // pred_check_branch
      %19 = sbr.rel (0) target = $region5
    $region4: #{cnn_forward.1} parent=1 // pred_region
      _
    $region5: #{cnn_forward.1} parent=1 // pred_fallthru
      _
    // Predicated region
    $region6: #{cnn_forward.1} parent=1 // pred_check
      _
    $region7: #{cnn_forward.1} parent=1 // pred_check_branch
      %21 = sbr.rel (0) target = $region9
    $region8: #{cnn_forward.1} parent=1 // pred_region
      %s23 = ssub.s32 64, 64
      %24 = vsyncadd [#allocation4], %s23
      %s26 = sshll.u32 %s1, 4
      %s27 = int_to_ptr.vmem [resolvable:$true] %s26
      %29 = dma.vmem_to_smem %s27, 64, [#allocation3], [#allocation4]
    $region9: #{cnn_forward.1} parent=1 // pred_fallthru
      _
    // Predicated region
    $region10: #{cnn_forward.1} parent=1 // pred_check
      _
    $region11: #{cnn_forward.1} parent=1 // pred_check_branch
      %31 = sbr.rel (0) target = $region13
    $region12: #{cnn_forward.1} parent=1 // pred_region
      _
    $region13: #{cnn_forward.1} parent=1 // pred_fallthru
      _
    // Predicated region
    $region14: #{cnn_forward.1} parent=1 // pred_check
      _
    $region15: #{cnn_forward.1} parent=1 // pred_check_branch
      %33 = sbr.rel (0) target = $region17
    $region16: #{cnn_forward.1} parent=1 // pred_region
      _
    $region17: #{cnn_forward.1} parent=1 // pred_fallthru
      _
    // Predicated region
    $region18: #{cnn_forward.1} parent=1 // pred_check
      _
    $region19: #{cnn_forward.1} parent=1 // pred_check_branch
      %35 = sbr.rel (0) target = $region21
    $region20: #{cnn_forward.1} parent=1 // pred_region
      _
    $region21: #{cnn_forward.1} parent=1 // pred_fallthru
      _
    // Predicated region
    $region22: #{cnn_forward.1} parent=1 // pred_check
      _
    $region23: #{cnn_forward.1} parent=1 // pred_check_branch
      %37 = sbr.rel (0) target = $region25
    $region24: #{cnn_forward.1} parent=1 // pred_region
      _
    $region25: #{cnn_forward.1} parent=1 // pred_fallthru
      _
    // Predicated region
    $region26: #{cnn_forward.1} parent=1 // pred_check
      _
    $region27: #{cnn_forward.1} parent=1 // pred_check_branch
      %39 = sbr.rel (0) target = $region29
    $region28: #{cnn_forward.1} parent=1 // pred_region
      _
    $region29: #{cnn_forward.1} parent=1 // pred_fallthru
      _
    // Predicated region
    $region30: #{cnn_forward.1} parent=1 // pred_check
      _
    $region31: #{cnn_forward.1} parent=1 // pred_check_branch
      %41 = sbr.rel (0) target = $region33
    $region32: #{cnn_forward.1} parent=1 // pred_region
      _
    $region33: #{cnn_forward.1} parent=1 // pred_fallthru
      _
    // Predicated region
    $region34: #{cnn_forward.1} parent=1 // pred_check
      _
    $region35: #{cnn_forward.1} parent=1 // pred_check_branch
      %43 = sbr.rel (0) target = $region37
    $region36: #{cnn_forward.1} parent=1 // pred_region
      _
    $region37: #{cnn_forward.1} parent=1 // pred_fallthru
      _
    // Predicated region
    $region38: #{cnn_forward.1} parent=1 // pred_check
      _
    $region39: #{cnn_forward.1} parent=1 // pred_check_branch
      %45 = sbr.rel (0) target = $region41
    $region40: #{cnn_forward.1} parent=1 // pred_region
      _
    $region41: #{cnn_forward.1} parent=1 // pred_fallthru
      _
    // Predicated region
    $region42: #{cnn_forward.1} parent=1 // pred_check
      _
    $region43: #{cnn_forward.1} parent=1 // pred_check_branch
      %47 = sbr.rel (0) target = $region45
    $region44: #{cnn_forward.1} parent=1 // pred_region
      _
    $region45: #{cnn_forward.1} parent=1 // pred_fallthru
      _
    // Predicated region
    $region46: #{cnn_forward.1} parent=1 // pred_check
      _
    $region47: #{cnn_forward.1} parent=1 // pred_check_branch
      %49 = sbr.rel (0) target = $region49
    $region48: #{cnn_forward.1} parent=1 // pred_region
      %50 = dma.done [#allocation4], 64
    $region49: #{cnn_forward.1} parent=1 // pred_fallthru
      _
    %51 = sfence
    %s52 = sld [smem:[#allocation3]]
    %s53 = sld [smem:[#allocation3 + $0x1]]
    %s54 = sld [smem:[#allocation3 + $0x2]]
    %s55 = sld [smem:[#allocation3 + $0x3]]
    %s56 = sld [smem:[#allocation3 + $0x80]]
    %s57 = sld [smem:[#allocation3 + $0x81]]
    %s58 = sld [smem:[#allocation3 + $0x82]]
    %s59 = sld [smem:[#allocation3 + $0x83]]
    %s60 = sld [smem:[#allocation3 + $0x100]]
    %s61 = sld [smem:[#allocation3 + $0x101]]
    %s62 = sld [smem:[#allocation3 + $0x102]]
    %s63 = sld [smem:[#allocation3 + $0x103]]
    %s64 = sld [smem:[#allocation3 + $0x180]]
    %s65 = sld [smem:[#allocation3 + $0x181]]
    %s66 = sld [smem:[#allocation3 + $0x182]]
    %s67 = sld [smem:[#allocation3 + $0x183]]
    %v68 = vld [vmem:[%s0] sm:$0x3f]
    %v69 = vld [vmem:[%s0 + $0x8] sm:$0x3f]
    %v70 = vld [vmem:[%s0 + $0x10] sm:$0x3f]
    %v71 = vld [vmem:[%s0 + $0x18] sm:$0x3f]
    %v72 = vld [vmem:[%s0 + $0x20] sm:$0x3f]
    %v73 = vld [vmem:[%s0 + $0x28] sm:$0x3f]
    %v74 = vstv %s52
    %v75 = vmul.f32 %v68, %v74
    %v76 = vmul.f32 %v69, %v74
    %v77 = vmul.f32 %v70, %v74
    %v78 = vmul.f32 %v71, %v74
    %v79 = vmul.f32 %v72, %v74
    %v80 = vmul.f32 %v73, %v74
    %s81 = scalar_lea.vmem %s0, 56
    %v82 = vld [vmem:[%s81] sm:$0x3f]
    %v83 = vld [vmem:[%s81 + $0x8] sm:$0x3f]
    %v84 = vld [vmem:[%s81 + $0x10] sm:$0x3f]
    %v85 = vld [vmem:[%s81 + $0x18] sm:$0x3f]
    %v86 = vld [vmem:[%s81 + $0x20] sm:$0x3f]
    %v87 = vld [vmem:[%s81 + $0x28] sm:$0x3f]
    %v88 = vstv %s53
    %v89 = vmul.f32 %v82, %v88
    %v90 = vmul.f32 %v83, %v88
    %v91 = vmul.f32 %v84, %v88
    %v92 = vmul.f32 %v85, %v88
    %v93 = vmul.f32 %v86, %v88
    %v94 = vmul.f32 %v87, %v88
    %v95 = vadd.f32 %v75, %v89
    %v96 = vadd.f32 %v76, %v90
    %v97 = vadd.f32 %v77, %v91
    %v98 = vadd.f32 %v78, %v92
    %v99 = vadd.f32 %v79, %v93
    %v100 = vadd.f32 %v80, %v94
    %s101 = scalar_lea.vmem %s0, 112
    %v102 = vld [vmem:[%s101] sm:$0x3f]
    %v103 = vld [vmem:[%s101 + $0x8] sm:$0x3f]
    %v104 = vld [vmem:[%s101 + $0x10] sm:$0x3f]
    %v105 = vld [vmem:[%s101 + $0x18] sm:$0x3f]
    %v106 = vld [vmem:[%s101 + $0x20] sm:$0x3f]
    %v107 = vld [vmem:[%s101 + $0x28] sm:$0x3f]
    %v108 = vstv %s54
    %v109 = vmul.f32 %v102, %v108
    %v110 = vmul.f32 %v103, %v108
    %v111 = vmul.f32 %v104, %v108
    %v112 = vmul.f32 %v105, %v108
    %v113 = vmul.f32 %v106, %v108
    %v114 = vmul.f32 %v107, %v108
    %v115 = vadd.f32 %v95, %v109
    %v116 = vadd.f32 %v96, %v110
    %v117 = vadd.f32 %v97, %v111
    %v118 = vadd.f32 %v98, %v112
    %v119 = vadd.f32 %v99, %v113
    %v120 = vadd.f32 %v100, %v114
    %s121 = scalar_lea.vmem %s0, 168
    %v122 = vld [vmem:[%s121] sm:$0x3f]
    %v123 = vld [vmem:[%s121 + $0x8] sm:$0x3f]
    %v124 = vld [vmem:[%s121 + $0x10] sm:$0x3f]
    %v125 = vld [vmem:[%s121 + $0x18] sm:$0x3f]
    %v126 = vld [vmem:[%s121 + $0x20] sm:$0x3f]
    %v127 = vld [vmem:[%s121 + $0x28] sm:$0x3f]
    %v128 = vstv %s55
    %v129 = vmul.f32 %v122, %v128
    %v130 = vmul.f32 %v123, %v128
    %v131 = vmul.f32 %v124, %v128
    %v132 = vmul.f32 %v125, %v128
    %v133 = vmul.f32 %v126, %v128
    %v134 = vmul.f32 %v127, %v128
    %v135 = vadd.f32 %v115, %v129
    %v136 = vadd.f32 %v116, %v130
    %v137 = vadd.f32 %v117, %v131
    %v138 = vadd.f32 %v118, %v132
    %v139 = vadd.f32 %v119, %v133
    %v140 = vadd.f32 %v120, %v134
    %s141 = scalar_lea.vmem %s0, 224
    %v142 = vld [vmem:[%s141] sm:$0x3f]
    %v143 = vld [vmem:[%s141 + $0x8] sm:$0x3f]
    %v144 = vld [vmem:[%s141 + $0x10] sm:$0x3f]
    %v145 = vld [vmem:[%s141 + $0x18] sm:$0x3f]
    %v146 = vld [vmem:[%s141 + $0x20] sm:$0x3f]
    %v147 = vld [vmem:[%s141 + $0x28] sm:$0x3f]
    %v148 = vstv %s56
    %v149 = vmul.f32 %v142, %v148
    %v150 = vmul.f32 %v143, %v148
    %v151 = vmul.f32 %v144, %v148
    %v152 = vmul.f32 %v145, %v148
    %v153 = vmul.f32 %v146, %v148
    %v154 = vmul.f32 %v147, %v148
    %v155 = vadd.f32 %v135, %v149
    %v156 = vadd.f32 %v136, %v150
    %v157 = vadd.f32 %v137, %v151
    %v158 = vadd.f32 %v138, %v152
    %v159 = vadd.f32 %v139, %v153
    %v160 = vadd.f32 %v140, %v154
    %s161 = scalar_lea.vmem %s0, 280
    %v162 = vld [vmem:[%s161] sm:$0x3f]
    %v163 = vld [vmem:[%s161 + $0x8] sm:$0x3f]
    %v164 = vld [vmem:[%s161 + $0x10] sm:$0x3f]
    %v165 = vld [vmem:[%s161 + $0x18] sm:$0x3f]
    %v166 = vld [vmem:[%s161 + $0x20] sm:$0x3f]
    %v167 = vld [vmem:[%s161 + $0x28] sm:$0x3f]
    %v168 = vstv %s57
    %v169 = vmul.f32 %v162, %v168
    %v170 = vmul.f32 %v163, %v168
    %v171 = vmul.f32 %v164, %v168
    %v172 = vmul.f32 %v165, %v168
    %v173 = vmul.f32 %v166, %v168
    %v174 = vmul.f32 %v167, %v168
    %v175 = vadd.f32 %v155, %v169
    %v176 = vadd.f32 %v156, %v170
    %v177 = vadd.f32 %v157, %v171
    %v178 = vadd.f32 %v158, %v172
    %v179 = vadd.f32 %v159, %v173
    %v180 = vadd.f32 %v160, %v174
    %s181 = scalar_lea.vmem %s0, 336
    %v182 = vld [vmem:[%s181] sm:$0x3f]
    %v183 = vld [vmem:[%s181 + $0x8] sm:$0x3f]
    %v184 = vld [vmem:[%s181 + $0x10] sm:$0x3f]
    %v185 = vld [vmem:[%s181 + $0x18] sm:$0x3f]
    %v186 = vld [vmem:[%s181 + $0x20] sm:$0x3f]
    %v187 = vld [vmem:[%s181 + $0x28] sm:$0x3f]
    %v188 = vstv %s58
    %v189 = vmul.f32 %v182, %v188
    %v190 = vmul.f32 %v183, %v188
    %v191 = vmul.f32 %v184, %v188
    %v192 = vmul.f32 %v185, %v188
    %v193 = vmul.f32 %v186, %v188
    %v194 = vmul.f32 %v187, %v188
    %v195 = vadd.f32 %v175, %v189
    %v196 = vadd.f32 %v176, %v190
    %v197 = vadd.f32 %v177, %v191
    %v198 = vadd.f32 %v178, %v192
    %v199 = vadd.f32 %v179, %v193
    %v200 = vadd.f32 %v180, %v194
    %s201 = scalar_lea.vmem %s0, 392
    %v202 = vld [vmem:[%s201] sm:$0x3f]
    %v203 = vld [vmem:[%s201 + $0x8] sm:$0x3f]
    %v204 = vld [vmem:[%s201 + $0x10] sm:$0x3f]
    %v205 = vld [vmem:[%s201 + $0x18] sm:$0x3f]
    %v206 = vld [vmem:[%s201 + $0x20] sm:$0x3f]
    %v207 = vld [vmem:[%s201 + $0x28] sm:$0x3f]
    %v208 = vstv %s59
    %v209 = vmul.f32 %v202, %v208
    %v210 = vmul.f32 %v203, %v208
    %v211 = vmul.f32 %v204, %v208
    %v212 = vmul.f32 %v205, %v208
    %v213 = vmul.f32 %v206, %v208
    %v214 = vmul.f32 %v207, %v208
    %v215 = vadd.f32 %v195, %v209
    %v216 = vadd.f32 %v196, %v210
    %v217 = vadd.f32 %v197, %v211
    %v218 = vadd.f32 %v198, %v212
    %v219 = vadd.f32 %v199, %v213
    %v220 = vadd.f32 %v200, %v214
    %s221 = scalar_lea.vmem %s0, 448
    %v222 = vld [vmem:[%s221] sm:$0x3f]
    %v223 = vld [vmem:[%s221 + $0x8] sm:$0x3f]
    %v224 = vld [vmem:[%s221 + $0x10] sm:$0x3f]
    %v225 = vld [vmem:[%s221 + $0x18] sm:$0x3f]
    %v226 = vld [vmem:[%s221 + $0x20] sm:$0x3f]
    %v227 = vld [vmem:[%s221 + $0x28] sm:$0x3f]
    %v228 = vstv %s60
    %v229 = vmul.f32 %v222, %v228
    %v230 = vmul.f32 %v223, %v228
    %v231 = vmul.f32 %v224, %v228
    %v232 = vmul.f32 %v225, %v228
    %v233 = vmul.f32 %v226, %v228
    %v234 = vmul.f32 %v227, %v228
    %v235 = vadd.f32 %v215, %v229
    %v236 = vadd.f32 %v216, %v230
    %v237 = vadd.f32 %v217, %v231
    %v238 = vadd.f32 %v218, %v232
    %v239 = vadd.f32 %v219, %v233
    %v240 = vadd.f32 %v220, %v234
    %s241 = scalar_lea.vmem %s0, 504
    %v242 = vld [vmem:[%s241] sm:$0x3f]
    %v243 = vld [vmem:[%s241 + $0x8] sm:$0x3f]
    %v244 = vld [vmem:[%s241 + $0x10] sm:$0x3f]
    %v245 = vld [vmem:[%s241 + $0x18] sm:$0x3f]
    %v246 = vld [vmem:[%s241 + $0x20] sm:$0x3f]
    %v247 = vld [vmem:[%s241 + $0x28] sm:$0x3f]
    %v248 = vstv %s61
    %v249 = vmul.f32 %v242, %v248
    %v250 = vmul.f32 %v243, %v248
    %v251 = vmul.f32 %v244, %v248
    %v252 = vmul.f32 %v245, %v248
    %v253 = vmul.f32 %v246, %v248
    %v254 = vmul.f32 %v247, %v248
    %v255 = vadd.f32 %v235, %v249
    %v256 = vadd.f32 %v236, %v250
    %v257 = vadd.f32 %v237, %v251
    %v258 = vadd.f32 %v238, %v252
    %v259 = vadd.f32 %v239, %v253
    %v260 = vadd.f32 %v240, %v254
    %s261 = scalar_lea.vmem %s0, 560
    %v262 = vld [vmem:[%s261] sm:$0x3f]
    %v263 = vld [vmem:[%s261 + $0x8] sm:$0x3f]
    %v264 = vld [vmem:[%s261 + $0x10] sm:$0x3f]
    %v265 = vld [vmem:[%s261 + $0x18] sm:$0x3f]
    %v266 = vld [vmem:[%s261 + $0x20] sm:$0x3f]
    %v267 = vld [vmem:[%s261 + $0x28] sm:$0x3f]
    %v268 = vstv %s62
    %v269 = vmul.f32 %v262, %v268
    %v270 = vmul.f32 %v263, %v268
    %v271 = vmul.f32 %v264, %v268
    %v272 = vmul.f32 %v265, %v268
    %v273 = vmul.f32 %v266, %v268
    %v274 = vmul.f32 %v267, %v268
    %v275 = vadd.f32 %v255, %v269
    %v276 = vadd.f32 %v256, %v270
    %v277 = vadd.f32 %v257, %v271
    %v278 = vadd.f32 %v258, %v272
    %v279 = vadd.f32 %v259, %v273
    %v280 = vadd.f32 %v260, %v274
    %s281 = scalar_lea.vmem %s0, 616
    %v282 = vld [vmem:[%s281] sm:$0x3f]
    %v283 = vld [vmem:[%s281 + $0x8] sm:$0x3f]
    %v284 = vld [vmem:[%s281 + $0x10] sm:$0x3f]
    %v285 = vld [vmem:[%s281 + $0x18] sm:$0x3f]
    %v286 = vld [vmem:[%s281 + $0x20] sm:$0x3f]
    %v287 = vld [vmem:[%s281 + $0x28] sm:$0x3f]
    %v288 = vstv %s63
    %v289 = vmul.f32 %v282, %v288
    %v290 = vmul.f32 %v283, %v288
    %v291 = vmul.f32 %v284, %v288
    %v292 = vmul.f32 %v285, %v288
    %v293 = vmul.f32 %v286, %v288
    %v294 = vmul.f32 %v287, %v288
    %v295 = vadd.f32 %v275, %v289
    %v296 = vadd.f32 %v276, %v290
    %v297 = vadd.f32 %v277, %v291
    %v298 = vadd.f32 %v278, %v292
    %v299 = vadd.f32 %v279, %v293
    %v300 = vadd.f32 %v280, %v294
    %s301 = scalar_lea.vmem %s0, 672
    %v302 = vld [vmem:[%s301] sm:$0x3f]
    %v303 = vld [vmem:[%s301 + $0x8] sm:$0x3f]
    %v304 = vld [vmem:[%s301 + $0x10] sm:$0x3f]
    %v305 = vld [vmem:[%s301 + $0x18] sm:$0x3f]
    %v306 = vld [vmem:[%s301 + $0x20] sm:$0x3f]
    %v307 = vld [vmem:[%s301 + $0x28] sm:$0x3f]
    %v308 = vstv %s64
    %v309 = vmul.f32 %v302, %v308
    %v310 = vmul.f32 %v303, %v308
    %v311 = vmul.f32 %v304, %v308
    %v312 = vmul.f32 %v305, %v308
    %v313 = vmul.f32 %v306, %v308
    %v314 = vmul.f32 %v307, %v308
    %v315 = vadd.f32 %v295, %v309
    %v316 = vadd.f32 %v296, %v310
    %v317 = vadd.f32 %v297, %v311
    %v318 = vadd.f32 %v298, %v312
    %v319 = vadd.f32 %v299, %v313
    %v320 = vadd.f32 %v300, %v314
    %s321 = scalar_lea.vmem %s0, 728
    %v322 = vld [vmem:[%s321] sm:$0x3f]
    %v323 = vld [vmem:[%s321 + $0x8] sm:$0x3f]
    %v324 = vld [vmem:[%s321 + $0x10] sm:$0x3f]
    %v325 = vld [vmem:[%s321 + $0x18] sm:$0x3f]
    %v326 = vld [vmem:[%s321 + $0x20] sm:$0x3f]
    %v327 = vld [vmem:[%s321 + $0x28] sm:$0x3f]
    %v328 = vstv %s65
    %v329 = vmul.f32 %v322, %v328
    %v330 = vmul.f32 %v323, %v328
    %v331 = vmul.f32 %v324, %v328
    %v332 = vmul.f32 %v325, %v328
    %v333 = vmul.f32 %v326, %v328
    %v334 = vmul.f32 %v327, %v328
    %v335 = vadd.f32 %v315, %v329
    %v336 = vadd.f32 %v316, %v330
    %v337 = vadd.f32 %v317, %v331
    %v338 = vadd.f32 %v318, %v332
    %v339 = vadd.f32 %v319, %v333
    %v340 = vadd.f32 %v320, %v334
    %s341 = scalar_lea.vmem %s0, 784
    %v342 = vld [vmem:[%s341] sm:$0x3f]
    %v343 = vld [vmem:[%s341 + $0x8] sm:$0x3f]
    %v344 = vld [vmem:[%s341 + $0x10] sm:$0x3f]
    %v345 = vld [vmem:[%s341 + $0x18] sm:$0x3f]
    %v346 = vld [vmem:[%s341 + $0x20] sm:$0x3f]
    %v347 = vld [vmem:[%s341 + $0x28] sm:$0x3f]
    %v348 = vstv %s66
    %v349 = vmul.f32 %v342, %v348
    %v350 = vmul.f32 %v343, %v348
    %v351 = vmul.f32 %v344, %v348
    %v352 = vmul.f32 %v345, %v348
    %v353 = vmul.f32 %v346, %v348
    %v354 = vmul.f32 %v347, %v348
    %v355 = vadd.f32 %v335, %v349
    %v356 = vadd.f32 %v336, %v350
    %v357 = vadd.f32 %v337, %v351
    %v358 = vadd.f32 %v338, %v352
    %v359 = vadd.f32 %v339, %v353
    %v360 = vadd.f32 %v340, %v354
    %s361 = scalar_lea.vmem %s0, 840
    %v362 = vld [vmem:[%s361] sm:$0x3f]
    %v363 = vld [vmem:[%s361 + $0x8] sm:$0x3f]
    %v364 = vld [vmem:[%s361 + $0x10] sm:$0x3f]
    %v365 = vld [vmem:[%s361 + $0x18] sm:$0x3f]
    %v366 = vld [vmem:[%s361 + $0x20] sm:$0x3f]
    %v367 = vld [vmem:[%s361 + $0x28] sm:$0x3f]
    %v368 = vstv %s67
    %v369 = vmul.f32 %v362, %v368
    %v370 = vmul.f32 %v363, %v368
    %v371 = vmul.f32 %v364, %v368
    %v372 = vmul.f32 %v365, %v368
    %v373 = vmul.f32 %v366, %v368
    %v374 = vmul.f32 %v367, %v368
    %v375 = vadd.f32 %v355, %v369
    %v376 = vadd.f32 %v356, %v370
    %v377 = vadd.f32 %v357, %v371
    %v378 = vadd.f32 %v358, %v372
    %v379 = vadd.f32 %v359, %v373
    %v380 = vadd.f32 %v360, %v374
    %v381 = vmul.f32 %v102, %v74
    %v382 = vmul.f32 %v103, %v74
    %v383 = vmul.f32 %v104, %v74
    %v384 = vmul.f32 %v105, %v74
    %v385 = vmul.f32 %v106, %v74
    %v386 = vmul.f32 %v107, %v74
    %v387 = vmul.f32 %v122, %v88
    %v388 = vmul.f32 %v123, %v88
    %v389 = vmul.f32 %v124, %v88
    %v390 = vmul.f32 %v125, %v88
    %v391 = vmul.f32 %v126, %v88
    %v392 = vmul.f32 %v127, %v88
    %v393 = vadd.f32 %v381, %v387
    %v394 = vadd.f32 %v382, %v388
    %v395 = vadd.f32 %v383, %v389
    %v396 = vadd.f32 %v384, %v390
    %v397 = vadd.f32 %v385, %v391
    %v398 = vadd.f32 %v386, %v392
    %v399 = vld [vmem:[%s0 + $0x1] sm:$0x3f]
    %v400 = vld [vmem:[%s0 + $0x9] sm:$0x3f]
    %v401 = vld [vmem:[%s0 + $0x11] sm:$0x3f]
    %v402 = vld [vmem:[%s0 + $0x19] sm:$0x3f]
    %v403 = vld [vmem:[%s0 + $0x21] sm:$0x3f]
    %v404 = vld [vmem:[%s0 + $0x29] sm:$0x3f]
    %v405 = vmul.f32 %v399, %v108
    %v406 = vmul.f32 %v400, %v108
    %v407 = vmul.f32 %v401, %v108
    %v408 = vmul.f32 %v402, %v108
    %v409 = vmul.f32 %v403, %v108
    %v410 = vmul.f32 %v404, %v108
    %v411 = vadd.f32 %v393, %v405
    %v412 = vadd.f32 %v394, %v406
    %v413 = vadd.f32 %v395, %v407
    %v414 = vadd.f32 %v396, %v408
    %v415 = vadd.f32 %v397, %v409
    %v416 = vadd.f32 %v398, %v410
    %v417 = vld [vmem:[%s81 + $0x1] sm:$0x3f]
    %v418 = vld [vmem:[%s81 + $0x9] sm:$0x3f]
    %v419 = vld [vmem:[%s81 + $0x11] sm:$0x3f]
    %v420 = vld [vmem:[%s81 + $0x19] sm:$0x3f]
    %v421 = vld [vmem:[%s81 + $0x21] sm:$0x3f]
    %v422 = vld [vmem:[%s81 + $0x29] sm:$0x3f]
    %v423 = vmul.f32 %v417, %v128
    %v424 = vmul.f32 %v418, %v128
    %v425 = vmul.f32 %v419, %v128
    %v426 = vmul.f32 %v420, %v128
    %v427 = vmul.f32 %v421, %v128
    %v428 = vmul.f32 %v422, %v128
    %v429 = vadd.f32 %v411, %v423
    %v430 = vadd.f32 %v412, %v424
    %v431 = vadd.f32 %v413, %v425
    %v432 = vadd.f32 %v414, %v426
    %v433 = vadd.f32 %v415, %v427
    %v434 = vadd.f32 %v416, %v428
    %v435 = vmul.f32 %v182, %v148
    %v436 = vmul.f32 %v183, %v148
    %v437 = vmul.f32 %v184, %v148
    %v438 = vmul.f32 %v185, %v148
    %v439 = vmul.f32 %v186, %v148
    %v440 = vmul.f32 %v187, %v148
    %v441 = vadd.f32 %v429, %v435
    %v442 = vadd.f32 %v430, %v436
    %v443 = vadd.f32 %v431, %v437
    %v444 = vadd.f32 %v432, %v438
    %v445 = vadd.f32 %v433, %v439
    %v446 = vadd.f32 %v434, %v440
    %v447 = vmul.f32 %v202, %v168
    %v448 = vmul.f32 %v203, %v168
    %v449 = vmul.f32 %v204, %v168
    %v450 = vmul.f32 %v205, %v168
    %v451 = vmul.f32 %v206, %v168
    %v452 = vmul.f32 %v207, %v168
    %v453 = vadd.f32 %v441, %v447
    %v454 = vadd.f32 %v442, %v448
    %v455 = vadd.f32 %v443, %v449
    %v456 = vadd.f32 %v444, %v450
    %v457 = vadd.f32 %v445, %v451
    %v458 = vadd.f32 %v446, %v452
    %v459 = vld [vmem:[%s141 + $0x1] sm:$0x3f]
    %v460 = vld [vmem:[%s141 + $0x9] sm:$0x3f]
    %v461 = vld [vmem:[%s141 + $0x11] sm:$0x3f]
    %v462 = vld [vmem:[%s141 + $0x19] sm:$0x3f]
    %v463 = vld [vmem:[%s141 + $0x21] sm:$0x3f]
    %v464 = vld [vmem:[%s141 + $0x29] sm:$0x3f]
    %v465 = vmul.f32 %v459, %v188
    %v466 = vmul.f32 %v460, %v188
    %v467 = vmul.f32 %v461, %v188
    %v468 = vmul.f32 %v462, %v188
    %v469 = vmul.f32 %v463, %v188
    %v470 = vmul.f32 %v464, %v188
    %v471 = vadd.f32 %v453, %v465
    %v472 = vadd.f32 %v454, %v466
    %v473 = vadd.f32 %v455, %v467
    %v474 = vadd.f32 %v456, %v468
    %v475 = vadd.f32 %v457, %v469
    %v476 = vadd.f32 %v458, %v470
    %v477 = vld [vmem:[%s161 + $0x1] sm:$0x3f]
    %v478 = vld [vmem:[%s161 + $0x9] sm:$0x3f]
    %v479 = vld [vmem:[%s161 + $0x11] sm:$0x3f]
    %v480 = vld [vmem:[%s161 + $0x19] sm:$0x3f]
    %v481 = vld [vmem:[%s161 + $0x21] sm:$0x3f]
    %v482 = vld [vmem:[%s161 + $0x29] sm:$0x3f]
    %v483 = vmul.f32 %v477, %v208
    %v484 = vmul.f32 %v478, %v208
    %v485 = vmul.f32 %v479, %v208
    %v486 = vmul.f32 %v480, %v208
    %v487 = vmul.f32 %v481, %v208
    %v488 = vmul.f32 %v482, %v208
    %v489 = vadd.f32 %v471, %v483
    %v490 = vadd.f32 %v472, %v484
    %v491 = vadd.f32 %v473, %v485
    %v492 = vadd.f32 %v474, %v486
    %v493 = vadd.f32 %v475, %v487
    %v494 = vadd.f32 %v476, %v488
    %v495 = vmul.f32 %v262, %v228
    %v496 = vmul.f32 %v263, %v228
    %v497 = vmul.f32 %v264, %v228
    %v498 = vmul.f32 %v265, %v228
    %v499 = vmul.f32 %v266, %v228
    %v500 = vmul.f32 %v267, %v228
    %v501 = vadd.f32 %v489, %v495
    %v502 = vadd.f32 %v490, %v496
    %v503 = vadd.f32 %v491, %v497
    %v504 = vadd.f32 %v492, %v498
    %v505 = vadd.f32 %v493, %v499
    %v506 = vadd.f32 %v494, %v500
    %v507 = vmul.f32 %v282, %v248
    %v508 = vmul.f32 %v283, %v248
    %v509 = vmul.f32 %v284, %v248
    %v510 = vmul.f32 %v285, %v248
    %v511 = vmul.f32 %v286, %v248
    %v512 = vmul.f32 %v287, %v248
    %v513 = vadd.f32 %v501, %v507
    %v514 = vadd.f32 %v502, %v508
    %v515 = vadd.f32 %v503, %v509
    %v516 = vadd.f32 %v504, %v510
    %v517 = vadd.f32 %v505, %v511
    %v518 = vadd.f32 %v506, %v512
    %v519 = vld [vmem:[%s221 + $0x1] sm:$0x3f]
    %v520 = vld [vmem:[%s221 + $0x9] sm:$0x3f]
    %v521 = vld [vmem:[%s221 + $0x11] sm:$0x3f]
    %v522 = vld [vmem:[%s221 + $0x19] sm:$0x3f]
    %v523 = vld [vmem:[%s221 + $0x21] sm:$0x3f]
    %v524 = vld [vmem:[%s221 + $0x29] sm:$0x3f]
    %v525 = vmul.f32 %v519, %v268
    %v526 = vmul.f32 %v520, %v268
    %v527 = vmul.f32 %v521, %v268
    %v528 = vmul.f32 %v522, %v268
    %v529 = vmul.f32 %v523, %v268
    %v530 = vmul.f32 %v524, %v268
    %v531 = vadd.f32 %v513, %v525
    %v532 = vadd.f32 %v514, %v526
    %v533 = vadd.f32 %v515, %v527
    %v534 = vadd.f32 %v516, %v528
    %v535 = vadd.f32 %v517, %v529
    %v536 = vadd.f32 %v518, %v530
    %v537 = vld [vmem:[%s241 + $0x1] sm:$0x3f]
    %v538 = vld [vmem:[%s241 + $0x9] sm:$0x3f]
    %v539 = vld [vmem:[%s241 + $0x11] sm:$0x3f]
    %v540 = vld [vmem:[%s241 + $0x19] sm:$0x3f]
    %v541 = vld [vmem:[%s241 + $0x21] sm:$0x3f]
    %v542 = vld [vmem:[%s241 + $0x29] sm:$0x3f]
    %v543 = vmul.f32 %v537, %v288
    %v544 = vmul.f32 %v538, %v288
    %v545 = vmul.f32 %v539, %v288
    %v546 = vmul.f32 %v540, %v288
    %v547 = vmul.f32 %v541, %v288
    %v548 = vmul.f32 %v542, %v288
    %v549 = vadd.f32 %v531, %v543
    %v550 = vadd.f32 %v532, %v544
    %v551 = vadd.f32 %v533, %v545
    %v552 = vadd.f32 %v534, %v546
    %v553 = vadd.f32 %v535, %v547
    %v554 = vadd.f32 %v536, %v548
    %v555 = vmul.f32 %v342, %v308
    %v556 = vmul.f32 %v343, %v308
    %v557 = vmul.f32 %v344, %v308
    %v558 = vmul.f32 %v345, %v308
    %v559 = vmul.f32 %v346, %v308
    %v560 = vmul.f32 %v347, %v308
    %v561 = vadd.f32 %v549, %v555
    %v562 = vadd.f32 %v550, %v556
    %v563 = vadd.f32 %v551, %v557
    %v564 = vadd.f32 %v552, %v558
    %v565 = vadd.f32 %v553, %v559
    %v566 = vadd.f32 %v554, %v560
    %v567 = vmul.f32 %v362, %v328
    %v568 = vmul.f32 %v363, %v328
    %v569 = vmul.f32 %v364, %v328
    %v570 = vmul.f32 %v365, %v328
    %v571 = vmul.f32 %v366, %v328
    %v572 = vmul.f32 %v367, %v328
    %v573 = vadd.f32 %v561, %v567
    %v574 = vadd.f32 %v562, %v568
    %v575 = vadd.f32 %v563, %v569
    %v576 = vadd.f32 %v564, %v570
    %v577 = vadd.f32 %v565, %v571
    %v578 = vadd.f32 %v566, %v572
    %v579 = vld [vmem:[%s301 + $0x1] sm:$0x3f]
    %v580 = vld [vmem:[%s301 + $0x9] sm:$0x3f]
    %v581 = vld [vmem:[%s301 + $0x11] sm:$0x3f]
    %v582 = vld [vmem:[%s301 + $0x19] sm:$0x3f]
    %v583 = vld [vmem:[%s301 + $0x21] sm:$0x3f]
    %v584 = vld [vmem:[%s301 + $0x29] sm:$0x3f]
    %v585 = vmul.f32 %v579, %v348
    %v586 = vmul.f32 %v580, %v348
    %v587 = vmul.f32 %v581, %v348
    %v588 = vmul.f32 %v582, %v348
    %v589 = vmul.f32 %v583, %v348
    %v590 = vmul.f32 %v584, %v348
    %v591 = vadd.f32 %v573, %v585
    %v592 = vadd.f32 %v574, %v586
    %v593 = vadd.f32 %v575, %v587
    %v594 = vadd.f32 %v576, %v588
    %v595 = vadd.f32 %v577, %v589
    %v596 = vadd.f32 %v578, %v590
    %v597 = vld [vmem:[%s321 + $0x1] sm:$0x3f]
    %v598 = vld [vmem:[%s321 + $0x9] sm:$0x3f]
    %v599 = vld [vmem:[%s321 + $0x11] sm:$0x3f]
    %v600 = vld [vmem:[%s321 + $0x19] sm:$0x3f]
    %v601 = vld [vmem:[%s321 + $0x21] sm:$0x3f]
    %v602 = vld [vmem:[%s321 + $0x29] sm:$0x3f]
    %v603 = vmul.f32 %v597, %v368
    %v604 = vmul.f32 %v598, %v368
    %v605 = vmul.f32 %v599, %v368
    %v606 = vmul.f32 %v600, %v368
    %v607 = vmul.f32 %v601, %v368
    %v608 = vmul.f32 %v602, %v368
    %v609 = vadd.f32 %v591, %v603
    %v610 = vadd.f32 %v592, %v604
    %v611 = vadd.f32 %v593, %v605
    %v612 = vadd.f32 %v594, %v606
    %v613 = vadd.f32 %v595, %v607
    %v614 = vadd.f32 %v596, %v608
    %v615 = vmax.f32 %v375, %v609
    %v616 = vmax.f32 %v376, %v610
    %v617 = vmax.f32 %v377, %v611
    %v618 = vmax.f32 %v378, %v612
    %v619 = vmax.f32 %v379, %v613
    %v620 = vmax.f32 %v380, %v614
    %v621 = vmul.f32 %v399, %v74
    %v622 = vmul.f32 %v400, %v74
    %v623 = vmul.f32 %v401, %v74
    %v624 = vmul.f32 %v402, %v74
    %v625 = vmul.f32 %v403, %v74
    %v626 = vmul.f32 %v404, %v74
    %v627 = vmul.f32 %v417, %v88
    %v628 = vmul.f32 %v418, %v88
    %v629 = vmul.f32 %v419, %v88
    %v630 = vmul.f32 %v420, %v88
    %v631 = vmul.f32 %v421, %v88
    %v632 = vmul.f32 %v422, %v88
    %v633 = vadd.f32 %v621, %v627
    %v634 = vadd.f32 %v622, %v628
    %v635 = vadd.f32 %v623, %v629
    %v636 = vadd.f32 %v624, %v630
    %v637 = vadd.f32 %v625, %v631
    %v638 = vadd.f32 %v626, %v632
    %v639 = vld [vmem:[%s101 + $0x1] sm:$0x3f]
    %v640 = vld [vmem:[%s101 + $0x9] sm:$0x3f]
    %v641 = vld [vmem:[%s101 + $0x11] sm:$0x3f]
    %v642 = vld [vmem:[%s101 + $0x19] sm:$0x3f]
    %v643 = vld [vmem:[%s101 + $0x21] sm:$0x3f]
    %v644 = vld [vmem:[%s101 + $0x29] sm:$0x3f]
    %v645 = vmul.f32 %v639, %v108
    %v646 = vmul.f32 %v640, %v108
    %v647 = vmul.f32 %v641, %v108
    %v648 = vmul.f32 %v642, %v108
    %v649 = vmul.f32 %v643, %v108
    %v650 = vmul.f32 %v644, %v108
    %v651 = vadd.f32 %v633, %v645
    %v652 = vadd.f32 %v634, %v646
    %v653 = vadd.f32 %v635, %v647
    %v654 = vadd.f32 %v636, %v648
    %v655 = vadd.f32 %v637, %v649
    %v656 = vadd.f32 %v638, %v650
    %v657 = vld [vmem:[%s121 + $0x1] sm:$0x3f]
    %v658 = vld [vmem:[%s121 + $0x9] sm:$0x3f]
    %v659 = vld [vmem:[%s121 + $0x11] sm:$0x3f]
    %v660 = vld [vmem:[%s121 + $0x19] sm:$0x3f]
    %v661 = vld [vmem:[%s121 + $0x21] sm:$0x3f]
    %v662 = vld [vmem:[%s121 + $0x29] sm:$0x3f]
    %v663 = vmul.f32 %v657, %v128
    %v664 = vmul.f32 %v658, %v128
    %v665 = vmul.f32 %v659, %v128
    %v666 = vmul.f32 %v660, %v128
    %v667 = vmul.f32 %v661, %v128
    %v668 = vmul.f32 %v662, %v128
    %v669 = vadd.f32 %v651, %v663
    %v670 = vadd.f32 %v652, %v664
    %v671 = vadd.f32 %v653, %v665
    %v672 = vadd.f32 %v654, %v666
    %v673 = vadd.f32 %v655, %v667
    %v674 = vadd.f32 %v656, %v668
    %v675 = vmul.f32 %v459, %v148
    %v676 = vmul.f32 %v460, %v148
    %v677 = vmul.f32 %v461, %v148
    %v678 = vmul.f32 %v462, %v148
    %v679 = vmul.f32 %v463, %v148
    %v680 = vmul.f32 %v464, %v148
    %v681 = vadd.f32 %v669, %v675
    %v682 = vadd.f32 %v670, %v676
    %v683 = vadd.f32 %v671, %v677
    %v684 = vadd.f32 %v672, %v678
    %v685 = vadd.f32 %v673, %v679
    %v686 = vadd.f32 %v674, %v680
    %v687 = vmul.f32 %v477, %v168
    %v688 = vmul.f32 %v478, %v168
    %v689 = vmul.f32 %v479, %v168
    %v690 = vmul.f32 %v480, %v168
    %v691 = vmul.f32 %v481, %v168
    %v692 = vmul.f32 %v482, %v168
    %v693 = vadd.f32 %v681, %v687
    %v694 = vadd.f32 %v682, %v688
    %v695 = vadd.f32 %v683, %v689
    %v696 = vadd.f32 %v684, %v690
    %v697 = vadd.f32 %v685, %v691
    %v698 = vadd.f32 %v686, %v692
    %v699 = vld [vmem:[%s181 + $0x1] sm:$0x3f]
    %v700 = vld [vmem:[%s181 + $0x9] sm:$0x3f]
    %v701 = vld [vmem:[%s181 + $0x11] sm:$0x3f]
    %v702 = vld [vmem:[%s181 + $0x19] sm:$0x3f]
    %v703 = vld [vmem:[%s181 + $0x21] sm:$0x3f]
    %v704 = vld [vmem:[%s181 + $0x29] sm:$0x3f]
    %v705 = vmul.f32 %v699, %v188
    %v706 = vmul.f32 %v700, %v188
    %v707 = vmul.f32 %v701, %v188
    %v708 = vmul.f32 %v702, %v188
    %v709 = vmul.f32 %v703, %v188
    %v710 = vmul.f32 %v704, %v188
    %v711 = vadd.f32 %v693, %v705
    %v712 = vadd.f32 %v694, %v706
    %v713 = vadd.f32 %v695, %v707
    %v714 = vadd.f32 %v696, %v708
    %v715 = vadd.f32 %v697, %v709
    %v716 = vadd.f32 %v698, %v710
    %v717 = vld [vmem:[%s201 + $0x1] sm:$0x3f]
    %v718 = vld [vmem:[%s201 + $0x9] sm:$0x3f]
    %v719 = vld [vmem:[%s201 + $0x11] sm:$0x3f]
    %v720 = vld [vmem:[%s201 + $0x19] sm:$0x3f]
    %v721 = vld [vmem:[%s201 + $0x21] sm:$0x3f]
    %v722 = vld [vmem:[%s201 + $0x29] sm:$0x3f]
    %v723 = vmul.f32 %v717, %v208
    %v724 = vmul.f32 %v718, %v208
    %v725 = vmul.f32 %v719, %v208
    %v726 = vmul.f32 %v720, %v208
    %v727 = vmul.f32 %v721, %v208
    %v728 = vmul.f32 %v722, %v208
    %v729 = vadd.f32 %v711, %v723
    %v730 = vadd.f32 %v712, %v724
    %v731 = vadd.f32 %v713, %v725
    %v732 = vadd.f32 %v714, %v726
    %v733 = vadd.f32 %v715, %v727
    %v734 = vadd.f32 %v716, %v728
    %v735 = vmul.f32 %v519, %v228
    %v736 = vmul.f32 %v520, %v228
    %v737 = vmul.f32 %v521, %v228
    %v738 = vmul.f32 %v522, %v228
    %v739 = vmul.f32 %v523, %v228
    %v740 = vmul.f32 %v524, %v228
    %v741 = vadd.f32 %v729, %v735
    %v742 = vadd.f32 %v730, %v736
    %v743 = vadd.f32 %v731, %v737
    %v744 = vadd.f32 %v732, %v738
    %v745 = vadd.f32 %v733, %v739
    %v746 = vadd.f32 %v734, %v740
    %v747 = vmul.f32 %v537, %v248
    %v748 = vmul.f32 %v538, %v248
    %v749 = vmul.f32 %v539, %v248
    %v750 = vmul.f32 %v540, %v248
    %v751 = vmul.f32 %v541, %v248
    %v752 = vmul.f32 %v542, %v248
    %v753 = vadd.f32 %v741, %v747
    %v754 = vadd.f32 %v742, %v748
    %v755 = vadd.f32 %v743, %v749
    %v756 = vadd.f32 %v744, %v750
    %v757 = vadd.f32 %v745, %v751
    %v758 = vadd.f32 %v746, %v752
    %v759 = vld [vmem:[%s261 + $0x1] sm:$0x3f]
    %v760 = vld [vmem:[%s261 + $0x9] sm:$0x3f]
    %v761 = vld [vmem:[%s261 + $0x11] sm:$0x3f]
    %v762 = vld [vmem:[%s261 + $0x19] sm:$0x3f]
    %v763 = vld [vmem:[%s261 + $0x21] sm:$0x3f]
    %v764 = vld [vmem:[%s261 + $0x29] sm:$0x3f]
    %v765 = vmul.f32 %v759, %v268
    %v766 = vmul.f32 %v760, %v268
    %v767 = vmul.f32 %v761, %v268
    %v768 = vmul.f32 %v762, %v268
    %v769 = vmul.f32 %v763, %v268
    %v770 = vmul.f32 %v764, %v268
    %v771 = vadd.f32 %v753, %v765
    %v772 = vadd.f32 %v754, %v766
    %v773 = vadd.f32 %v755, %v767
    %v774 = vadd.f32 %v756, %v768
    %v775 = vadd.f32 %v757, %v769
    %v776 = vadd.f32 %v758, %v770
    %v777 = vld [vmem:[%s281 + $0x1] sm:$0x3f]
    %v778 = vld [vmem:[%s281 + $0x9] sm:$0x3f]
    %v779 = vld [vmem:[%s281 + $0x11] sm:$0x3f]
    %v780 = vld [vmem:[%s281 + $0x19] sm:$0x3f]
    %v781 = vld [vmem:[%s281 + $0x21] sm:$0x3f]
    %v782 = vld [vmem:[%s281 + $0x29] sm:$0x3f]
    %v783 = vmul.f32 %v777, %v288
    %v784 = vmul.f32 %v778, %v288
    %v785 = vmul.f32 %v779, %v288
    %v786 = vmul.f32 %v780, %v288
    %v787 = vmul.f32 %v781, %v288
    %v788 = vmul.f32 %v782, %v288
    %v789 = vadd.f32 %v771, %v783
    %v790 = vadd.f32 %v772, %v784
    %v791 = vadd.f32 %v773, %v785
    %v792 = vadd.f32 %v774, %v786
    %v793 = vadd.f32 %v775, %v787
    %v794 = vadd.f32 %v776, %v788
    %v795 = vmul.f32 %v579, %v308
    %v796 = vmul.f32 %v580, %v308
    %v797 = vmul.f32 %v581, %v308
    %v798 = vmul.f32 %v582, %v308
    %v799 = vmul.f32 %v583, %v308
    %v800 = vmul.f32 %v584, %v308
    %v801 = vadd.f32 %v789, %v795
    %v802 = vadd.f32 %v790, %v796
    %v803 = vadd.f32 %v791, %v797
    %v804 = vadd.f32 %v792, %v798
    %v805 = vadd.f32 %v793, %v799
    %v806 = vadd.f32 %v794, %v800
    %v807 = vmul.f32 %v597, %v328
    %v808 = vmul.f32 %v598, %v328
    %v809 = vmul.f32 %v599, %v328
    %v810 = vmul.f32 %v600, %v328
    %v811 = vmul.f32 %v601, %v328
    %v812 = vmul.f32 %v602, %v328
    %v813 = vadd.f32 %v801, %v807
    %v814 = vadd.f32 %v802, %v808
    %v815 = vadd.f32 %v803, %v809
    %v816 = vadd.f32 %v804, %v810
    %v817 = vadd.f32 %v805, %v811
    %v818 = vadd.f32 %v806, %v812
    %v819 = vld [vmem:[%s341 + $0x1] sm:$0x3f]
    %v820 = vld [vmem:[%s341 + $0x9] sm:$0x3f]
    %v821 = vld [vmem:[%s341 + $0x11] sm:$0x3f]
    %v822 = vld [vmem:[%s341 + $0x19] sm:$0x3f]
    %v823 = vld [vmem:[%s341 + $0x21] sm:$0x3f]
    %v824 = vld [vmem:[%s341 + $0x29] sm:$0x3f]
    %v825 = vmul.f32 %v819, %v348
    %v826 = vmul.f32 %v820, %v348
    %v827 = vmul.f32 %v821, %v348
    %v828 = vmul.f32 %v822, %v348
    %v829 = vmul.f32 %v823, %v348
    %v830 = vmul.f32 %v824, %v348
    %v831 = vadd.f32 %v813, %v825
    %v832 = vadd.f32 %v814, %v826
    %v833 = vadd.f32 %v815, %v827
    %v834 = vadd.f32 %v816, %v828
    %v835 = vadd.f32 %v817, %v829
    %v836 = vadd.f32 %v818, %v830
    %v837 = vld [vmem:[%s361 + $0x1] sm:$0x3f]
    %v838 = vld [vmem:[%s361 + $0x9] sm:$0x3f]
    %v839 = vld [vmem:[%s361 + $0x11] sm:$0x3f]
    %v840 = vld [vmem:[%s361 + $0x19] sm:$0x3f]
    %v841 = vld [vmem:[%s361 + $0x21] sm:$0x3f]
    %v842 = vld [vmem:[%s361 + $0x29] sm:$0x3f]
    %v843 = vmul.f32 %v837, %v368
    %v844 = vmul.f32 %v838, %v368
    %v845 = vmul.f32 %v839, %v368
    %v846 = vmul.f32 %v840, %v368
    %v847 = vmul.f32 %v841, %v368
    %v848 = vmul.f32 %v842, %v368
    %v849 = vadd.f32 %v831, %v843
    %v850 = vadd.f32 %v832, %v844
    %v851 = vadd.f32 %v833, %v845
    %v852 = vadd.f32 %v834, %v846
    %v853 = vadd.f32 %v835, %v847
    %v854 = vadd.f32 %v836, %v848
    %v855 = vmax.f32 %v615, %v849
    %v856 = vmax.f32 %v616, %v850
    %v857 = vmax.f32 %v617, %v851
    %v858 = vmax.f32 %v618, %v852
    %v859 = vmax.f32 %v619, %v853
    %v860 = vmax.f32 %v620, %v854
    %v861 = vmul.f32 %v222, %v74
    %v862 = vmul.f32 %v223, %v74
    %v863 = vmul.f32 %v224, %v74
    %v864 = vmul.f32 %v225, %v74
    %v865 = vmul.f32 %v226, %v74
    %v866 = vmul.f32 %v227, %v74
    %v867 = vmul.f32 %v242, %v88
    %v868 = vmul.f32 %v243, %v88
    %v869 = vmul.f32 %v244, %v88
    %v870 = vmul.f32 %v245, %v88
    %v871 = vmul.f32 %v246, %v88
    %v872 = vmul.f32 %v247, %v88
    %v873 = vadd.f32 %v861, %v867
    %v874 = vadd.f32 %v862, %v868
    %v875 = vadd.f32 %v863, %v869
    %v876 = vadd.f32 %v864, %v870
    %v877 = vadd.f32 %v865, %v871
    %v878 = vadd.f32 %v866, %v872
    %v879 = vmul.f32 %v262, %v108
    %v880 = vmul.f32 %v263, %v108
    %v881 = vmul.f32 %v264, %v108
    %v882 = vmul.f32 %v265, %v108
    %v883 = vmul.f32 %v266, %v108
    %v884 = vmul.f32 %v267, %v108
    %v885 = vadd.f32 %v873, %v879
    %v886 = vadd.f32 %v874, %v880
    %v887 = vadd.f32 %v875, %v881
    %v888 = vadd.f32 %v876, %v882
    %v889 = vadd.f32 %v877, %v883
    %v890 = vadd.f32 %v878, %v884
    %v891 = vmul.f32 %v282, %v128
    %v892 = vmul.f32 %v283, %v128
    %v893 = vmul.f32 %v284, %v128
    %v894 = vmul.f32 %v285, %v128
    %v895 = vmul.f32 %v286, %v128
    %v896 = vmul.f32 %v287, %v128
    %v897 = vadd.f32 %v885, %v891
    %v898 = vadd.f32 %v886, %v892
    %v899 = vadd.f32 %v887, %v893
    %v900 = vadd.f32 %v888, %v894
    %v901 = vadd.f32 %v889, %v895
    %v902 = vadd.f32 %v890, %v896
    %v903 = vmul.f32 %v302, %v148
    %v904 = vmul.f32 %v303, %v148
    %v905 = vmul.f32 %v304, %v148
    %v906 = vmul.f32 %v305, %v148
    %v907 = vmul.f32 %v306, %v148
    %v908 = vmul.f32 %v307, %v148
    %v909 = vadd.f32 %v897, %v903
    %v910 = vadd.f32 %v898, %v904
    %v911 = vadd.f32 %v899, %v905
    %v912 = vadd.f32 %v900, %v906
    %v913 = vadd.f32 %v901, %v907
    %v914 = vadd.f32 %v902, %v908
    %v915 = vmul.f32 %v322, %v168
    %v916 = vmul.f32 %v323, %v168
    %v917 = vmul.f32 %v324, %v168
    %v918 = vmul.f32 %v325, %v168
    %v919 = vmul.f32 %v326, %v168
    %v920 = vmul.f32 %v327, %v168
    %v921 = vadd.f32 %v909, %v915
    %v922 = vadd.f32 %v910, %v916
    %v923 = vadd.f32 %v911, %v917
    %v924 = vadd.f32 %v912, %v918
    %v925 = vadd.f32 %v913, %v919
    %v926 = vadd.f32 %v914, %v920
    %v927 = vmul.f32 %v342, %v188
    %v928 = vmul.f32 %v343, %v188
    %v929 = vmul.f32 %v344, %v188
    %v930 = vmul.f32 %v345, %v188
    %v931 = vmul.f32 %v346, %v188
    %v932 = vmul.f32 %v347, %v188
    %v933 = vadd.f32 %v921, %v927
    %v934 = vadd.f32 %v922, %v928
    %v935 = vadd.f32 %v923, %v929
    %v936 = vadd.f32 %v924, %v930
    %v937 = vadd.f32 %v925, %v931
    %v938 = vadd.f32 %v926, %v932
    %v939 = vmul.f32 %v362, %v208
    %v940 = vmul.f32 %v363, %v208
    %v941 = vmul.f32 %v364, %v208
    %v942 = vmul.f32 %v365, %v208
    %v943 = vmul.f32 %v366, %v208
    %v944 = vmul.f32 %v367, %v208
    %v945 = vadd.f32 %v933, %v939
    %v946 = vadd.f32 %v934, %v940
    %v947 = vadd.f32 %v935, %v941
    %v948 = vadd.f32 %v936, %v942
    %v949 = vadd.f32 %v937, %v943
    %v950 = vadd.f32 %v938, %v944
    %s951 = scalar_lea.vmem %s0, 8
    %v952 = vld [vmem:[%s951] sm:$0x3f]
    %v953 = vld [vmem:[%s951 + $0x8] sm:$0x3f]
    %v954 = vld [vmem:[%s951 + $0x10] sm:$0x3f]
    %v955 = vld [vmem:[%s951 + $0x18] sm:$0x3f]
    %v956 = vld [vmem:[%s951 + $0x20] sm:$0x3f]
    %v957 = vld [vmem:[%s951 + $0x28] sm:$0x3f]
    %v958 = vmul.f32 %v952, %v228
    %v959 = vmul.f32 %v953, %v228
    %v960 = vmul.f32 %v954, %v228
    %v961 = vmul.f32 %v955, %v228
    %v962 = vmul.f32 %v956, %v228
    %v963 = vmul.f32 %v957, %v228
    %v964 = vadd.f32 %v945, %v958
    %v965 = vadd.f32 %v946, %v959
    %v966 = vadd.f32 %v947, %v960
    %v967 = vadd.f32 %v948, %v961
    %v968 = vadd.f32 %v949, %v962
    %v969 = vadd.f32 %v950, %v963
    %s970 = scalar_lea.vmem %s0, 64
    %v971 = vld [vmem:[%s970] sm:$0x3f]
    %v972 = vld [vmem:[%s970 + $0x8] sm:$0x3f]
    %v973 = vld [vmem:[%s970 + $0x10] sm:$0x3f]
    %v974 = vld [vmem:[%s970 + $0x18] sm:$0x3f]
    %v975 = vld [vmem:[%s970 + $0x20] sm:$0x3f]
    %v976 = vld [vmem:[%s970 + $0x28] sm:$0x3f]
    %v977 = vmul.f32 %v971, %v248
    %v978 = vmul.f32 %v972, %v248
    %v979 = vmul.f32 %v973, %v248
    %v980 = vmul.f32 %v974, %v248
    %v981 = vmul.f32 %v975, %v248
    %v982 = vmul.f32 %v976, %v248
    %v983 = vadd.f32 %v964, %v977
    %v984 = vadd.f32 %v965, %v978
    %v985 = vadd.f32 %v966, %v979
    %v986 = vadd.f32 %v967, %v980
    %v987 = vadd.f32 %v968, %v981
    %v988 = vadd.f32 %v969, %v982
    %s989 = scalar_lea.vmem %s0, 120
    %v990 = vld [vmem:[%s989] sm:$0x3f]
    %v991 = vld [vmem:[%s989 + $0x8] sm:$0x3f]
    %v992 = vld [vmem:[%s989 + $0x10] sm:$0x3f]
    %v993 = vld [vmem:[%s989 + $0x18] sm:$0x3f]
    %v994 = vld [vmem:[%s989 + $0x20] sm:$0x3f]
    %v995 = vld [vmem:[%s989 + $0x28] sm:$0x3f]
    %v996 = vmul.f32 %v990, %v268
    %v997 = vmul.f32 %v991, %v268
    %v998 = vmul.f32 %v992, %v268
    %v999 = vmul.f32 %v993, %v268
    %v1000 = vmul.f32 %v994, %v268
    %v1001 = vmul.f32 %v995, %v268
    %v1002 = vadd.f32 %v983, %v996
    %v1003 = vadd.f32 %v984, %v997
    %v1004 = vadd.f32 %v985, %v998
    %v1005 = vadd.f32 %v986, %v999
    %v1006 = vadd.f32 %v987, %v1000
    %v1007 = vadd.f32 %v988, %v1001
    %s1008 = scalar_lea.vmem %s0, 176
    %v1009 = vld [vmem:[%s1008] sm:$0x3f]
    %v1010 = vld [vmem:[%s1008 + $0x8] sm:$0x3f]
    %v1011 = vld [vmem:[%s1008 + $0x10] sm:$0x3f]
    %v1012 = vld [vmem:[%s1008 + $0x18] sm:$0x3f]
    %v1013 = vld [vmem:[%s1008 + $0x20] sm:$0x3f]
    %v1014 = vld [vmem:[%s1008 + $0x28] sm:$0x3f]
    %v1015 = vmul.f32 %v1009, %v288
    %v1016 = vmul.f32 %v1010, %v288
    %v1017 = vmul.f32 %v1011, %v288
    %v1018 = vmul.f32 %v1012, %v288
    %v1019 = vmul.f32 %v1013, %v288
    %v1020 = vmul.f32 %v1014, %v288
    %v1021 = vadd.f32 %v1002, %v1015
    %v1022 = vadd.f32 %v1003, %v1016
    %v1023 = vadd.f32 %v1004, %v1017
    %v1024 = vadd.f32 %v1005, %v1018
    %v1025 = vadd.f32 %v1006, %v1019
    %v1026 = vadd.f32 %v1007, %v1020
    %s1027 = scalar_lea.vmem %s0, 232
    %v1028 = vld [vmem:[%s1027] sm:$0x3f]
    %v1029 = vld [vmem:[%s1027 + $0x8] sm:$0x3f]
    %v1030 = vld [vmem:[%s1027 + $0x10] sm:$0x3f]
    %v1031 = vld [vmem:[%s1027 + $0x18] sm:$0x3f]
    %v1032 = vld [vmem:[%s1027 + $0x20] sm:$0x3f]
    %v1033 = vld [vmem:[%s1027 + $0x28] sm:$0x3f]
    %v1034 = vmul.f32 %v1028, %v308
    %v1035 = vmul.f32 %v1029, %v308
    %v1036 = vmul.f32 %v1030, %v308
    %v1037 = vmul.f32 %v1031, %v308
    %v1038 = vmul.f32 %v1032, %v308
    %v1039 = vmul.f32 %v1033, %v308
    %v1040 = vadd.f32 %v1021, %v1034
    %v1041 = vadd.f32 %v1022, %v1035
    %v1042 = vadd.f32 %v1023, %v1036
    %v1043 = vadd.f32 %v1024, %v1037
    %v1044 = vadd.f32 %v1025, %v1038
    %v1045 = vadd.f32 %v1026, %v1039
    %s1046 = scalar_lea.vmem %s0, 288
    %v1047 = vld [vmem:[%s1046] sm:$0x3f]
    %v1048 = vld [vmem:[%s1046 + $0x8] sm:$0x3f]
    %v1049 = vld [vmem:[%s1046 + $0x10] sm:$0x3f]
    %v1050 = vld [vmem:[%s1046 + $0x18] sm:$0x3f]
    %v1051 = vld [vmem:[%s1046 + $0x20] sm:$0x3f]
    %v1052 = vld [vmem:[%s1046 + $0x28] sm:$0x3f]
    %v1053 = vmul.f32 %v1047, %v328
    %v1054 = vmul.f32 %v1048, %v328
    %v1055 = vmul.f32 %v1049, %v328
    %v1056 = vmul.f32 %v1050, %v328
    %v1057 = vmul.f32 %v1051, %v328
    %v1058 = vmul.f32 %v1052, %v328
    %v1059 = vadd.f32 %v1040, %v1053
    %v1060 = vadd.f32 %v1041, %v1054
    %v1061 = vadd.f32 %v1042, %v1055
    %v1062 = vadd.f32 %v1043, %v1056
    %v1063 = vadd.f32 %v1044, %v1057
    %v1064 = vadd.f32 %v1045, %v1058
    %s1065 = scalar_lea.vmem %s0, 344
    %v1066 = vld [vmem:[%s1065] sm:$0x3f]
    %v1067 = vld [vmem:[%s1065 + $0x8] sm:$0x3f]
    %v1068 = vld [vmem:[%s1065 + $0x10] sm:$0x3f]
    %v1069 = vld [vmem:[%s1065 + $0x18] sm:$0x3f]
    %v1070 = vld [vmem:[%s1065 + $0x20] sm:$0x3f]
    %v1071 = vld [vmem:[%s1065 + $0x28] sm:$0x3f]
    %v1072 = vmul.f32 %v1066, %v348
    %v1073 = vmul.f32 %v1067, %v348
    %v1074 = vmul.f32 %v1068, %v348
    %v1075 = vmul.f32 %v1069, %v348
    %v1076 = vmul.f32 %v1070, %v348
    %v1077 = vmul.f32 %v1071, %v348
    %v1078 = vadd.f32 %v1059, %v1072
    %v1079 = vadd.f32 %v1060, %v1073
    %v1080 = vadd.f32 %v1061, %v1074
    %v1081 = vadd.f32 %v1062, %v1075
    %v1082 = vadd.f32 %v1063, %v1076
    %v1083 = vadd.f32 %v1064, %v1077
    %s1084 = scalar_lea.vmem %s0, 400
    %v1085 = vld [vmem:[%s1084] sm:$0x3f]
    %v1086 = vld [vmem:[%s1084 + $0x8] sm:$0x3f]
    %v1087 = vld [vmem:[%s1084 + $0x10] sm:$0x3f]
    %v1088 = vld [vmem:[%s1084 + $0x18] sm:$0x3f]
    %v1089 = vld [vmem:[%s1084 + $0x20] sm:$0x3f]
    %v1090 = vld [vmem:[%s1084 + $0x28] sm:$0x3f]
    %v1091 = vmul.f32 %v1085, %v368
    %v1092 = vmul.f32 %v1086, %v368
    %v1093 = vmul.f32 %v1087, %v368
    %v1094 = vmul.f32 %v1088, %v368
    %v1095 = vmul.f32 %v1089, %v368
    %v1096 = vmul.f32 %v1090, %v368
    %v1097 = vadd.f32 %v1078, %v1091
    %v1098 = vadd.f32 %v1079, %v1092
    %v1099 = vadd.f32 %v1080, %v1093
    %v1100 = vadd.f32 %v1081, %v1094
    %v1101 = vadd.f32 %v1082, %v1095
    %v1102 = vadd.f32 %v1083, %v1096
    %v1103 = vmax.f32 %v855, %v1097
    %v1104 = vmax.f32 %v856, %v1098
    %v1105 = vmax.f32 %v857, %v1099
    %v1106 = vmax.f32 %v858, %v1100
    %v1107 = vmax.f32 %v859, %v1101
    %v1108 = vmax.f32 %v860, %v1102
    %v1109 = vmul.f32 %v262, %v74
    %v1110 = vmul.f32 %v263, %v74
    %v1111 = vmul.f32 %v264, %v74
    %v1112 = vmul.f32 %v265, %v74
    %v1113 = vmul.f32 %v266, %v74
    %v1114 = vmul.f32 %v267, %v74
    %v1115 = vmul.f32 %v282, %v88
    %v1116 = vmul.f32 %v283, %v88
    %v1117 = vmul.f32 %v284, %v88
    %v1118 = vmul.f32 %v285, %v88
    %v1119 = vmul.f32 %v286, %v88
    %v1120 = vmul.f32 %v287, %v88
    %v1121 = vadd.f32 %v1109, %v1115
    %v1122 = vadd.f32 %v1110, %v1116
    %v1123 = vadd.f32 %v1111, %v1117
    %v1124 = vadd.f32 %v1112, %v1118
    %v1125 = vadd.f32 %v1113, %v1119
    %v1126 = vadd.f32 %v1114, %v1120
    %v1127 = vmul.f32 %v519, %v108
    %v1128 = vmul.f32 %v520, %v108
    %v1129 = vmul.f32 %v521, %v108
    %v1130 = vmul.f32 %v522, %v108
    %v1131 = vmul.f32 %v523, %v108
    %v1132 = vmul.f32 %v524, %v108
    %v1133 = vadd.f32 %v1121, %v1127
    %v1134 = vadd.f32 %v1122, %v1128
    %v1135 = vadd.f32 %v1123, %v1129
    %v1136 = vadd.f32 %v1124, %v1130
    %v1137 = vadd.f32 %v1125, %v1131
    %v1138 = vadd.f32 %v1126, %v1132
    %v1139 = vmul.f32 %v537, %v128
    %v1140 = vmul.f32 %v538, %v128
    %v1141 = vmul.f32 %v539, %v128
    %v1142 = vmul.f32 %v540, %v128
    %v1143 = vmul.f32 %v541, %v128
    %v1144 = vmul.f32 %v542, %v128
    %v1145 = vadd.f32 %v1133, %v1139
    %v1146 = vadd.f32 %v1134, %v1140
    %v1147 = vadd.f32 %v1135, %v1141
    %v1148 = vadd.f32 %v1136, %v1142
    %v1149 = vadd.f32 %v1137, %v1143
    %v1150 = vadd.f32 %v1138, %v1144
    %v1151 = vmul.f32 %v342, %v148
    %v1152 = vmul.f32 %v343, %v148
    %v1153 = vmul.f32 %v344, %v148
    %v1154 = vmul.f32 %v345, %v148
    %v1155 = vmul.f32 %v346, %v148
    %v1156 = vmul.f32 %v347, %v148
    %v1157 = vadd.f32 %v1145, %v1151
    %v1158 = vadd.f32 %v1146, %v1152
    %v1159 = vadd.f32 %v1147, %v1153
    %v1160 = vadd.f32 %v1148, %v1154
    %v1161 = vadd.f32 %v1149, %v1155
    %v1162 = vadd.f32 %v1150, %v1156
    %v1163 = vmul.f32 %v362, %v168
    %v1164 = vmul.f32 %v363, %v168
    %v1165 = vmul.f32 %v364, %v168
    %v1166 = vmul.f32 %v365, %v168
    %v1167 = vmul.f32 %v366, %v168
    %v1168 = vmul.f32 %v367, %v168
    %v1169 = vadd.f32 %v1157, %v1163
    %v1170 = vadd.f32 %v1158, %v1164
    %v1171 = vadd.f32 %v1159, %v1165
    %v1172 = vadd.f32 %v1160, %v1166
    %v1173 = vadd.f32 %v1161, %v1167
    %v1174 = vadd.f32 %v1162, %v1168
    %v1175 = vmul.f32 %v579, %v188
    %v1176 = vmul.f32 %v580, %v188
    %v1177 = vmul.f32 %v581, %v188
    %v1178 = vmul.f32 %v582, %v188
    %v1179 = vmul.f32 %v583, %v188
    %v1180 = vmul.f32 %v584, %v188
    %v1181 = vadd.f32 %v1169, %v1175
    %v1182 = vadd.f32 %v1170, %v1176
    %v1183 = vadd.f32 %v1171, %v1177
    %v1184 = vadd.f32 %v1172, %v1178
    %v1185 = vadd.f32 %v1173, %v1179
    %v1186 = vadd.f32 %v1174, %v1180
    %v1187 = vmul.f32 %v597, %v208
    %v1188 = vmul.f32 %v598, %v208
    %v1189 = vmul.f32 %v599, %v208
    %v1190 = vmul.f32 %v600, %v208
    %v1191 = vmul.f32 %v601, %v208
    %v1192 = vmul.f32 %v602, %v208
    %v1193 = vadd.f32 %v1181, %v1187
    %v1194 = vadd.f32 %v1182, %v1188
    %v1195 = vadd.f32 %v1183, %v1189
    %v1196 = vadd.f32 %v1184, %v1190
    %v1197 = vadd.f32 %v1185, %v1191
    %v1198 = vadd.f32 %v1186, %v1192
    %v1199 = vmul.f32 %v990, %v228
    %v1200 = vmul.f32 %v991, %v228
    %v1201 = vmul.f32 %v992, %v228
    %v1202 = vmul.f32 %v993, %v228
    %v1203 = vmul.f32 %v994, %v228
    %v1204 = vmul.f32 %v995, %v228
    %v1205 = vadd.f32 %v1193, %v1199
    %v1206 = vadd.f32 %v1194, %v1200
    %v1207 = vadd.f32 %v1195, %v1201
    %v1208 = vadd.f32 %v1196, %v1202
    %v1209 = vadd.f32 %v1197, %v1203
    %v1210 = vadd.f32 %v1198, %v1204
    %v1211 = vmul.f32 %v1009, %v248
    %v1212 = vmul.f32 %v1010, %v248
    %v1213 = vmul.f32 %v1011, %v248
    %v1214 = vmul.f32 %v1012, %v248
    %v1215 = vmul.f32 %v1013, %v248
    %v1216 = vmul.f32 %v1014, %v248
    %v1217 = vadd.f32 %v1205, %v1211
    %v1218 = vadd.f32 %v1206, %v1212
    %v1219 = vadd.f32 %v1207, %v1213
    %v1220 = vadd.f32 %v1208, %v1214
    %v1221 = vadd.f32 %v1209, %v1215
    %v1222 = vadd.f32 %v1210, %v1216
    %v1223 = vld [vmem:[%s951 + $0x1] sm:$0x3f]
    %v1224 = vld [vmem:[%s951 + $0x9] sm:$0x3f]
    %v1225 = vld [vmem:[%s951 + $0x11] sm:$0x3f]
    %v1226 = vld [vmem:[%s951 + $0x19] sm:$0x3f]
    %v1227 = vld [vmem:[%s951 + $0x21] sm:$0x3f]
    %v1228 = vld [vmem:[%s951 + $0x29] sm:$0x3f]
    %v1229 = vmul.f32 %v1223, %v268
    %v1230 = vmul.f32 %v1224, %v268
    %v1231 = vmul.f32 %v1225, %v268
    %v1232 = vmul.f32 %v1226, %v268
    %v1233 = vmul.f32 %v1227, %v268
    %v1234 = vmul.f32 %v1228, %v268
    %v1235 = vadd.f32 %v1217, %v1229
    %v1236 = vadd.f32 %v1218, %v1230
    %v1237 = vadd.f32 %v1219, %v1231
    %v1238 = vadd.f32 %v1220, %v1232
    %v1239 = vadd.f32 %v1221, %v1233
    %v1240 = vadd.f32 %v1222, %v1234
    %v1241 = vld [vmem:[%s970 + $0x1] sm:$0x3f]
    %v1242 = vld [vmem:[%s970 + $0x9] sm:$0x3f]
    %v1243 = vld [vmem:[%s970 + $0x11] sm:$0x3f]
    %v1244 = vld [vmem:[%s970 + $0x19] sm:$0x3f]
    %v1245 = vld [vmem:[%s970 + $0x21] sm:$0x3f]
    %v1246 = vld [vmem:[%s970 + $0x29] sm:$0x3f]
    %v1247 = vmul.f32 %v1241, %v288
    %v1248 = vmul.f32 %v1242, %v288
    %v1249 = vmul.f32 %v1243, %v288
    %v1250 = vmul.f32 %v1244, %v288
    %v1251 = vmul.f32 %v1245, %v288
    %v1252 = vmul.f32 %v1246, %v288
    %v1253 = vadd.f32 %v1235, %v1247
    %v1254 = vadd.f32 %v1236, %v1248
    %v1255 = vadd.f32 %v1237, %v1249
    %v1256 = vadd.f32 %v1238, %v1250
    %v1257 = vadd.f32 %v1239, %v1251
    %v1258 = vadd.f32 %v1240, %v1252
    %v1259 = vmul.f32 %v1066, %v308
    %v1260 = vmul.f32 %v1067, %v308
    %v1261 = vmul.f32 %v1068, %v308
    %v1262 = vmul.f32 %v1069, %v308
    %v1263 = vmul.f32 %v1070, %v308
    %v1264 = vmul.f32 %v1071, %v308
    %v1265 = vadd.f32 %v1253, %v1259
    %v1266 = vadd.f32 %v1254, %v1260
    %v1267 = vadd.f32 %v1255, %v1261
    %v1268 = vadd.f32 %v1256, %v1262
    %v1269 = vadd.f32 %v1257, %v1263
    %v1270 = vadd.f32 %v1258, %v1264
    %v1271 = vmul.f32 %v1085, %v328
    %v1272 = vmul.f32 %v1086, %v328
    %v1273 = vmul.f32 %v1087, %v328
    %v1274 = vmul.f32 %v1088, %v328
    %v1275 = vmul.f32 %v1089, %v328
    %v1276 = vmul.f32 %v1090, %v328
    %v1277 = vadd.f32 %v1265, %v1271
    %v1278 = vadd.f32 %v1266, %v1272
    %v1279 = vadd.f32 %v1267, %v1273
    %v1280 = vadd.f32 %v1268, %v1274
    %v1281 = vadd.f32 %v1269, %v1275
    %v1282 = vadd.f32 %v1270, %v1276
    %v1283 = vld [vmem:[%s1027 + $0x1] sm:$0x3f]
    %v1284 = vld [vmem:[%s1027 + $0x9] sm:$0x3f]
    %v1285 = vld [vmem:[%s1027 + $0x11] sm:$0x3f]
    %v1286 = vld [vmem:[%s1027 + $0x19] sm:$0x3f]
    %v1287 = vld [vmem:[%s1027 + $0x21] sm:$0x3f]
    %v1288 = vld [vmem:[%s1027 + $0x29] sm:$0x3f]
    %v1289 = vmul.f32 %v1283, %v348
    %v1290 = vmul.f32 %v1284, %v348
    %v1291 = vmul.f32 %v1285, %v348
    %v1292 = vmul.f32 %v1286, %v348
    %v1293 = vmul.f32 %v1287, %v348
    %v1294 = vmul.f32 %v1288, %v348
    %v1295 = vadd.f32 %v1277, %v1289
    %v1296 = vadd.f32 %v1278, %v1290
    %v1297 = vadd.f32 %v1279, %v1291
    %v1298 = vadd.f32 %v1280, %v1292
    %v1299 = vadd.f32 %v1281, %v1293
    %v1300 = vadd.f32 %v1282, %v1294
    %v1301 = vld [vmem:[%s1046 + $0x1] sm:$0x3f]
    %v1302 = vld [vmem:[%s1046 + $0x9] sm:$0x3f]
    %v1303 = vld [vmem:[%s1046 + $0x11] sm:$0x3f]
    %v1304 = vld [vmem:[%s1046 + $0x19] sm:$0x3f]
    %v1305 = vld [vmem:[%s1046 + $0x21] sm:$0x3f]
    %v1306 = vld [vmem:[%s1046 + $0x29] sm:$0x3f]
    %v1307 = vmul.f32 %v1301, %v368
    %v1308 = vmul.f32 %v1302, %v368
    %v1309 = vmul.f32 %v1303, %v368
    %v1310 = vmul.f32 %v1304, %v368
    %v1311 = vmul.f32 %v1305, %v368
    %v1312 = vmul.f32 %v1306, %v368
    %v1313 = vadd.f32 %v1295, %v1307
    %v1314 = vadd.f32 %v1296, %v1308
    %v1315 = vadd.f32 %v1297, %v1309
    %v1316 = vadd.f32 %v1298, %v1310
    %v1317 = vadd.f32 %v1299, %v1311
    %v1318 = vadd.f32 %v1300, %v1312
    %v1319 = vmax.f32 %v1103, %v1313
    %v1320 = vmax.f32 %v1104, %v1314
    %v1321 = vmax.f32 %v1105, %v1315
    %v1322 = vmax.f32 %v1106, %v1316
    %v1323 = vmax.f32 %v1107, %v1317
    %v1324 = vmax.f32 %v1108, %v1318
    %v1325 = vmul.f32 %v519, %v74
    %v1326 = vmul.f32 %v520, %v74
    %v1327 = vmul.f32 %v521, %v74
    %v1328 = vmul.f32 %v522, %v74
    %v1329 = vmul.f32 %v523, %v74
    %v1330 = vmul.f32 %v524, %v74
    %v1331 = vmul.f32 %v537, %v88
    %v1332 = vmul.f32 %v538, %v88
    %v1333 = vmul.f32 %v539, %v88
    %v1334 = vmul.f32 %v540, %v88
    %v1335 = vmul.f32 %v541, %v88
    %v1336 = vmul.f32 %v542, %v88
    %v1337 = vadd.f32 %v1325, %v1331
    %v1338 = vadd.f32 %v1326, %v1332
    %v1339 = vadd.f32 %v1327, %v1333
    %v1340 = vadd.f32 %v1328, %v1334
    %v1341 = vadd.f32 %v1329, %v1335
    %v1342 = vadd.f32 %v1330, %v1336
    %v1343 = vmul.f32 %v759, %v108
    %v1344 = vmul.f32 %v760, %v108
    %v1345 = vmul.f32 %v761, %v108
    %v1346 = vmul.f32 %v762, %v108
    %v1347 = vmul.f32 %v763, %v108
    %v1348 = vmul.f32 %v764, %v108
    %v1349 = vadd.f32 %v1337, %v1343
    %v1350 = vadd.f32 %v1338, %v1344
    %v1351 = vadd.f32 %v1339, %v1345
    %v1352 = vadd.f32 %v1340, %v1346
    %v1353 = vadd.f32 %v1341, %v1347
    %v1354 = vadd.f32 %v1342, %v1348
    %v1355 = vmul.f32 %v777, %v128
    %v1356 = vmul.f32 %v778, %v128
    %v1357 = vmul.f32 %v779, %v128
    %v1358 = vmul.f32 %v780, %v128
    %v1359 = vmul.f32 %v781, %v128
    %v1360 = vmul.f32 %v782, %v128
    %v1361 = vadd.f32 %v1349, %v1355
    %v1362 = vadd.f32 %v1350, %v1356
    %v1363 = vadd.f32 %v1351, %v1357
    %v1364 = vadd.f32 %v1352, %v1358
    %v1365 = vadd.f32 %v1353, %v1359
    %v1366 = vadd.f32 %v1354, %v1360
    %v1367 = vmul.f32 %v579, %v148
    %v1368 = vmul.f32 %v580, %v148
    %v1369 = vmul.f32 %v581, %v148
    %v1370 = vmul.f32 %v582, %v148
    %v1371 = vmul.f32 %v583, %v148
    %v1372 = vmul.f32 %v584, %v148
    %v1373 = vadd.f32 %v1361, %v1367
    %v1374 = vadd.f32 %v1362, %v1368
    %v1375 = vadd.f32 %v1363, %v1369
    %v1376 = vadd.f32 %v1364, %v1370
    %v1377 = vadd.f32 %v1365, %v1371
    %v1378 = vadd.f32 %v1366, %v1372
    %v1379 = vmul.f32 %v597, %v168
    %v1380 = vmul.f32 %v598, %v168
    %v1381 = vmul.f32 %v599, %v168
    %v1382 = vmul.f32 %v600, %v168
    %v1383 = vmul.f32 %v601, %v168
    %v1384 = vmul.f32 %v602, %v168
    %v1385 = vadd.f32 %v1373, %v1379
    %v1386 = vadd.f32 %v1374, %v1380
    %v1387 = vadd.f32 %v1375, %v1381
    %v1388 = vadd.f32 %v1376, %v1382
    %v1389 = vadd.f32 %v1377, %v1383
    %v1390 = vadd.f32 %v1378, %v1384
    %v1391 = vmul.f32 %v819, %v188
    %v1392 = vmul.f32 %v820, %v188
    %v1393 = vmul.f32 %v821, %v188
    %v1394 = vmul.f32 %v822, %v188
    %v1395 = vmul.f32 %v823, %v188
    %v1396 = vmul.f32 %v824, %v188
    %v1397 = vadd.f32 %v1385, %v1391
    %v1398 = vadd.f32 %v1386, %v1392
    %v1399 = vadd.f32 %v1387, %v1393
    %v1400 = vadd.f32 %v1388, %v1394
    %v1401 = vadd.f32 %v1389, %v1395
    %v1402 = vadd.f32 %v1390, %v1396
    %v1403 = vmul.f32 %v837, %v208
    %v1404 = vmul.f32 %v838, %v208
    %v1405 = vmul.f32 %v839, %v208
    %v1406 = vmul.f32 %v840, %v208
    %v1407 = vmul.f32 %v841, %v208
    %v1408 = vmul.f32 %v842, %v208
    %v1409 = vadd.f32 %v1397, %v1403
    %v1410 = vadd.f32 %v1398, %v1404
    %v1411 = vadd.f32 %v1399, %v1405
    %v1412 = vadd.f32 %v1400, %v1406
    %v1413 = vadd.f32 %v1401, %v1407
    %v1414 = vadd.f32 %v1402, %v1408
    %v1415 = vmul.f32 %v1223, %v228
    %v1416 = vmul.f32 %v1224, %v228
    %v1417 = vmul.f32 %v1225, %v228
    %v1418 = vmul.f32 %v1226, %v228
    %v1419 = vmul.f32 %v1227, %v228
    %v1420 = vmul.f32 %v1228, %v228
    %v1421 = vadd.f32 %v1409, %v1415
    %v1422 = vadd.f32 %v1410, %v1416
    %v1423 = vadd.f32 %v1411, %v1417
    %v1424 = vadd.f32 %v1412, %v1418
    %v1425 = vadd.f32 %v1413, %v1419
    %v1426 = vadd.f32 %v1414, %v1420
    %v1427 = vmul.f32 %v1241, %v248
    %v1428 = vmul.f32 %v1242, %v248
    %v1429 = vmul.f32 %v1243, %v248
    %v1430 = vmul.f32 %v1244, %v248
    %v1431 = vmul.f32 %v1245, %v248
    %v1432 = vmul.f32 %v1246, %v248
    %v1433 = vadd.f32 %v1421, %v1427
    %v1434 = vadd.f32 %v1422, %v1428
    %v1435 = vadd.f32 %v1423, %v1429
    %v1436 = vadd.f32 %v1424, %v1430
    %v1437 = vadd.f32 %v1425, %v1431
    %v1438 = vadd.f32 %v1426, %v1432
    %v1439 = vld [vmem:[%s989 + $0x1] sm:$0x3f]
    %v1440 = vld [vmem:[%s989 + $0x9] sm:$0x3f]
    %v1441 = vld [vmem:[%s989 + $0x11] sm:$0x3f]
    %v1442 = vld [vmem:[%s989 + $0x19] sm:$0x3f]
    %v1443 = vld [vmem:[%s989 + $0x21] sm:$0x3f]
    %v1444 = vld [vmem:[%s989 + $0x29] sm:$0x3f]
    %v1445 = vmul.f32 %v1439, %v268
    %v1446 = vmul.f32 %v1440, %v268
    %v1447 = vmul.f32 %v1441, %v268
    %v1448 = vmul.f32 %v1442, %v268
    %v1449 = vmul.f32 %v1443, %v268
    %v1450 = vmul.f32 %v1444, %v268
    %v1451 = vadd.f32 %v1433, %v1445
    %v1452 = vadd.f32 %v1434, %v1446
    %v1453 = vadd.f32 %v1435, %v1447
    %v1454 = vadd.f32 %v1436, %v1448
    %v1455 = vadd.f32 %v1437, %v1449
    %v1456 = vadd.f32 %v1438, %v1450
    %v1457 = vld [vmem:[%s1008 + $0x1] sm:$0x3f]
    %v1458 = vld [vmem:[%s1008 + $0x9] sm:$0x3f]
    %v1459 = vld [vmem:[%s1008 + $0x11] sm:$0x3f]
    %v1460 = vld [vmem:[%s1008 + $0x19] sm:$0x3f]
    %v1461 = vld [vmem:[%s1008 + $0x21] sm:$0x3f]
    %v1462 = vld [vmem:[%s1008 + $0x29] sm:$0x3f]
    %v1463 = vmul.f32 %v1457, %v288
    %v1464 = vmul.f32 %v1458, %v288
    %v1465 = vmul.f32 %v1459, %v288
    %v1466 = vmul.f32 %v1460, %v288
    %v1467 = vmul.f32 %v1461, %v288
    %v1468 = vmul.f32 %v1462, %v288
    %v1469 = vadd.f32 %v1451, %v1463
    %v1470 = vadd.f32 %v1452, %v1464
    %v1471 = vadd.f32 %v1453, %v1465
    %v1472 = vadd.f32 %v1454, %v1466
    %v1473 = vadd.f32 %v1455, %v1467
    %v1474 = vadd.f32 %v1456, %v1468
    %v1475 = vmul.f32 %v1283, %v308
    %v1476 = vmul.f32 %v1284, %v308
    %v1477 = vmul.f32 %v1285, %v308
    %v1478 = vmul.f32 %v1286, %v308
    %v1479 = vmul.f32 %v1287, %v308
    %v1480 = vmul.f32 %v1288, %v308
    %v1481 = vadd.f32 %v1469, %v1475
    %v1482 = vadd.f32 %v1470, %v1476
    %v1483 = vadd.f32 %v1471, %v1477
    %v1484 = vadd.f32 %v1472, %v1478
    %v1485 = vadd.f32 %v1473, %v1479
    %v1486 = vadd.f32 %v1474, %v1480
    %v1487 = vmul.f32 %v1301, %v328
    %v1488 = vmul.f32 %v1302, %v328
    %v1489 = vmul.f32 %v1303, %v328
    %v1490 = vmul.f32 %v1304, %v328
    %v1491 = vmul.f32 %v1305, %v328
    %v1492 = vmul.f32 %v1306, %v328
    %v1493 = vadd.f32 %v1481, %v1487
    %v1494 = vadd.f32 %v1482, %v1488
    %v1495 = vadd.f32 %v1483, %v1489
    %v1496 = vadd.f32 %v1484, %v1490
    %v1497 = vadd.f32 %v1485, %v1491
    %v1498 = vadd.f32 %v1486, %v1492
    %v1499 = vld [vmem:[%s1065 + $0x1] sm:$0x3f]
    %v1500 = vld [vmem:[%s1065 + $0x9] sm:$0x3f]
    %v1501 = vld [vmem:[%s1065 + $0x11] sm:$0x3f]
    %v1502 = vld [vmem:[%s1065 + $0x19] sm:$0x3f]
    %v1503 = vld [vmem:[%s1065 + $0x21] sm:$0x3f]
    %v1504 = vld [vmem:[%s1065 + $0x29] sm:$0x3f]
    %v1505 = vmul.f32 %v1499, %v348
    %v1506 = vmul.f32 %v1500, %v348
    %v1507 = vmul.f32 %v1501, %v348
    %v1508 = vmul.f32 %v1502, %v348
    %v1509 = vmul.f32 %v1503, %v348
    %v1510 = vmul.f32 %v1504, %v348
    %v1511 = vadd.f32 %v1493, %v1505
    %v1512 = vadd.f32 %v1494, %v1506
    %v1513 = vadd.f32 %v1495, %v1507
    %v1514 = vadd.f32 %v1496, %v1508
    %v1515 = vadd.f32 %v1497, %v1509
    %v1516 = vadd.f32 %v1498, %v1510
    %v1517 = vld [vmem:[%s1084 + $0x1] sm:$0x3f]
    %v1518 = vld [vmem:[%s1084 + $0x9] sm:$0x3f]
    %v1519 = vld [vmem:[%s1084 + $0x11] sm:$0x3f]
    %v1520 = vld [vmem:[%s1084 + $0x19] sm:$0x3f]
    %v1521 = vld [vmem:[%s1084 + $0x21] sm:$0x3f]
    %v1522 = vld [vmem:[%s1084 + $0x29] sm:$0x3f]
    %v1523 = vmul.f32 %v1517, %v368
    %v1524 = vmul.f32 %v1518, %v368
    %v1525 = vmul.f32 %v1519, %v368
    %v1526 = vmul.f32 %v1520, %v368
    %v1527 = vmul.f32 %v1521, %v368
    %v1528 = vmul.f32 %v1522, %v368
    %v1529 = vadd.f32 %v1511, %v1523
    %v1530 = vadd.f32 %v1512, %v1524
    %v1531 = vadd.f32 %v1513, %v1525
    %v1532 = vadd.f32 %v1514, %v1526
    %v1533 = vadd.f32 %v1515, %v1527
    %v1534 = vadd.f32 %v1516, %v1528
    %v1535 = vmax.f32 %v1319, %v1529
    %v1536 = vmax.f32 %v1320, %v1530
    %v1537 = vmax.f32 %v1321, %v1531
    %v1538 = vmax.f32 %v1322, %v1532
    %v1539 = vmax.f32 %v1323, %v1533
    %v1540 = vmax.f32 %v1324, %v1534
    %v1541 = vmul.f32 %v952, %v74
    %v1542 = vmul.f32 %v953, %v74
    %v1543 = vmul.f32 %v954, %v74
    %v1544 = vmul.f32 %v955, %v74
    %v1545 = vmul.f32 %v956, %v74
    %v1546 = vmul.f32 %v957, %v74
    %v1547 = vmul.f32 %v971, %v88
    %v1548 = vmul.f32 %v972, %v88
    %v1549 = vmul.f32 %v973, %v88
    %v1550 = vmul.f32 %v974, %v88
    %v1551 = vmul.f32 %v975, %v88
    %v1552 = vmul.f32 %v976, %v88
    %v1553 = vadd.f32 %v1541, %v1547
    %v1554 = vadd.f32 %v1542, %v1548
    %v1555 = vadd.f32 %v1543, %v1549
    %v1556 = vadd.f32 %v1544, %v1550
    %v1557 = vadd.f32 %v1545, %v1551
    %v1558 = vadd.f32 %v1546, %v1552
    %v1559 = vmul.f32 %v990, %v108
    %v1560 = vmul.f32 %v991, %v108
    %v1561 = vmul.f32 %v992, %v108
    %v1562 = vmul.f32 %v993, %v108
    %v1563 = vmul.f32 %v994, %v108
    %v1564 = vmul.f32 %v995, %v108
    %v1565 = vadd.f32 %v1553, %v1559
    %v1566 = vadd.f32 %v1554, %v1560
    %v1567 = vadd.f32 %v1555, %v1561
    %v1568 = vadd.f32 %v1556, %v1562
    %v1569 = vadd.f32 %v1557, %v1563
    %v1570 = vadd.f32 %v1558, %v1564
    %v1571 = vmul.f32 %v1009, %v128
    %v1572 = vmul.f32 %v1010, %v128
    %v1573 = vmul.f32 %v1011, %v128
    %v1574 = vmul.f32 %v1012, %v128
    %v1575 = vmul.f32 %v1013, %v128
    %v1576 = vmul.f32 %v1014, %v128
    %v1577 = vadd.f32 %v1565, %v1571
    %v1578 = vadd.f32 %v1566, %v1572
    %v1579 = vadd.f32 %v1567, %v1573
    %v1580 = vadd.f32 %v1568, %v1574
    %v1581 = vadd.f32 %v1569, %v1575
    %v1582 = vadd.f32 %v1570, %v1576
    %v1583 = vmul.f32 %v1028, %v148
    %v1584 = vmul.f32 %v1029, %v148
    %v1585 = vmul.f32 %v1030, %v148
    %v1586 = vmul.f32 %v1031, %v148
    %v1587 = vmul.f32 %v1032, %v148
    %v1588 = vmul.f32 %v1033, %v148
    %v1589 = vadd.f32 %v1577, %v1583
    %v1590 = vadd.f32 %v1578, %v1584
    %v1591 = vadd.f32 %v1579, %v1585
    %v1592 = vadd.f32 %v1580, %v1586
    %v1593 = vadd.f32 %v1581, %v1587
    %v1594 = vadd.f32 %v1582, %v1588
    %v1595 = vmul.f32 %v1047, %v168
    %v1596 = vmul.f32 %v1048, %v168
    %v1597 = vmul.f32 %v1049, %v168
    %v1598 = vmul.f32 %v1050, %v168
    %v1599 = vmul.f32 %v1051, %v168
    %v1600 = vmul.f32 %v1052, %v168
    %v1601 = vadd.f32 %v1589, %v1595
    %v1602 = vadd.f32 %v1590, %v1596
    %v1603 = vadd.f32 %v1591, %v1597
    %v1604 = vadd.f32 %v1592, %v1598
    %v1605 = vadd.f32 %v1593, %v1599
    %v1606 = vadd.f32 %v1594, %v1600
    %v1607 = vmul.f32 %v1066, %v188
    %v1608 = vmul.f32 %v1067, %v188
    %v1609 = vmul.f32 %v1068, %v188
    %v1610 = vmul.f32 %v1069, %v188
    %v1611 = vmul.f32 %v1070, %v188
    %v1612 = vmul.f32 %v1071, %v188
    %v1613 = vadd.f32 %v1601, %v1607
    %v1614 = vadd.f32 %v1602, %v1608
    %v1615 = vadd.f32 %v1603, %v1609
    %v1616 = vadd.f32 %v1604, %v1610
    %v1617 = vadd.f32 %v1605, %v1611
    %v1618 = vadd.f32 %v1606, %v1612
    %v1619 = vmul.f32 %v1085, %v208
    %v1620 = vmul.f32 %v1086, %v208
    %v1621 = vmul.f32 %v1087, %v208
    %v1622 = vmul.f32 %v1088, %v208
    %v1623 = vmul.f32 %v1089, %v208
    %v1624 = vmul.f32 %v1090, %v208
    %v1625 = vadd.f32 %v1613, %v1619
    %v1626 = vadd.f32 %v1614, %v1620
    %v1627 = vadd.f32 %v1615, %v1621
    %v1628 = vadd.f32 %v1616, %v1622
    %v1629 = vadd.f32 %v1617, %v1623
    %v1630 = vadd.f32 %v1618, %v1624
    %s1631 = scalar_lea.vmem %s0, 456
    %v1632 = vld [vmem:[%s1631] sm:$0x3f]
    %v1633 = vld [vmem:[%s1631 + $0x8] sm:$0x3f]
    %v1634 = vld [vmem:[%s1631 + $0x10] sm:$0x3f]
    %v1635 = vld [vmem:[%s1631 + $0x18] sm:$0x3f]
    %v1636 = vld [vmem:[%s1631 + $0x20] sm:$0x3f]
    %v1637 = vld [vmem:[%s1631 + $0x28] sm:$0x3f]
    %v1638 = vmul.f32 %v1632, %v228
    %v1639 = vmul.f32 %v1633, %v228
    %v1640 = vmul.f32 %v1634, %v228
    %v1641 = vmul.f32 %v1635, %v228
    %v1642 = vmul.f32 %v1636, %v228
    %v1643 = vmul.f32 %v1637, %v228
    %v1644 = vadd.f32 %v1625, %v1638
    %v1645 = vadd.f32 %v1626, %v1639
    %v1646 = vadd.f32 %v1627, %v1640
    %v1647 = vadd.f32 %v1628, %v1641
    %v1648 = vadd.f32 %v1629, %v1642
    %v1649 = vadd.f32 %v1630, %v1643
    %s1650 = scalar_lea.vmem %s0, 512
    %v1651 = vld [vmem:[%s1650] sm:$0x3f]
    %v1652 = vld [vmem:[%s1650 + $0x8] sm:$0x3f]
    %v1653 = vld [vmem:[%s1650 + $0x10] sm:$0x3f]
    %v1654 = vld [vmem:[%s1650 + $0x18] sm:$0x3f]
    %v1655 = vld [vmem:[%s1650 + $0x20] sm:$0x3f]
    %v1656 = vld [vmem:[%s1650 + $0x28] sm:$0x3f]
    %v1657 = vmul.f32 %v1651, %v248
    %v1658 = vmul.f32 %v1652, %v248
    %v1659 = vmul.f32 %v1653, %v248
    %v1660 = vmul.f32 %v1654, %v248
    %v1661 = vmul.f32 %v1655, %v248
    %v1662 = vmul.f32 %v1656, %v248
    %v1663 = vadd.f32 %v1644, %v1657
    %v1664 = vadd.f32 %v1645, %v1658
    %v1665 = vadd.f32 %v1646, %v1659
    %v1666 = vadd.f32 %v1647, %v1660
    %v1667 = vadd.f32 %v1648, %v1661
    %v1668 = vadd.f32 %v1649, %v1662
    %s1669 = scalar_lea.vmem %s0, 568
    %v1670 = vld [vmem:[%s1669] sm:$0x3f]
    %v1671 = vld [vmem:[%s1669 + $0x8] sm:$0x3f]
    %v1672 = vld [vmem:[%s1669 + $0x10] sm:$0x3f]
    %v1673 = vld [vmem:[%s1669 + $0x18] sm:$0x3f]
    %v1674 = vld [vmem:[%s1669 + $0x20] sm:$0x3f]
    %v1675 = vld [vmem:[%s1669 + $0x28] sm:$0x3f]
    %v1676 = vmul.f32 %v1670, %v268
    %v1677 = vmul.f32 %v1671, %v268
    %v1678 = vmul.f32 %v1672, %v268
    %v1679 = vmul.f32 %v1673, %v268
    %v1680 = vmul.f32 %v1674, %v268
    %v1681 = vmul.f32 %v1675, %v268
    %v1682 = vadd.f32 %v1663, %v1676
    %v1683 = vadd.f32 %v1664, %v1677
    %v1684 = vadd.f32 %v1665, %v1678
    %v1685 = vadd.f32 %v1666, %v1679
    %v1686 = vadd.f32 %v1667, %v1680
    %v1687 = vadd.f32 %v1668, %v1681
    %s1688 = scalar_lea.vmem %s0, 624
    %v1689 = vld [vmem:[%s1688] sm:$0x3f]
    %v1690 = vld [vmem:[%s1688 + $0x8] sm:$0x3f]
    %v1691 = vld [vmem:[%s1688 + $0x10] sm:$0x3f]
    %v1692 = vld [vmem:[%s1688 + $0x18] sm:$0x3f]
    %v1693 = vld [vmem:[%s1688 + $0x20] sm:$0x3f]
    %v1694 = vld [vmem:[%s1688 + $0x28] sm:$0x3f]
    %v1695 = vmul.f32 %v1689, %v288
    %v1696 = vmul.f32 %v1690, %v288
    %v1697 = vmul.f32 %v1691, %v288
    %v1698 = vmul.f32 %v1692, %v288
    %v1699 = vmul.f32 %v1693, %v288
    %v1700 = vmul.f32 %v1694, %v288
    %v1701 = vadd.f32 %v1682, %v1695
    %v1702 = vadd.f32 %v1683, %v1696
    %v1703 = vadd.f32 %v1684, %v1697
    %v1704 = vadd.f32 %v1685, %v1698
    %v1705 = vadd.f32 %v1686, %v1699
    %v1706 = vadd.f32 %v1687, %v1700
    %s1707 = scalar_lea.vmem %s0, 680
    %v1708 = vld [vmem:[%s1707] sm:$0x3f]
    %v1709 = vld [vmem:[%s1707 + $0x8] sm:$0x3f]
    %v1710 = vld [vmem:[%s1707 + $0x10] sm:$0x3f]
    %v1711 = vld [vmem:[%s1707 + $0x18] sm:$0x3f]
    %v1712 = vld [vmem:[%s1707 + $0x20] sm:$0x3f]
    %v1713 = vld [vmem:[%s1707 + $0x28] sm:$0x3f]
    %v1714 = vmul.f32 %v1708, %v308
    %v1715 = vmul.f32 %v1709, %v308
    %v1716 = vmul.f32 %v1710, %v308
    %v1717 = vmul.f32 %v1711, %v308
    %v1718 = vmul.f32 %v1712, %v308
    %v1719 = vmul.f32 %v1713, %v308
    %v1720 = vadd.f32 %v1701, %v1714
    %v1721 = vadd.f32 %v1702, %v1715
    %v1722 = vadd.f32 %v1703, %v1716
    %v1723 = vadd.f32 %v1704, %v1717
    %v1724 = vadd.f32 %v1705, %v1718
    %v1725 = vadd.f32 %v1706, %v1719
    %s1726 = scalar_lea.vmem %s0, 736
    %v1727 = vld [vmem:[%s1726] sm:$0x3f]
    %v1728 = vld [vmem:[%s1726 + $0x8] sm:$0x3f]
    %v1729 = vld [vmem:[%s1726 + $0x10] sm:$0x3f]
    %v1730 = vld [vmem:[%s1726 + $0x18] sm:$0x3f]
    %v1731 = vld [vmem:[%s1726 + $0x20] sm:$0x3f]
    %v1732 = vld [vmem:[%s1726 + $0x28] sm:$0x3f]
    %v1733 = vmul.f32 %v1727, %v328
    %v1734 = vmul.f32 %v1728, %v328
    %v1735 = vmul.f32 %v1729, %v328
    %v1736 = vmul.f32 %v1730, %v328
    %v1737 = vmul.f32 %v1731, %v328
    %v1738 = vmul.f32 %v1732, %v328
    %v1739 = vadd.f32 %v1720, %v1733
    %v1740 = vadd.f32 %v1721, %v1734
    %v1741 = vadd.f32 %v1722, %v1735
    %v1742 = vadd.f32 %v1723, %v1736
    %v1743 = vadd.f32 %v1724, %v1737
    %v1744 = vadd.f32 %v1725, %v1738
    %s1745 = scalar_lea.vmem %s0, 792
    %v1746 = vld [vmem:[%s1745] sm:$0x3f]
    %v1747 = vld [vmem:[%s1745 + $0x8] sm:$0x3f]
    %v1748 = vld [vmem:[%s1745 + $0x10] sm:$0x3f]
    %v1749 = vld [vmem:[%s1745 + $0x18] sm:$0x3f]
    %v1750 = vld [vmem:[%s1745 + $0x20] sm:$0x3f]
    %v1751 = vld [vmem:[%s1745 + $0x28] sm:$0x3f]
    %v1752 = vmul.f32 %v1746, %v348
    %v1753 = vmul.f32 %v1747, %v348
    %v1754 = vmul.f32 %v1748, %v348
    %v1755 = vmul.f32 %v1749, %v348
    %v1756 = vmul.f32 %v1750, %v348
    %v1757 = vmul.f32 %v1751, %v348
    %v1758 = vadd.f32 %v1739, %v1752
    %v1759 = vadd.f32 %v1740, %v1753
    %v1760 = vadd.f32 %v1741, %v1754
    %v1761 = vadd.f32 %v1742, %v1755
    %v1762 = vadd.f32 %v1743, %v1756
    %v1763 = vadd.f32 %v1744, %v1757
    %s1764 = scalar_lea.vmem %s0, 848
    %v1765 = vld [vmem:[%s1764] sm:$0x3f]
    %v1766 = vld [vmem:[%s1764 + $0x8] sm:$0x3f]
    %v1767 = vld [vmem:[%s1764 + $0x10] sm:$0x3f]
    %v1768 = vld [vmem:[%s1764 + $0x18] sm:$0x3f]
    %v1769 = vld [vmem:[%s1764 + $0x20] sm:$0x3f]
    %v1770 = vld [vmem:[%s1764 + $0x28] sm:$0x3f]
    %v1771 = vmul.f32 %v1765, %v368
    %v1772 = vmul.f32 %v1766, %v368
    %v1773 = vmul.f32 %v1767, %v368
    %v1774 = vmul.f32 %v1768, %v368
    %v1775 = vmul.f32 %v1769, %v368
    %v1776 = vmul.f32 %v1770, %v368
    %v1777 = vadd.f32 %v1758, %v1771
    %v1778 = vadd.f32 %v1759, %v1772
    %v1779 = vadd.f32 %v1760, %v1773
    %v1780 = vadd.f32 %v1761, %v1774
    %v1781 = vadd.f32 %v1762, %v1775
    %v1782 = vadd.f32 %v1763, %v1776
    %v1783 = vmax.f32 %v1535, %v1777
    %v1784 = vmax.f32 %v1536, %v1778
    %v1785 = vmax.f32 %v1537, %v1779
    %v1786 = vmax.f32 %v1538, %v1780
    %v1787 = vmax.f32 %v1539, %v1781
    %v1788 = vmax.f32 %v1540, %v1782
    %v1789 = vmul.f32 %v990, %v74
    %v1790 = vmul.f32 %v991, %v74
    %v1791 = vmul.f32 %v992, %v74
    %v1792 = vmul.f32 %v993, %v74
    %v1793 = vmul.f32 %v994, %v74
    %v1794 = vmul.f32 %v995, %v74
    %v1795 = vmul.f32 %v1009, %v88
    %v1796 = vmul.f32 %v1010, %v88
    %v1797 = vmul.f32 %v1011, %v88
    %v1798 = vmul.f32 %v1012, %v88
    %v1799 = vmul.f32 %v1013, %v88
    %v1800 = vmul.f32 %v1014, %v88
    %v1801 = vadd.f32 %v1789, %v1795
    %v1802 = vadd.f32 %v1790, %v1796
    %v1803 = vadd.f32 %v1791, %v1797
    %v1804 = vadd.f32 %v1792, %v1798
    %v1805 = vadd.f32 %v1793, %v1799
    %v1806 = vadd.f32 %v1794, %v1800
    %v1807 = vmul.f32 %v1223, %v108
    %v1808 = vmul.f32 %v1224, %v108
    %v1809 = vmul.f32 %v1225, %v108
    %v1810 = vmul.f32 %v1226, %v108
    %v1811 = vmul.f32 %v1227, %v108
    %v1812 = vmul.f32 %v1228, %v108
    %v1813 = vadd.f32 %v1801, %v1807
    %v1814 = vadd.f32 %v1802, %v1808
    %v1815 = vadd.f32 %v1803, %v1809
    %v1816 = vadd.f32 %v1804, %v1810
    %v1817 = vadd.f32 %v1805, %v1811
    %v1818 = vadd.f32 %v1806, %v1812
    %v1819 = vmul.f32 %v1241, %v128
    %v1820 = vmul.f32 %v1242, %v128
    %v1821 = vmul.f32 %v1243, %v128
    %v1822 = vmul.f32 %v1244, %v128
    %v1823 = vmul.f32 %v1245, %v128
    %v1824 = vmul.f32 %v1246, %v128
    %v1825 = vadd.f32 %v1813, %v1819
    %v1826 = vadd.f32 %v1814, %v1820
    %v1827 = vadd.f32 %v1815, %v1821
    %v1828 = vadd.f32 %v1816, %v1822
    %v1829 = vadd.f32 %v1817, %v1823
    %v1830 = vadd.f32 %v1818, %v1824
    %v1831 = vmul.f32 %v1066, %v148
    %v1832 = vmul.f32 %v1067, %v148
    %v1833 = vmul.f32 %v1068, %v148
    %v1834 = vmul.f32 %v1069, %v148
    %v1835 = vmul.f32 %v1070, %v148
    %v1836 = vmul.f32 %v1071, %v148
    %v1837 = vadd.f32 %v1825, %v1831
    %v1838 = vadd.f32 %v1826, %v1832
    %v1839 = vadd.f32 %v1827, %v1833
    %v1840 = vadd.f32 %v1828, %v1834
    %v1841 = vadd.f32 %v1829, %v1835
    %v1842 = vadd.f32 %v1830, %v1836
    %v1843 = vmul.f32 %v1085, %v168
    %v1844 = vmul.f32 %v1086, %v168
    %v1845 = vmul.f32 %v1087, %v168
    %v1846 = vmul.f32 %v1088, %v168
    %v1847 = vmul.f32 %v1089, %v168
    %v1848 = vmul.f32 %v1090, %v168
    %v1849 = vadd.f32 %v1837, %v1843
    %v1850 = vadd.f32 %v1838, %v1844
    %v1851 = vadd.f32 %v1839, %v1845
    %v1852 = vadd.f32 %v1840, %v1846
    %v1853 = vadd.f32 %v1841, %v1847
    %v1854 = vadd.f32 %v1842, %v1848
    %v1855 = vmul.f32 %v1283, %v188
    %v1856 = vmul.f32 %v1284, %v188
    %v1857 = vmul.f32 %v1285, %v188
    %v1858 = vmul.f32 %v1286, %v188
    %v1859 = vmul.f32 %v1287, %v188
    %v1860 = vmul.f32 %v1288, %v188
    %v1861 = vadd.f32 %v1849, %v1855
    %v1862 = vadd.f32 %v1850, %v1856
    %v1863 = vadd.f32 %v1851, %v1857
    %v1864 = vadd.f32 %v1852, %v1858
    %v1865 = vadd.f32 %v1853, %v1859
    %v1866 = vadd.f32 %v1854, %v1860
    %v1867 = vmul.f32 %v1301, %v208
    %v1868 = vmul.f32 %v1302, %v208
    %v1869 = vmul.f32 %v1303, %v208
    %v1870 = vmul.f32 %v1304, %v208
    %v1871 = vmul.f32 %v1305, %v208
    %v1872 = vmul.f32 %v1306, %v208
    %v1873 = vadd.f32 %v1861, %v1867
    %v1874 = vadd.f32 %v1862, %v1868
    %v1875 = vadd.f32 %v1863, %v1869
    %v1876 = vadd.f32 %v1864, %v1870
    %v1877 = vadd.f32 %v1865, %v1871
    %v1878 = vadd.f32 %v1866, %v1872
    %v1879 = vmul.f32 %v1670, %v228
    %v1880 = vmul.f32 %v1671, %v228
    %v1881 = vmul.f32 %v1672, %v228
    %v1882 = vmul.f32 %v1673, %v228
    %v1883 = vmul.f32 %v1674, %v228
    %v1884 = vmul.f32 %v1675, %v228
    %v1885 = vadd.f32 %v1873, %v1879
    %v1886 = vadd.f32 %v1874, %v1880
    %v1887 = vadd.f32 %v1875, %v1881
    %v1888 = vadd.f32 %v1876, %v1882
    %v1889 = vadd.f32 %v1877, %v1883
    %v1890 = vadd.f32 %v1878, %v1884
    %v1891 = vmul.f32 %v1689, %v248
    %v1892 = vmul.f32 %v1690, %v248
    %v1893 = vmul.f32 %v1691, %v248
    %v1894 = vmul.f32 %v1692, %v248
    %v1895 = vmul.f32 %v1693, %v248
    %v1896 = vmul.f32 %v1694, %v248
    %v1897 = vadd.f32 %v1885, %v1891
    %v1898 = vadd.f32 %v1886, %v1892
    %v1899 = vadd.f32 %v1887, %v1893
    %v1900 = vadd.f32 %v1888, %v1894
    %v1901 = vadd.f32 %v1889, %v1895
    %v1902 = vadd.f32 %v1890, %v1896
    %v1903 = vld [vmem:[%s1631 + $0x1] sm:$0x3f]
    %v1904 = vld [vmem:[%s1631 + $0x9] sm:$0x3f]
    %v1905 = vld [vmem:[%s1631 + $0x11] sm:$0x3f]
    %v1906 = vld [vmem:[%s1631 + $0x19] sm:$0x3f]
    %v1907 = vld [vmem:[%s1631 + $0x21] sm:$0x3f]
    %v1908 = vld [vmem:[%s1631 + $0x29] sm:$0x3f]
    %v1909 = vmul.f32 %v1903, %v268
    %v1910 = vmul.f32 %v1904, %v268
    %v1911 = vmul.f32 %v1905, %v268
    %v1912 = vmul.f32 %v1906, %v268
    %v1913 = vmul.f32 %v1907, %v268
    %v1914 = vmul.f32 %v1908, %v268
    %v1915 = vadd.f32 %v1897, %v1909
    %v1916 = vadd.f32 %v1898, %v1910
    %v1917 = vadd.f32 %v1899, %v1911
    %v1918 = vadd.f32 %v1900, %v1912
    %v1919 = vadd.f32 %v1901, %v1913
    %v1920 = vadd.f32 %v1902, %v1914
    %v1921 = vld [vmem:[%s1650 + $0x1] sm:$0x3f]
    %v1922 = vld [vmem:[%s1650 + $0x9] sm:$0x3f]
    %v1923 = vld [vmem:[%s1650 + $0x11] sm:$0x3f]
    %v1924 = vld [vmem:[%s1650 + $0x19] sm:$0x3f]
    %v1925 = vld [vmem:[%s1650 + $0x21] sm:$0x3f]
    %v1926 = vld [vmem:[%s1650 + $0x29] sm:$0x3f]
    %v1927 = vmul.f32 %v1921, %v288
    %v1928 = vmul.f32 %v1922, %v288
    %v1929 = vmul.f32 %v1923, %v288
    %v1930 = vmul.f32 %v1924, %v288
    %v1931 = vmul.f32 %v1925, %v288
    %v1932 = vmul.f32 %v1926, %v288
    %v1933 = vadd.f32 %v1915, %v1927
    %v1934 = vadd.f32 %v1916, %v1928
    %v1935 = vadd.f32 %v1917, %v1929
    %v1936 = vadd.f32 %v1918, %v1930
    %v1937 = vadd.f32 %v1919, %v1931
    %v1938 = vadd.f32 %v1920, %v1932
    %v1939 = vmul.f32 %v1746, %v308
    %v1940 = vmul.f32 %v1747, %v308
    %v1941 = vmul.f32 %v1748, %v308
    %v1942 = vmul.f32 %v1749, %v308
    %v1943 = vmul.f32 %v1750, %v308
    %v1944 = vmul.f32 %v1751, %v308
    %v1945 = vadd.f32 %v1933, %v1939
    %v1946 = vadd.f32 %v1934, %v1940
    %v1947 = vadd.f32 %v1935, %v1941
    %v1948 = vadd.f32 %v1936, %v1942
    %v1949 = vadd.f32 %v1937, %v1943
    %v1950 = vadd.f32 %v1938, %v1944
    %v1951 = vmul.f32 %v1765, %v328
    %v1952 = vmul.f32 %v1766, %v328
    %v1953 = vmul.f32 %v1767, %v328
    %v1954 = vmul.f32 %v1768, %v328
    %v1955 = vmul.f32 %v1769, %v328
    %v1956 = vmul.f32 %v1770, %v328
    %v1957 = vadd.f32 %v1945, %v1951
    %v1958 = vadd.f32 %v1946, %v1952
    %v1959 = vadd.f32 %v1947, %v1953
    %v1960 = vadd.f32 %v1948, %v1954
    %v1961 = vadd.f32 %v1949, %v1955
    %v1962 = vadd.f32 %v1950, %v1956
    %v1963 = vld [vmem:[%s1707 + $0x1] sm:$0x3f]
    %v1964 = vld [vmem:[%s1707 + $0x9] sm:$0x3f]
    %v1965 = vld [vmem:[%s1707 + $0x11] sm:$0x3f]
    %v1966 = vld [vmem:[%s1707 + $0x19] sm:$0x3f]
    %v1967 = vld [vmem:[%s1707 + $0x21] sm:$0x3f]
    %v1968 = vld [vmem:[%s1707 + $0x29] sm:$0x3f]
    %v1969 = vmul.f32 %v1963, %v348
    %v1970 = vmul.f32 %v1964, %v348
    %v1971 = vmul.f32 %v1965, %v348
    %v1972 = vmul.f32 %v1966, %v348
    %v1973 = vmul.f32 %v1967, %v348
    %v1974 = vmul.f32 %v1968, %v348
    %v1975 = vadd.f32 %v1957, %v1969
    %v1976 = vadd.f32 %v1958, %v1970
    %v1977 = vadd.f32 %v1959, %v1971
    %v1978 = vadd.f32 %v1960, %v1972
    %v1979 = vadd.f32 %v1961, %v1973
    %v1980 = vadd.f32 %v1962, %v1974
    %v1981 = vld [vmem:[%s1726 + $0x1] sm:$0x3f]
    %v1982 = vld [vmem:[%s1726 + $0x9] sm:$0x3f]
    %v1983 = vld [vmem:[%s1726 + $0x11] sm:$0x3f]
    %v1984 = vld [vmem:[%s1726 + $0x19] sm:$0x3f]
    %v1985 = vld [vmem:[%s1726 + $0x21] sm:$0x3f]
    %v1986 = vld [vmem:[%s1726 + $0x29] sm:$0x3f]
    %v1987 = vmul.f32 %v1981, %v368
    %v1988 = vmul.f32 %v1982, %v368
    %v1989 = vmul.f32 %v1983, %v368
    %v1990 = vmul.f32 %v1984, %v368
    %v1991 = vmul.f32 %v1985, %v368
    %v1992 = vmul.f32 %v1986, %v368
    %v1993 = vadd.f32 %v1975, %v1987
    %v1994 = vadd.f32 %v1976, %v1988
    %v1995 = vadd.f32 %v1977, %v1989
    %v1996 = vadd.f32 %v1978, %v1990
    %v1997 = vadd.f32 %v1979, %v1991
    %v1998 = vadd.f32 %v1980, %v1992
    %v1999 = vmax.f32 %v1783, %v1993
    %v2000 = vmax.f32 %v1784, %v1994
    %v2001 = vmax.f32 %v1785, %v1995
    %v2002 = vmax.f32 %v1786, %v1996
    %v2003 = vmax.f32 %v1787, %v1997
    %v2004 = vmax.f32 %v1788, %v1998
    %v2005 = vmul.f32 %v1223, %v74
    %v2006 = vmul.f32 %v1224, %v74
    %v2007 = vmul.f32 %v1225, %v74
    %v2008 = vmul.f32 %v1226, %v74
    %v2009 = vmul.f32 %v1227, %v74
    %v2010 = vmul.f32 %v1228, %v74
    %v2011 = vmul.f32 %v1241, %v88
    %v2012 = vmul.f32 %v1242, %v88
    %v2013 = vmul.f32 %v1243, %v88
    %v2014 = vmul.f32 %v1244, %v88
    %v2015 = vmul.f32 %v1245, %v88
    %v2016 = vmul.f32 %v1246, %v88
    %v2017 = vadd.f32 %v2005, %v2011
    %v2018 = vadd.f32 %v2006, %v2012
    %v2019 = vadd.f32 %v2007, %v2013
    %v2020 = vadd.f32 %v2008, %v2014
    %v2021 = vadd.f32 %v2009, %v2015
    %v2022 = vadd.f32 %v2010, %v2016
    %v2023 = vmul.f32 %v1439, %v108
    %v2024 = vmul.f32 %v1440, %v108
    %v2025 = vmul.f32 %v1441, %v108
    %v2026 = vmul.f32 %v1442, %v108
    %v2027 = vmul.f32 %v1443, %v108
    %v2028 = vmul.f32 %v1444, %v108
    %v2029 = vadd.f32 %v2017, %v2023
    %v2030 = vadd.f32 %v2018, %v2024
    %v2031 = vadd.f32 %v2019, %v2025
    %v2032 = vadd.f32 %v2020, %v2026
    %v2033 = vadd.f32 %v2021, %v2027
    %v2034 = vadd.f32 %v2022, %v2028
    %v2035 = vmul.f32 %v1457, %v128
    %v2036 = vmul.f32 %v1458, %v128
    %v2037 = vmul.f32 %v1459, %v128
    %v2038 = vmul.f32 %v1460, %v128
    %v2039 = vmul.f32 %v1461, %v128
    %v2040 = vmul.f32 %v1462, %v128
    %v2041 = vadd.f32 %v2029, %v2035
    %v2042 = vadd.f32 %v2030, %v2036
    %v2043 = vadd.f32 %v2031, %v2037
    %v2044 = vadd.f32 %v2032, %v2038
    %v2045 = vadd.f32 %v2033, %v2039
    %v2046 = vadd.f32 %v2034, %v2040
    %v2047 = vmul.f32 %v1283, %v148
    %v2048 = vmul.f32 %v1284, %v148
    %v2049 = vmul.f32 %v1285, %v148
    %v2050 = vmul.f32 %v1286, %v148
    %v2051 = vmul.f32 %v1287, %v148
    %v2052 = vmul.f32 %v1288, %v148
    %v2053 = vadd.f32 %v2041, %v2047
    %v2054 = vadd.f32 %v2042, %v2048
    %v2055 = vadd.f32 %v2043, %v2049
    %v2056 = vadd.f32 %v2044, %v2050
    %v2057 = vadd.f32 %v2045, %v2051
    %v2058 = vadd.f32 %v2046, %v2052
    %v2059 = vmul.f32 %v1301, %v168
    %v2060 = vmul.f32 %v1302, %v168
    %v2061 = vmul.f32 %v1303, %v168
    %v2062 = vmul.f32 %v1304, %v168
    %v2063 = vmul.f32 %v1305, %v168
    %v2064 = vmul.f32 %v1306, %v168
    %v2065 = vadd.f32 %v2053, %v2059
    %v2066 = vadd.f32 %v2054, %v2060
    %v2067 = vadd.f32 %v2055, %v2061
    %v2068 = vadd.f32 %v2056, %v2062
    %v2069 = vadd.f32 %v2057, %v2063
    %v2070 = vadd.f32 %v2058, %v2064
    %v2071 = vmul.f32 %v1499, %v188
    %v2072 = vmul.f32 %v1500, %v188
    %v2073 = vmul.f32 %v1501, %v188
    %v2074 = vmul.f32 %v1502, %v188
    %v2075 = vmul.f32 %v1503, %v188
    %v2076 = vmul.f32 %v1504, %v188
    %v2077 = vadd.f32 %v2065, %v2071
    %v2078 = vadd.f32 %v2066, %v2072
    %v2079 = vadd.f32 %v2067, %v2073
    %v2080 = vadd.f32 %v2068, %v2074
    %v2081 = vadd.f32 %v2069, %v2075
    %v2082 = vadd.f32 %v2070, %v2076
    %v2083 = vmul.f32 %v1517, %v208
    %v2084 = vmul.f32 %v1518, %v208
    %v2085 = vmul.f32 %v1519, %v208
    %v2086 = vmul.f32 %v1520, %v208
    %v2087 = vmul.f32 %v1521, %v208
    %v2088 = vmul.f32 %v1522, %v208
    %v2089 = vadd.f32 %v2077, %v2083
    %v2090 = vadd.f32 %v2078, %v2084
    %v2091 = vadd.f32 %v2079, %v2085
    %v2092 = vadd.f32 %v2080, %v2086
    %v2093 = vadd.f32 %v2081, %v2087
    %v2094 = vadd.f32 %v2082, %v2088
    %v2095 = vmul.f32 %v1903, %v228
    %v2096 = vmul.f32 %v1904, %v228
    %v2097 = vmul.f32 %v1905, %v228
    %v2098 = vmul.f32 %v1906, %v228
    %v2099 = vmul.f32 %v1907, %v228
    %v2100 = vmul.f32 %v1908, %v228
    %v2101 = vadd.f32 %v2089, %v2095
    %v2102 = vadd.f32 %v2090, %v2096
    %v2103 = vadd.f32 %v2091, %v2097
    %v2104 = vadd.f32 %v2092, %v2098
    %v2105 = vadd.f32 %v2093, %v2099
    %v2106 = vadd.f32 %v2094, %v2100
    %v2107 = vmul.f32 %v1921, %v248
    %v2108 = vmul.f32 %v1922, %v248
    %v2109 = vmul.f32 %v1923, %v248
    %v2110 = vmul.f32 %v1924, %v248
    %v2111 = vmul.f32 %v1925, %v248
    %v2112 = vmul.f32 %v1926, %v248
    %v2113 = vadd.f32 %v2101, %v2107
    %v2114 = vadd.f32 %v2102, %v2108
    %v2115 = vadd.f32 %v2103, %v2109
    %v2116 = vadd.f32 %v2104, %v2110
    %v2117 = vadd.f32 %v2105, %v2111
    %v2118 = vadd.f32 %v2106, %v2112
    %v2119 = vld [vmem:[%s1669 + $0x1] sm:$0x3f]
    %v2120 = vld [vmem:[%s1669 + $0x9] sm:$0x3f]
    %v2121 = vld [vmem:[%s1669 + $0x11] sm:$0x3f]
    %v2122 = vld [vmem:[%s1669 + $0x19] sm:$0x3f]
    %v2123 = vld [vmem:[%s1669 + $0x21] sm:$0x3f]
    %v2124 = vld [vmem:[%s1669 + $0x29] sm:$0x3f]
    %v2125 = vmul.f32 %v2119, %v268
    %v2126 = vmul.f32 %v2120, %v268
    %v2127 = vmul.f32 %v2121, %v268
    %v2128 = vmul.f32 %v2122, %v268
    %v2129 = vmul.f32 %v2123, %v268
    %v2130 = vmul.f32 %v2124, %v268
    %v2131 = vadd.f32 %v2113, %v2125
    %v2132 = vadd.f32 %v2114, %v2126
    %v2133 = vadd.f32 %v2115, %v2127
    %v2134 = vadd.f32 %v2116, %v2128
    %v2135 = vadd.f32 %v2117, %v2129
    %v2136 = vadd.f32 %v2118, %v2130
    %v2137 = vld [vmem:[%s1688 + $0x1] sm:$0x3f]
    %v2138 = vld [vmem:[%s1688 + $0x9] sm:$0x3f]
    %v2139 = vld [vmem:[%s1688 + $0x11] sm:$0x3f]
    %v2140 = vld [vmem:[%s1688 + $0x19] sm:$0x3f]
    %v2141 = vld [vmem:[%s1688 + $0x21] sm:$0x3f]
    %v2142 = vld [vmem:[%s1688 + $0x29] sm:$0x3f]
    %v2143 = vmul.f32 %v2137, %v288
    %v2144 = vmul.f32 %v2138, %v288
    %v2145 = vmul.f32 %v2139, %v288
    %v2146 = vmul.f32 %v2140, %v288
    %v2147 = vmul.f32 %v2141, %v288
    %v2148 = vmul.f32 %v2142, %v288
    %v2149 = vadd.f32 %v2131, %v2143
    %v2150 = vadd.f32 %v2132, %v2144
    %v2151 = vadd.f32 %v2133, %v2145
    %v2152 = vadd.f32 %v2134, %v2146
    %v2153 = vadd.f32 %v2135, %v2147
    %v2154 = vadd.f32 %v2136, %v2148
    %v2155 = vmul.f32 %v1963, %v308
    %v2156 = vmul.f32 %v1964, %v308
    %v2157 = vmul.f32 %v1965, %v308
    %v2158 = vmul.f32 %v1966, %v308
    %v2159 = vmul.f32 %v1967, %v308
    %v2160 = vmul.f32 %v1968, %v308
    %v2161 = vadd.f32 %v2149, %v2155
    %v2162 = vadd.f32 %v2150, %v2156
    %v2163 = vadd.f32 %v2151, %v2157
    %v2164 = vadd.f32 %v2152, %v2158
    %v2165 = vadd.f32 %v2153, %v2159
    %v2166 = vadd.f32 %v2154, %v2160
    %v2167 = vmul.f32 %v1981, %v328
    %v2168 = vmul.f32 %v1982, %v328
    %v2169 = vmul.f32 %v1983, %v328
    %v2170 = vmul.f32 %v1984, %v328
    %v2171 = vmul.f32 %v1985, %v328
    %v2172 = vmul.f32 %v1986, %v328
    %v2173 = vadd.f32 %v2161, %v2167
    %v2174 = vadd.f32 %v2162, %v2168
    %v2175 = vadd.f32 %v2163, %v2169
    %v2176 = vadd.f32 %v2164, %v2170
    %v2177 = vadd.f32 %v2165, %v2171
    %v2178 = vadd.f32 %v2166, %v2172
    %v2179 = vld [vmem:[%s1745 + $0x1] sm:$0x3f]
    %v2180 = vld [vmem:[%s1745 + $0x9] sm:$0x3f]
    %v2181 = vld [vmem:[%s1745 + $0x11] sm:$0x3f]
    %v2182 = vld [vmem:[%s1745 + $0x19] sm:$0x3f]
    %v2183 = vld [vmem:[%s1745 + $0x21] sm:$0x3f]
    %v2184 = vld [vmem:[%s1745 + $0x29] sm:$0x3f]
    %v2185 = vmul.f32 %v2179, %v348
    %v2186 = vmul.f32 %v2180, %v348
    %v2187 = vmul.f32 %v2181, %v348
    %v2188 = vmul.f32 %v2182, %v348
    %v2189 = vmul.f32 %v2183, %v348
    %v2190 = vmul.f32 %v2184, %v348
    %v2191 = vadd.f32 %v2173, %v2185
    %v2192 = vadd.f32 %v2174, %v2186
    %v2193 = vadd.f32 %v2175, %v2187
    %v2194 = vadd.f32 %v2176, %v2188
    %v2195 = vadd.f32 %v2177, %v2189
    %v2196 = vadd.f32 %v2178, %v2190
    %v2197 = vld [vmem:[%s1764 + $0x1] sm:$0x3f]
    %v2198 = vld [vmem:[%s1764 + $0x9] sm:$0x3f]
    %v2199 = vld [vmem:[%s1764 + $0x11] sm:$0x3f]
    %v2200 = vld [vmem:[%s1764 + $0x19] sm:$0x3f]
    %v2201 = vld [vmem:[%s1764 + $0x21] sm:$0x3f]
    %v2202 = vld [vmem:[%s1764 + $0x29] sm:$0x3f]
    %v2203 = vmul.f32 %v2197, %v368
    %v2204 = vmul.f32 %v2198, %v368
    %v2205 = vmul.f32 %v2199, %v368
    %v2206 = vmul.f32 %v2200, %v368
    %v2207 = vmul.f32 %v2201, %v368
    %v2208 = vmul.f32 %v2202, %v368
    %v2209 = vadd.f32 %v2191, %v2203
    %v2210 = vadd.f32 %v2192, %v2204
    %v2211 = vadd.f32 %v2193, %v2205
    %v2212 = vadd.f32 %v2194, %v2206
    %v2213 = vadd.f32 %v2195, %v2207
    %v2214 = vadd.f32 %v2196, %v2208
    %v2215 = vmax.f32 %v1999, %v2209
    %v2216 = vmax.f32 %v2000, %v2210
    %v2217 = vmax.f32 %v2001, %v2211
    %v2218 = vmax.f32 %v2002, %v2212
    %v2219 = vmax.f32 %v2003, %v2213
    %v2220 = vmax.f32 %v2004, %v2214
    %s2221 = sld [smem:[#allocation2]]
    %v2222 = vstv %s2221
    %v2223 = vadd.f32 %v2215, %v2222
    %v2224 = vadd.f32 %v2216, %v2222
    %v2225 = vadd.f32 %v2217, %v2222
    %v2226 = vadd.f32 %v2218, %v2222
    %v2227 = vadd.f32 %v2219, %v2222
    %v2228 = vadd.f32 %v2220, %v2222
    %v2229 = vmax.f32 %v2223, 0.0
    %v2230 = vmax.f32 %v2224, 0.0
    %v2231 = vmax.f32 %v2225, 0.0
    %v2232 = vmax.f32 %v2226, 0.0
    %v2233 = vmax.f32 %v2227, 0.0
    %v2234 = vmax.f32 %v2228, 0.0
    %v2235 = vld [vmem:[%s3] sm:$0xf]
    %s2236 = scalar_lea.vmem %s3, 4
    %v2237 = vld [vmem:[%s2236] sm:$0xf]
    %vm2238 = vcmask 48128
    %v2240 = vsel %vm2238, %v2237, 0
    %vm2242 = vcmask 1045504
    %v2244 = vsel %vm2242, %v2230, 0
    %2246 = vmatprep.subr.mxu0 0.0
    %2247 = vmatpush1.msra.mxu0 0.0
    %2248 = vmatprep.subr.mxu0 0.0
    %2249 = vmatpush1.msra.mxu0 0.0
    %2250 = vmatprep.subr.mxu0 0.0
    %2251 = vmatpush1.msra.mxu0 0.0
    %2252 = vmatprep.subr.mxu0 0.0
    %2253 = vmatpush1.msra.mxu0 0.0
    %2254 = vmatprep.subr.mxu0 0.0
    %2255 = vmatpush1.msra.mxu0 0.0
    %2256 = vmatprep.subr.mxu0 0.0
    %2257 = vmatpush1.msra.mxu0 0.0
    %2258 = vmatprep.subr.mxu0 0.0
    %2259 = vmatpush1.msra.mxu0 0.0
    %2260 = vmatprep.subr.mxu0 0.0
    %2261 = vmatpush1.msra.mxu0 0.0
    %2262 = vmatprep.subr.mxu0 0.0
    %2263 = vmatpush1.msra.mxu0 0.0
    %2264 = vmatprep.subr.mxu0 0.0
    %2265 = vmatpush1.msra.mxu0 0.0
    %2266 = vmatprep.subr.mxu0 0.0
    %2267 = vmatpush1.msra.mxu0 0.0
    %2268 = vmatprep.subr.mxu0 0.0
    %2269 = vmatpush1.msra.mxu0 0.0
    %2270 = vmatprep.subr.mxu0 0.0
    %2271 = vmatpush1.msra.mxu0 0.0
    %2272 = vmatprep.subr.mxu0 0.0
    %2273 = vmatpush1.msra.mxu0 0.0
    %2274 = vmatprep.subr.mxu0 0.0
    %2275 = vmatpush1.msra.mxu0 0.0
    %2276 = vmatprep.subr.mxu0 0.0
    %2277 = vmatpush1.msra.mxu0 %v2244
    %2278 = vmatprep.subr.mxu0 0.0
    %2279 = vmatpush2.msra.mxu0 0.0
    %2280 = vmatprep.subr.mxu0 0.0
    %2281 = vmatpush2.msra.mxu0 0.0
    %2282 = vmatprep.subr.mxu0 0.0
    %2283 = vmatpush2.msra.mxu0 0.0
    %2284 = vmatprep.subr.mxu0 0.0
    %2285 = vmatpush2.msra.mxu0 0.0
    %2286 = vmatprep.subr.mxu0 0.0
    %2287 = vmatpush2.msra.mxu0 0.0
    %2288 = vmatprep.subr.mxu0 0.0
    %2289 = vmatpush2.msra.mxu0 0.0
    %2290 = vmatprep.subr.mxu0 0.0
    %2291 = vmatpush2.msra.mxu0 0.0
    %2292 = vmatprep.subr.mxu0 0.0
    %2293 = vmatpush2.msra.mxu0 0.0
    %2294 = vmatprep.subr.mxu0 0.0
    %2295 = vmatpush2.msra.mxu0 0.0
    %2296 = vmatprep.subr.mxu0 0.0
    %2297 = vmatpush2.msra.mxu0 0.0
    %2298 = vmatprep.subr.mxu0 0.0
    %2299 = vmatpush2.msra.mxu0 0.0
    %2300 = vmatprep.subr.mxu0 0.0
    %2301 = vmatpush2.msra.mxu0 0.0
    %2302 = vmatprep.subr.mxu0 0.0
    %2303 = vmatpush2.msra.mxu0 0.0
    %2304 = vmatprep.subr.mxu0 0.0
    %2305 = vmatpush2.msra.mxu0 0.0
    %2306 = vmatprep.subr.mxu0 0.0
    %2307 = vmatpush2.msra.mxu0 0.0
    %2308 = vmatprep.subr.mxu0 0.0
    %2309 = vmatpush2.msra.mxu0 0.0
    %2310 = vmatprep.mubr.f32.mxu0 0.0
    %2311 = vmatmul.mubr.f32.gmra.mxu0 %v2240
    %v2312 = vpop.f32.mrf.mxu0
    %v2313 = vadd.f32 0.0, %v2312
    %v2314 = vpop.f32.mrf.mxu0
    %2315 = vdwg.mxu0
    %v2317 = vsel %vm2238, %v2235, 0
    %v2320 = vsel %vm2242, %v2229, 0
    %2322 = vmatprep.subr.mxu0 0.0
    %2323 = vmatpush1.msra.mxu0 0.0
    %2324 = vmatprep.subr.mxu0 0.0
    %2325 = vmatpush1.msra.mxu0 0.0
    %2326 = vmatprep.subr.mxu0 0.0
    %2327 = vmatpush1.msra.mxu0 0.0
    %2328 = vmatprep.subr.mxu0 0.0
    %2329 = vmatpush1.msra.mxu0 0.0
    %2330 = vmatprep.subr.mxu0 0.0
    %2331 = vmatpush1.msra.mxu0 0.0
    %2332 = vmatprep.subr.mxu0 0.0
    %2333 = vmatpush1.msra.mxu0 0.0
    %2334 = vmatprep.subr.mxu0 0.0
    %2335 = vmatpush1.msra.mxu0 0.0
    %2336 = vmatprep.subr.mxu0 0.0
    %2337 = vmatpush1.msra.mxu0 0.0
    %2338 = vmatprep.subr.mxu0 0.0
    %2339 = vmatpush1.msra.mxu0 0.0
    %2340 = vmatprep.subr.mxu0 0.0
    %2341 = vmatpush1.msra.mxu0 0.0
    %2342 = vmatprep.subr.mxu0 0.0
    %2343 = vmatpush1.msra.mxu0 0.0
    %2344 = vmatprep.subr.mxu0 0.0
    %2345 = vmatpush1.msra.mxu0 0.0
    %2346 = vmatprep.subr.mxu0 0.0
    %2347 = vmatpush1.msra.mxu0 0.0
    %2348 = vmatprep.subr.mxu0 0.0
    %2349 = vmatpush1.msra.mxu0 0.0
    %2350 = vmatprep.subr.mxu0 0.0
    %2351 = vmatpush1.msra.mxu0 0.0
    %2352 = vmatprep.subr.mxu0 0.0
    %2353 = vmatpush1.msra.mxu0 %v2320
    %2354 = vmatprep.subr.mxu0 0.0
    %2355 = vmatpush2.msra.mxu0 0.0
    %2356 = vmatprep.subr.mxu0 0.0
    %2357 = vmatpush2.msra.mxu0 0.0
    %2358 = vmatprep.subr.mxu0 0.0
    %2359 = vmatpush2.msra.mxu0 0.0
    %2360 = vmatprep.subr.mxu0 0.0
    %2361 = vmatpush2.msra.mxu0 0.0
    %2362 = vmatprep.subr.mxu0 0.0
    %2363 = vmatpush2.msra.mxu0 0.0
    %2364 = vmatprep.subr.mxu0 0.0
    %2365 = vmatpush2.msra.mxu0 0.0
    %2366 = vmatprep.subr.mxu0 0.0
    %2367 = vmatpush2.msra.mxu0 0.0
    %2368 = vmatprep.subr.mxu0 0.0
    %2369 = vmatpush2.msra.mxu0 0.0
    %2370 = vmatprep.subr.mxu0 0.0
    %2371 = vmatpush2.msra.mxu0 0.0
    %2372 = vmatprep.subr.mxu0 0.0
    %2373 = vmatpush2.msra.mxu0 0.0
    %2374 = vmatprep.subr.mxu0 0.0
    %2375 = vmatpush2.msra.mxu0 0.0
    %2376 = vmatprep.subr.mxu0 0.0
    %2377 = vmatpush2.msra.mxu0 0.0
    %2378 = vmatprep.subr.mxu0 0.0
    %2379 = vmatpush2.msra.mxu0 0.0
    %2380 = vmatprep.subr.mxu0 0.0
    %2381 = vmatpush2.msra.mxu0 0.0
    %2382 = vmatprep.subr.mxu0 0.0
    %2383 = vmatpush2.msra.mxu0 0.0
    %2384 = vmatprep.subr.mxu0 0.0
    %2385 = vmatpush2.msra.mxu0 0.0
    %2386 = vmatprep.mubr.f32.mxu0 0.0
    %2387 = vmatmul.mubr.f32.gmra.mxu0 %v2317
    %v2388 = vpop.f32.mrf.mxu0
    %v2389 = vadd.f32 %v2313, %v2388
    %v2390 = vpop.f32.mrf.mxu0
    %2391 = vdwg.mxu0
    %s2392 = scalar_lea.vmem %s3, 8
    %v2393 = vld [vmem:[%s2392] sm:$0xf]
    %v2395 = vsel %vm2238, %v2393, 0
    %v2398 = vsel %vm2242, %v2231, 0
    %2400 = vmatprep.subr.mxu0 0.0
    %2401 = vmatpush1.msra.mxu0 0.0
    %2402 = vmatprep.subr.mxu0 0.0
    %2403 = vmatpush1.msra.mxu0 0.0
    %2404 = vmatprep.subr.mxu0 0.0
    %2405 = vmatpush1.msra.mxu0 0.0
    %2406 = vmatprep.subr.mxu0 0.0
    %2407 = vmatpush1.msra.mxu0 0.0
    %2408 = vmatprep.subr.mxu0 0.0
    %2409 = vmatpush1.msra.mxu0 0.0
    %2410 = vmatprep.subr.mxu0 0.0
    %2411 = vmatpush1.msra.mxu0 0.0
    %2412 = vmatprep.subr.mxu0 0.0
    %2413 = vmatpush1.msra.mxu0 0.0
    %2414 = vmatprep.subr.mxu0 0.0
    %2415 = vmatpush1.msra.mxu0 0.0
    %2416 = vmatprep.subr.mxu0 0.0
    %2417 = vmatpush1.msra.mxu0 0.0
    %2418 = vmatprep.subr.mxu0 0.0
    %2419 = vmatpush1.msra.mxu0 0.0
    %2420 = vmatprep.subr.mxu0 0.0
    %2421 = vmatpush1.msra.mxu0 0.0
    %2422 = vmatprep.subr.mxu0 0.0
    %2423 = vmatpush1.msra.mxu0 0.0
    %2424 = vmatprep.subr.mxu0 0.0
    %2425 = vmatpush1.msra.mxu0 0.0
    %2426 = vmatprep.subr.mxu0 0.0
    %2427 = vmatpush1.msra.mxu0 0.0
    %2428 = vmatprep.subr.mxu0 0.0
    %2429 = vmatpush1.msra.mxu0 0.0
    %2430 = vmatprep.subr.mxu0 0.0
    %2431 = vmatpush1.msra.mxu0 %v2398
    %2432 = vmatprep.subr.mxu0 0.0
    %2433 = vmatpush2.msra.mxu0 0.0
    %2434 = vmatprep.subr.mxu0 0.0
    %2435 = vmatpush2.msra.mxu0 0.0
    %2436 = vmatprep.subr.mxu0 0.0
    %2437 = vmatpush2.msra.mxu0 0.0
    %2438 = vmatprep.subr.mxu0 0.0
    %2439 = vmatpush2.msra.mxu0 0.0
    %2440 = vmatprep.subr.mxu0 0.0
    %2441 = vmatpush2.msra.mxu0 0.0
    %2442 = vmatprep.subr.mxu0 0.0
    %2443 = vmatpush2.msra.mxu0 0.0
    %2444 = vmatprep.subr.mxu0 0.0
    %2445 = vmatpush2.msra.mxu0 0.0
    %2446 = vmatprep.subr.mxu0 0.0
    %2447 = vmatpush2.msra.mxu0 0.0
    %2448 = vmatprep.subr.mxu0 0.0
    %2449 = vmatpush2.msra.mxu0 0.0
    %2450 = vmatprep.subr.mxu0 0.0
    %2451 = vmatpush2.msra.mxu0 0.0
    %2452 = vmatprep.subr.mxu0 0.0
    %2453 = vmatpush2.msra.mxu0 0.0
    %2454 = vmatprep.subr.mxu0 0.0
    %2455 = vmatpush2.msra.mxu0 0.0
    %2456 = vmatprep.subr.mxu0 0.0
    %2457 = vmatpush2.msra.mxu0 0.0
    %2458 = vmatprep.subr.mxu0 0.0
    %2459 = vmatpush2.msra.mxu0 0.0
    %2460 = vmatprep.subr.mxu0 0.0
    %2461 = vmatpush2.msra.mxu0 0.0
    %2462 = vmatprep.subr.mxu0 0.0
    %2463 = vmatpush2.msra.mxu0 0.0
    %2464 = vmatprep.mubr.f32.mxu0 0.0
    %2465 = vmatmul.mubr.f32.gmra.mxu0 %v2395
    %v2466 = vpop.f32.mrf.mxu0
    %v2467 = vadd.f32 0.0, %v2466
    %v2468 = vpop.f32.mrf.mxu0
    %2469 = vdwg.mxu0
    %v2470 = vadd.f32 %v2389, %v2467
    %s2471 = scalar_lea.vmem %s3, 12
    %v2472 = vld [vmem:[%s2471] sm:$0xf]
    %v2474 = vsel %vm2238, %v2472, 0
    %v2477 = vsel %vm2242, %v2232, 0
    %2479 = vmatprep.subr.mxu0 0.0
    %2480 = vmatpush1.msra.mxu0 0.0
    %2481 = vmatprep.subr.mxu0 0.0
    %2482 = vmatpush1.msra.mxu0 0.0
    %2483 = vmatprep.subr.mxu0 0.0
    %2484 = vmatpush1.msra.mxu0 0.0
    %2485 = vmatprep.subr.mxu0 0.0
    %2486 = vmatpush1.msra.mxu0 0.0
    %2487 = vmatprep.subr.mxu0 0.0
    %2488 = vmatpush1.msra.mxu0 0.0
    %2489 = vmatprep.subr.mxu0 0.0
    %2490 = vmatpush1.msra.mxu0 0.0
    %2491 = vmatprep.subr.mxu0 0.0
    %2492 = vmatpush1.msra.mxu0 0.0
    %2493 = vmatprep.subr.mxu0 0.0
    %2494 = vmatpush1.msra.mxu0 0.0
    %2495 = vmatprep.subr.mxu0 0.0
    %2496 = vmatpush1.msra.mxu0 0.0
    %2497 = vmatprep.subr.mxu0 0.0
    %2498 = vmatpush1.msra.mxu0 0.0
    %2499 = vmatprep.subr.mxu0 0.0
    %2500 = vmatpush1.msra.mxu0 0.0
    %2501 = vmatprep.subr.mxu0 0.0
    %2502 = vmatpush1.msra.mxu0 0.0
    %2503 = vmatprep.subr.mxu0 0.0
    %2504 = vmatpush1.msra.mxu0 0.0
    %2505 = vmatprep.subr.mxu0 0.0
    %2506 = vmatpush1.msra.mxu0 0.0
    %2507 = vmatprep.subr.mxu0 0.0
    %2508 = vmatpush1.msra.mxu0 0.0
    %2509 = vmatprep.subr.mxu0 0.0
    %2510 = vmatpush1.msra.mxu0 %v2477
    %2511 = vmatprep.subr.mxu0 0.0
    %2512 = vmatpush2.msra.mxu0 0.0
    %2513 = vmatprep.subr.mxu0 0.0
    %2514 = vmatpush2.msra.mxu0 0.0
    %2515 = vmatprep.subr.mxu0 0.0
    %2516 = vmatpush2.msra.mxu0 0.0
    %2517 = vmatprep.subr.mxu0 0.0
    %2518 = vmatpush2.msra.mxu0 0.0
    %2519 = vmatprep.subr.mxu0 0.0
    %2520 = vmatpush2.msra.mxu0 0.0
    %2521 = vmatprep.subr.mxu0 0.0
    %2522 = vmatpush2.msra.mxu0 0.0
    %2523 = vmatprep.subr.mxu0 0.0
    %2524 = vmatpush2.msra.mxu0 0.0
    %2525 = vmatprep.subr.mxu0 0.0
    %2526 = vmatpush2.msra.mxu0 0.0
    %2527 = vmatprep.subr.mxu0 0.0
    %2528 = vmatpush2.msra.mxu0 0.0
    %2529 = vmatprep.subr.mxu0 0.0
    %2530 = vmatpush2.msra.mxu0 0.0
    %2531 = vmatprep.subr.mxu0 0.0
    %2532 = vmatpush2.msra.mxu0 0.0
    %2533 = vmatprep.subr.mxu0 0.0
    %2534 = vmatpush2.msra.mxu0 0.0
    %2535 = vmatprep.subr.mxu0 0.0
    %2536 = vmatpush2.msra.mxu0 0.0
    %2537 = vmatprep.subr.mxu0 0.0
    %2538 = vmatpush2.msra.mxu0 0.0
    %2539 = vmatprep.subr.mxu0 0.0
    %2540 = vmatpush2.msra.mxu0 0.0
    %2541 = vmatprep.subr.mxu0 0.0
    %2542 = vmatpush2.msra.mxu0 0.0
    %2543 = vmatprep.mubr.f32.mxu0 0.0
    %2544 = vmatmul.mubr.f32.gmra.mxu0 %v2474
    %v2545 = vpop.f32.mrf.mxu0
    %v2546 = vadd.f32 0.0, %v2545
    %v2547 = vpop.f32.mrf.mxu0
    %2548 = vdwg.mxu0
    %v2549 = vadd.f32 %v2470, %v2546
    %s2550 = scalar_lea.vmem %s3, 16
    %v2551 = vld [vmem:[%s2550] sm:$0xf]
    %v2553 = vsel %vm2238, %v2551, 0
    %v2556 = vsel %vm2242, %v2233, 0
    %2558 = vmatprep.subr.mxu0 0.0
    %2559 = vmatpush1.msra.mxu0 0.0
    %2560 = vmatprep.subr.mxu0 0.0
    %2561 = vmatpush1.msra.mxu0 0.0
    %2562 = vmatprep.subr.mxu0 0.0
    %2563 = vmatpush1.msra.mxu0 0.0
    %2564 = vmatprep.subr.mxu0 0.0
    %2565 = vmatpush1.msra.mxu0 0.0
    %2566 = vmatprep.subr.mxu0 0.0
    %2567 = vmatpush1.msra.mxu0 0.0
    %2568 = vmatprep.subr.mxu0 0.0
    %2569 = vmatpush1.msra.mxu0 0.0
    %2570 = vmatprep.subr.mxu0 0.0
    %2571 = vmatpush1.msra.mxu0 0.0
    %2572 = vmatprep.subr.mxu0 0.0
    %2573 = vmatpush1.msra.mxu0 0.0
    %2574 = vmatprep.subr.mxu0 0.0
    %2575 = vmatpush1.msra.mxu0 0.0
    %2576 = vmatprep.subr.mxu0 0.0
    %2577 = vmatpush1.msra.mxu0 0.0
    %2578 = vmatprep.subr.mxu0 0.0
    %2579 = vmatpush1.msra.mxu0 0.0
    %2580 = vmatprep.subr.mxu0 0.0
    %2581 = vmatpush1.msra.mxu0 0.0
    %2582 = vmatprep.subr.mxu0 0.0
    %2583 = vmatpush1.msra.mxu0 0.0
    %2584 = vmatprep.subr.mxu0 0.0
    %2585 = vmatpush1.msra.mxu0 0.0
    %2586 = vmatprep.subr.mxu0 0.0
    %2587 = vmatpush1.msra.mxu0 0.0
    %2588 = vmatprep.subr.mxu0 0.0
    %2589 = vmatpush1.msra.mxu0 %v2556
    %2590 = vmatprep.subr.mxu0 0.0
    %2591 = vmatpush2.msra.mxu0 0.0
    %2592 = vmatprep.subr.mxu0 0.0
    %2593 = vmatpush2.msra.mxu0 0.0
    %2594 = vmatprep.subr.mxu0 0.0
    %2595 = vmatpush2.msra.mxu0 0.0
    %2596 = vmatprep.subr.mxu0 0.0
    %2597 = vmatpush2.msra.mxu0 0.0
    %2598 = vmatprep.subr.mxu0 0.0
    %2599 = vmatpush2.msra.mxu0 0.0
    %2600 = vmatprep.subr.mxu0 0.0
    %2601 = vmatpush2.msra.mxu0 0.0
    %2602 = vmatprep.subr.mxu0 0.0
    %2603 = vmatpush2.msra.mxu0 0.0
    %2604 = vmatprep.subr.mxu0 0.0
    %2605 = vmatpush2.msra.mxu0 0.0
    %2606 = vmatprep.subr.mxu0 0.0
    %2607 = vmatpush2.msra.mxu0 0.0
    %2608 = vmatprep.subr.mxu0 0.0
    %2609 = vmatpush2.msra.mxu0 0.0
    %2610 = vmatprep.subr.mxu0 0.0
    %2611 = vmatpush2.msra.mxu0 0.0
    %2612 = vmatprep.subr.mxu0 0.0
    %2613 = vmatpush2.msra.mxu0 0.0
    %2614 = vmatprep.subr.mxu0 0.0
    %2615 = vmatpush2.msra.mxu0 0.0
    %2616 = vmatprep.subr.mxu0 0.0
    %2617 = vmatpush2.msra.mxu0 0.0
    %2618 = vmatprep.subr.mxu0 0.0
    %2619 = vmatpush2.msra.mxu0 0.0
    %2620 = vmatprep.subr.mxu0 0.0
    %2621 = vmatpush2.msra.mxu0 0.0
    %2622 = vmatprep.mubr.f32.mxu0 0.0
    %2623 = vmatmul.mubr.f32.gmra.mxu0 %v2553
    %v2624 = vpop.f32.mrf.mxu0
    %v2625 = vadd.f32 0.0, %v2624
    %v2626 = vpop.f32.mrf.mxu0
    %2627 = vdwg.mxu0
    %v2628 = vadd.f32 %v2549, %v2625
    %s2629 = scalar_lea.vmem %s3, 20
    %v2630 = vld [vmem:[%s2629] sm:$0xf]
    %v2632 = vsel %vm2238, %v2630, 0
    %v2635 = vsel %vm2242, %v2234, 0
    %2637 = vmatprep.subr.mxu0 0.0
    %2638 = vmatpush1.msra.mxu0 0.0
    %2639 = vmatprep.subr.mxu0 0.0
    %2640 = vmatpush1.msra.mxu0 0.0
    %2641 = vmatprep.subr.mxu0 0.0
    %2642 = vmatpush1.msra.mxu0 0.0
    %2643 = vmatprep.subr.mxu0 0.0
    %2644 = vmatpush1.msra.mxu0 0.0
    %2645 = vmatprep.subr.mxu0 0.0
    %2646 = vmatpush1.msra.mxu0 0.0
    %2647 = vmatprep.subr.mxu0 0.0
    %2648 = vmatpush1.msra.mxu0 0.0
    %2649 = vmatprep.subr.mxu0 0.0
    %2650 = vmatpush1.msra.mxu0 0.0
    %2651 = vmatprep.subr.mxu0 0.0
    %2652 = vmatpush1.msra.mxu0 0.0
    %2653 = vmatprep.subr.mxu0 0.0
    %2654 = vmatpush1.msra.mxu0 0.0
    %2655 = vmatprep.subr.mxu0 0.0
    %2656 = vmatpush1.msra.mxu0 0.0
    %2657 = vmatprep.subr.mxu0 0.0
    %2658 = vmatpush1.msra.mxu0 0.0
    %2659 = vmatprep.subr.mxu0 0.0
    %2660 = vmatpush1.msra.mxu0 0.0
    %2661 = vmatprep.subr.mxu0 0.0
    %2662 = vmatpush1.msra.mxu0 0.0
    %2663 = vmatprep.subr.mxu0 0.0
    %2664 = vmatpush1.msra.mxu0 0.0
    %2665 = vmatprep.subr.mxu0 0.0
    %2666 = vmatpush1.msra.mxu0 0.0
    %2667 = vmatprep.subr.mxu0 0.0
    %2668 = vmatpush1.msra.mxu0 %v2635
    %2669 = vmatprep.subr.mxu0 0.0
    %2670 = vmatpush2.msra.mxu0 0.0
    %2671 = vmatprep.subr.mxu0 0.0
    %2672 = vmatpush2.msra.mxu0 0.0
    %2673 = vmatprep.subr.mxu0 0.0
    %2674 = vmatpush2.msra.mxu0 0.0
    %2675 = vmatprep.subr.mxu0 0.0
    %2676 = vmatpush2.msra.mxu0 0.0
    %2677 = vmatprep.subr.mxu0 0.0
    %2678 = vmatpush2.msra.mxu0 0.0
    %2679 = vmatprep.subr.mxu0 0.0
    %2680 = vmatpush2.msra.mxu0 0.0
    %2681 = vmatprep.subr.mxu0 0.0
    %2682 = vmatpush2.msra.mxu0 0.0
    %2683 = vmatprep.subr.mxu0 0.0
    %2684 = vmatpush2.msra.mxu0 0.0
    %2685 = vmatprep.subr.mxu0 0.0
    %2686 = vmatpush2.msra.mxu0 0.0
    %2687 = vmatprep.subr.mxu0 0.0
    %2688 = vmatpush2.msra.mxu0 0.0
    %2689 = vmatprep.subr.mxu0 0.0
    %2690 = vmatpush2.msra.mxu0 0.0
    %2691 = vmatprep.subr.mxu0 0.0
    %2692 = vmatpush2.msra.mxu0 0.0
    %2693 = vmatprep.subr.mxu0 0.0
    %2694 = vmatpush2.msra.mxu0 0.0
    %2695 = vmatprep.subr.mxu0 0.0
    %2696 = vmatpush2.msra.mxu0 0.0
    %2697 = vmatprep.subr.mxu0 0.0
    %2698 = vmatpush2.msra.mxu0 0.0
    %2699 = vmatprep.subr.mxu0 0.0
    %2700 = vmatpush2.msra.mxu0 0.0
    %2701 = vmatprep.mubr.f32.mxu0 0.0
    %2702 = vmatmul.mubr.f32.gmra.mxu0 %v2632
    %v2703 = vpop.f32.mrf.mxu0
    %v2704 = vadd.f32 0.0, %v2703
    %v2705 = vpop.f32.mrf.mxu0
    %2706 = vdwg.mxu0
    %v2707 = vadd.f32 %v2628, %v2704
    %v2708 = vld [vmem:[%s4] sm:$0xf]
    %2710 = vset.pattern.permute.xlu0 0
    %2711 = vperm.xlu0 %2710, %v2708
    %v2712 = vpop.permute.xlu0 %2711
    %v2714 = vadd.f32 %v2707, %v2712
    %v2715 = vmax.f32 %v2714, 0.0
    %v2716 = vld [vmem:[%s5] sm:$0xf]
    %v2717 = vld [vmem:[%s6] sm:$0xf]
    %2719 = vset.pattern.permute.xlu0 0
    %2720 = vperm.xlu0 %2719, %v2717
    %v2721 = vpop.permute.xlu0 %2720
    %vm2723 = vcmask 31744
    %v2725 = vsel %vm2723, %v2716, 0
    %vm2727 = vcmask 1043456
    %v2729 = vsel %vm2727, %v2715, 0
    %2731 = vmatprep.subr.mxu0 0.0
    %2732 = vmatpush1.msra.mxu0 0.0
    %2733 = vmatprep.subr.mxu0 0.0
    %2734 = vmatpush1.msra.mxu0 0.0
    %2735 = vmatprep.subr.mxu0 0.0
    %2736 = vmatpush1.msra.mxu0 0.0
    %2737 = vmatprep.subr.mxu0 0.0
    %2738 = vmatpush1.msra.mxu0 0.0
    %2739 = vmatprep.subr.mxu0 0.0
    %2740 = vmatpush1.msra.mxu0 0.0
    %2741 = vmatprep.subr.mxu0 0.0
    %2742 = vmatpush1.msra.mxu0 0.0
    %2743 = vmatprep.subr.mxu0 0.0
    %2744 = vmatpush1.msra.mxu0 0.0
    %2745 = vmatprep.subr.mxu0 0.0
    %2746 = vmatpush1.msra.mxu0 0.0
    %2747 = vmatprep.subr.mxu0 0.0
    %2748 = vmatpush1.msra.mxu0 0.0
    %2749 = vmatprep.subr.mxu0 0.0
    %2750 = vmatpush1.msra.mxu0 0.0
    %2751 = vmatprep.subr.mxu0 0.0
    %2752 = vmatpush1.msra.mxu0 0.0
    %2753 = vmatprep.subr.mxu0 0.0
    %2754 = vmatpush1.msra.mxu0 0.0
    %2755 = vmatprep.subr.mxu0 0.0
    %2756 = vmatpush1.msra.mxu0 0.0
    %2757 = vmatprep.subr.mxu0 0.0
    %2758 = vmatpush1.msra.mxu0 0.0
    %2759 = vmatprep.subr.mxu0 0.0
    %2760 = vmatpush1.msra.mxu0 0.0
    %2761 = vmatprep.subr.mxu0 0.0
    %2762 = vmatpush1.msra.mxu0 %v2729
    %2763 = vmatprep.subr.mxu0 0.0
    %2764 = vmatpush2.msra.mxu0 0.0
    %2765 = vmatprep.subr.mxu0 0.0
    %2766 = vmatpush2.msra.mxu0 0.0
    %2767 = vmatprep.subr.mxu0 0.0
    %2768 = vmatpush2.msra.mxu0 0.0
    %2769 = vmatprep.subr.mxu0 0.0
    %2770 = vmatpush2.msra.mxu0 0.0
    %2771 = vmatprep.subr.mxu0 0.0
    %2772 = vmatpush2.msra.mxu0 0.0
    %2773 = vmatprep.subr.mxu0 0.0
    %2774 = vmatpush2.msra.mxu0 0.0
    %2775 = vmatprep.subr.mxu0 0.0
    %2776 = vmatpush2.msra.mxu0 0.0
    %2777 = vmatprep.subr.mxu0 0.0
    %2778 = vmatpush2.msra.mxu0 0.0
    %2779 = vmatprep.subr.mxu0 0.0
    %2780 = vmatpush2.msra.mxu0 0.0
    %2781 = vmatprep.subr.mxu0 0.0
    %2782 = vmatpush2.msra.mxu0 0.0
    %2783 = vmatprep.subr.mxu0 0.0
    %2784 = vmatpush2.msra.mxu0 0.0
    %2785 = vmatprep.subr.mxu0 0.0
    %2786 = vmatpush2.msra.mxu0 0.0
    %2787 = vmatprep.subr.mxu0 0.0
    %2788 = vmatpush2.msra.mxu0 0.0
    %2789 = vmatprep.subr.mxu0 0.0
    %2790 = vmatpush2.msra.mxu0 0.0
    %2791 = vmatprep.subr.mxu0 0.0
    %2792 = vmatpush2.msra.mxu0 0.0
    %2793 = vmatprep.subr.mxu0 0.0
    %2794 = vmatpush2.msra.mxu0 0.0
    %2795 = vmatprep.mubr.f32.mxu0 0.0
    %2796 = vmatmul.mubr.f32.gmra.mxu0 %v2725
    %v2797 = vpop.f32.mrf.mxu0
    %v2798 = vadd.f32 %v2721, %v2797
    %v2799 = vpop.f32.mrf.mxu0
    %2800 = vdwg.mxu0
    %v2801 = vadd.f32 %v2798, %v2715
    %v2802 = vmax.f32 %v2801, 0.0
    %v2803 = vld [vmem:[%s7] sm:$0xf]
    %v2804 = vld [vmem:[%s8] sm:$0xf]
    %2806 = vset.pattern.permute.xlu0 0
    %2807 = vperm.xlu0 %2806, %v2804
    %v2808 = vpop.permute.xlu0 %2807
    %v2811 = vsel %vm2723, %v2803, 0
    %v2814 = vsel %vm2727, %v2802, 0
    %2816 = vmatprep.subr.mxu0 0.0
    %2817 = vmatpush1.msra.mxu0 0.0
    %2818 = vmatprep.subr.mxu0 0.0
    %2819 = vmatpush1.msra.mxu0 0.0
    %2820 = vmatprep.subr.mxu0 0.0
    %2821 = vmatpush1.msra.mxu0 0.0
    %2822 = vmatprep.subr.mxu0 0.0
    %2823 = vmatpush1.msra.mxu0 0.0
    %2824 = vmatprep.subr.mxu0 0.0
    %2825 = vmatpush1.msra.mxu0 0.0
    %2826 = vmatprep.subr.mxu0 0.0
    %2827 = vmatpush1.msra.mxu0 0.0
    %2828 = vmatprep.subr.mxu0 0.0
    %2829 = vmatpush1.msra.mxu0 0.0
    %2830 = vmatprep.subr.mxu0 0.0
    %2831 = vmatpush1.msra.mxu0 0.0
    %2832 = vmatprep.subr.mxu0 0.0
    %2833 = vmatpush1.msra.mxu0 0.0
    %2834 = vmatprep.subr.mxu0 0.0
    %2835 = vmatpush1.msra.mxu0 0.0
    %2836 = vmatprep.subr.mxu0 0.0
    %2837 = vmatpush1.msra.mxu0 0.0
    %2838 = vmatprep.subr.mxu0 0.0
    %2839 = vmatpush1.msra.mxu0 0.0
    %2840 = vmatprep.subr.mxu0 0.0
    %2841 = vmatpush1.msra.mxu0 0.0
    %2842 = vmatprep.subr.mxu0 0.0
    %2843 = vmatpush1.msra.mxu0 0.0
    %2844 = vmatprep.subr.mxu0 0.0
    %2845 = vmatpush1.msra.mxu0 0.0
    %2846 = vmatprep.subr.mxu0 0.0
    %2847 = vmatpush1.msra.mxu0 %v2814
    %2848 = vmatprep.subr.mxu0 0.0
    %2849 = vmatpush2.msra.mxu0 0.0
    %2850 = vmatprep.subr.mxu0 0.0
    %2851 = vmatpush2.msra.mxu0 0.0
    %2852 = vmatprep.subr.mxu0 0.0
    %2853 = vmatpush2.msra.mxu0 0.0
    %2854 = vmatprep.subr.mxu0 0.0
    %2855 = vmatpush2.msra.mxu0 0.0
    %2856 = vmatprep.subr.mxu0 0.0
    %2857 = vmatpush2.msra.mxu0 0.0
    %2858 = vmatprep.subr.mxu0 0.0
    %2859 = vmatpush2.msra.mxu0 0.0
    %2860 = vmatprep.subr.mxu0 0.0
    %2861 = vmatpush2.msra.mxu0 0.0
    %2862 = vmatprep.subr.mxu0 0.0
    %2863 = vmatpush2.msra.mxu0 0.0
    %2864 = vmatprep.subr.mxu0 0.0
    %2865 = vmatpush2.msra.mxu0 0.0
    %2866 = vmatprep.subr.mxu0 0.0
    %2867 = vmatpush2.msra.mxu0 0.0
    %2868 = vmatprep.subr.mxu0 0.0
    %2869 = vmatpush2.msra.mxu0 0.0
    %2870 = vmatprep.subr.mxu0 0.0
    %2871 = vmatpush2.msra.mxu0 0.0
    %2872 = vmatprep.subr.mxu0 0.0
    %2873 = vmatpush2.msra.mxu0 0.0
    %2874 = vmatprep.subr.mxu0 0.0
    %2875 = vmatpush2.msra.mxu0 0.0
    %2876 = vmatprep.subr.mxu0 0.0
    %2877 = vmatpush2.msra.mxu0 0.0
    %2878 = vmatprep.subr.mxu0 0.0
    %2879 = vmatpush2.msra.mxu0 0.0
    %2880 = vmatprep.mubr.f32.mxu0 0.0
    %2881 = vmatmul.mubr.f32.gmra.mxu0 %v2811
    %v2882 = vpop.f32.mrf.mxu0
    %v2883 = vadd.f32 %v2808, %v2882
    %v2884 = vpop.f32.mrf.mxu0
    %2885 = vdwg.mxu0
    %v2886 = vadd.f32 %v2883, %v2802
    %v2887 = vmax.f32 %v2886, 0.0
    %v2888 = vld [vmem:[%s9] sm:$0xff]
    %v2889 = vld [vmem:[%s9 + $0x8] sm:$0x3]
    %v2890 = vld [vmem:[%s10] sm:$0xff]
    %v2891 = vld [vmem:[%s10 + $0x8] sm:$0x3]
    %2893 = vset.pattern.permute.xlu0 0
    %2894 = vperm.xlu0 %2893, %v2890
    %v2895 = vpop.permute.xlu0 %2894
    %2898 = vset.pattern.permute.xlu0 0
    %2899 = vperm.xlu0 %2898, %v2891
    %v2900 = vpop.permute.xlu0 %2899
    %v2903 = vsel %vm2723, %v2888, 0
    %v2906 = vsel %vm2723, %v2889, 0
    %v2909 = vsel %vm2727, %v2887, 0
    %2911 = vmatprep.subr.mxu0 0.0
    %2912 = vmatpush1.msra.mxu0 0.0
    %2913 = vmatprep.subr.mxu0 0.0
    %2914 = vmatpush1.msra.mxu0 0.0
    %2915 = vmatprep.subr.mxu0 0.0
    %2916 = vmatpush1.msra.mxu0 0.0
    %2917 = vmatprep.subr.mxu0 0.0
    %2918 = vmatpush1.msra.mxu0 0.0
    %2919 = vmatprep.subr.mxu0 0.0
    %2920 = vmatpush1.msra.mxu0 0.0
    %2921 = vmatprep.subr.mxu0 0.0
    %2922 = vmatpush1.msra.mxu0 0.0
    %2923 = vmatprep.subr.mxu0 0.0
    %2924 = vmatpush1.msra.mxu0 0.0
    %2925 = vmatprep.subr.mxu0 0.0
    %2926 = vmatpush1.msra.mxu0 0.0
    %2927 = vmatprep.subr.mxu0 0.0
    %2928 = vmatpush1.msra.mxu0 0.0
    %2929 = vmatprep.subr.mxu0 0.0
    %2930 = vmatpush1.msra.mxu0 0.0
    %2931 = vmatprep.subr.mxu0 0.0
    %2932 = vmatpush1.msra.mxu0 0.0
    %2933 = vmatprep.subr.mxu0 0.0
    %2934 = vmatpush1.msra.mxu0 0.0
    %2935 = vmatprep.subr.mxu0 0.0
    %2936 = vmatpush1.msra.mxu0 0.0
    %2937 = vmatprep.subr.mxu0 0.0
    %2938 = vmatpush1.msra.mxu0 0.0
    %2939 = vmatprep.subr.mxu0 0.0
    %2940 = vmatpush1.msra.mxu0 0.0
    %2941 = vmatprep.subr.mxu0 0.0
    %2942 = vmatpush1.msra.mxu0 %v2909
    %2943 = vmatprep.subr.mxu0 0.0
    %2944 = vmatpush2.msra.mxu0 0.0
    %2945 = vmatprep.subr.mxu0 0.0
    %2946 = vmatpush2.msra.mxu0 0.0
    %2947 = vmatprep.subr.mxu0 0.0
    %2948 = vmatpush2.msra.mxu0 0.0
    %2949 = vmatprep.subr.mxu0 0.0
    %2950 = vmatpush2.msra.mxu0 0.0
    %2951 = vmatprep.subr.mxu0 0.0
    %2952 = vmatpush2.msra.mxu0 0.0
    %2953 = vmatprep.subr.mxu0 0.0
    %2954 = vmatpush2.msra.mxu0 0.0
    %2955 = vmatprep.subr.mxu0 0.0
    %2956 = vmatpush2.msra.mxu0 0.0
    %2957 = vmatprep.subr.mxu0 0.0
    %2958 = vmatpush2.msra.mxu0 0.0
    %2959 = vmatprep.subr.mxu0 0.0
    %2960 = vmatpush2.msra.mxu0 0.0
    %2961 = vmatprep.subr.mxu0 0.0
    %2962 = vmatpush2.msra.mxu0 0.0
    %2963 = vmatprep.subr.mxu0 0.0
    %2964 = vmatpush2.msra.mxu0 0.0
    %2965 = vmatprep.subr.mxu0 0.0
    %2966 = vmatpush2.msra.mxu0 0.0
    %2967 = vmatprep.subr.mxu0 0.0
    %2968 = vmatpush2.msra.mxu0 0.0
    %2969 = vmatprep.subr.mxu0 0.0
    %2970 = vmatpush2.msra.mxu0 0.0
    %2971 = vmatprep.subr.mxu0 0.0
    %2972 = vmatpush2.msra.mxu0 0.0
    %2973 = vmatprep.subr.mxu0 0.0
    %2974 = vmatpush2.msra.mxu0 0.0
    %2975 = vmatprep.mubr.f32.mxu0 0.0
    %2976 = vmatmul.mubr.f32.gmra.mxu0 %v2903
    %v2977 = vpop.f32.mrf.mxu0
    %v2978 = vadd.f32 %v2895, %v2977
    %v2979 = vpop.f32.mrf.mxu0
    %2980 = vmatprep.mubr.f32.mxu0 0.0
    %2981 = vmatmul.mubr.f32.gmra.mxu0 %v2906
    %v2982 = vpop.f32.mrf.mxu0
    %v2983 = vadd.f32 %v2900, %v2982
    %v2984 = vpop.f32.mrf.mxu0
    %2985 = vdwg.mxu0
    %2986 = vst [vmem:[%s11] sm:$0xff] %v2978
    %2987 = vst [vmem:[%s11 + $0x8] sm:$0x3] %v2983
    // Predicated region
    $region50: #{cnn_forward.1} parent=1 // pred_check
      _
    $region51: #{cnn_forward.1} parent=1 // pred_check_branch
      %2989 = sbr.rel (0) target = $region53
    $region52: #{cnn_forward.1} parent=1 // pred_region
      _
    $region53: #{cnn_forward.1} parent=1 // pred_fallthru
      _
    // Predicated region
    $region54: #{cnn_forward.1} parent=1 // pred_check
      _
    $region55: #{cnn_forward.1} parent=1 // pred_check_branch
      %2991 = sbr.rel (0) target = $region57
    $region56: #{cnn_forward.1} parent=1 // pred_region
      _
    $region57: #{cnn_forward.1} parent=1 // pred_fallthru
      _
    %2992 = vsyncpa [#allocation4], 1

</llo_original>
